<compile_context>
chip_gen: v7x
topology: tpu7x:2x2x1
jax: 0.10.0
libtpu: 0.0.40
codegen_flags: <defaults>
</compile_context>

<pallas_src>
import functools
from math import gcd
import numpy as np

import jax
import jax.numpy as jnp
from jax.experimental import pallas as pl
from jax.experimental.pallas import tpu as pltpu

F32 = jnp.float32
BF16 = jnp.bfloat16
MASK_VALUE = -float(np.finfo(np.float32).max)   # == -torch.finfo(torch.float32).max


def _round_up(x, m):
    return ((x + m - 1) // m) * m


# ----------------------------------------------------------------------------
# In-kernel math helpers
# ----------------------------------------------------------------------------
def _erf_approx(x):
    # Abramowitz & Stegun 7.1.26 (|err| <= 1.5e-7); uses only exp/VPU ops so it
    # lowers everywhere, numerically matches F.gelu(approximate=False).
    a1, a2, a3, a4, a5 = (0.254829592, -0.284496736, 1.421413741,
                          -1.453152027, 1.061405429)
    p = 0.3275911
    s = jnp.where(x >= 0, 1.0, -1.0)
    ax = jnp.abs(x)
    t = 1.0 / (1.0 + p * ax)
    poly = ((((a5 * t + a4) * t + a3) * t + a2) * t + a1) * t
    return s * (1.0 - poly * jnp.exp(-ax * ax))


def _gelu(x):
    return x * 0.5 * (1.0 + _erf_approx(x * 0.7071067811865476))


# ----------------------------------------------------------------------------
# Tiled matmul kernel (bias / GELU / residual fused epilogue)
# ----------------------------------------------------------------------------
def _mm_kernel(x_ref, w_ref, *rest, has_bias, has_res, activation):
    pos = 0
    b_ref = rest[pos] if has_bias else None
    pos += 1 if has_bias else 0
    r_ref = rest[pos] if has_res else None
    pos += 1 if has_res else 0
    o_ref, acc_ref = rest[pos], rest[pos + 1]

    @pl.when(pl.program_id(2) == 0)
    def _init():
        acc_ref[...] = jnp.zeros_like(acc_ref)

    acc_ref[...] += jnp.dot(x_ref[...], w_ref[...],
                            preferred_element_type=jnp.float32)

    @pl.when(pl.program_id(2) == pl.num_programs(2) - 1)
    def _finalize():
        r = acc_ref[...]
        if has_bias:
            r = r + b_ref[...]
        if activation == "gelu":
            r = _gelu(r)
        if has_res:
            r = r + r_ref[...].astype(jnp.float32)
        o_ref[...] = r.astype(o_ref.dtype)


def _pad2(a, rows, cols):
    r, c = a.shape
    if r == rows and c == cols:
        return a
    return jnp.pad(a, ((0, rows - r), (0, cols - c)))


def matmul(x, w, bias=None, residual=None, activation=None, out_dtype=F32):
    """(M,K) @ (K,N) [+ bias] [-> gelu] [+ residual], bf16 MXU, f32 accumulate."""
    M, K = x.shape
    K2, N = w.shape
    assert K == K2

    # Tile selection (fits well under the 16 MiB v5e scoped-VMEM default and
    # v7x's 64 MiB; 256-wide lane tiles feed the v6e/v7x 256x256 MXU).
    if M <= 256:
        tm = _round_up(M, 16)
    elif M % 512 == 0:
        tm = 512
    else:
        tm = 256
    Mp = _round_up(M, tm)

    if K <= 512:
        tk = K
    elif K % 512 == 0:
        tk = 512
    else:
        tk = 256
    Kp = _round_up(K, tk)

    tn = N if N <= 256 else 256
    Np = _round_up(N, tn)

    xb = _pad2(x.astype(BF16), Mp, Kp)
    wb = _pad2(w.astype(BF16), Kp, Np)
    inputs = [xb, wb]
    in_specs = [pl.BlockSpec((tm, tk), lambda i, j, k: (i, k)),
                pl.BlockSpec((tk, tn), lambda i, j, k: (k, j))]

    has_bias = bias is not None
    if has_bias:
        bb = jnp.pad(bias.astype(F32).reshape(1, N), ((0, 0), (0, Np - N)))
        inputs.append(bb)
        in_specs.append(pl.BlockSpec((1, tn), lambda i, j, k: (0, j)))

    has_res = residual is not None
    if has_res:
        rb = _pad2(residual.astype(F32), Mp, Np)
        inputs.append(rb)
        in_specs.append(pl.BlockSpec((tm, tn), lambda i, j, k: (i, j)))

    grid = (Mp // tm, Np // tn, Kp // tk)
    kernel = functools.partial(_mm_kernel, has_bias=has_bias, has_res=has_res,
                               activation=activation)
    bytes_accessed = int(xb.size * 2 + wb.size * 2
                         + Mp * Np * jnp.dtype(out_dtype).itemsize
                         + (Mp * Np * 4 if has_res else 0))
    out = pl.pallas_call(
        kernel,
        out_shape=jax.ShapeDtypeStruct((Mp, Np), out_dtype),
        grid=grid,
        in_specs=in_specs,
        out_specs=pl.BlockSpec((tm, tn), lambda i, j, k: (i, j)),
        scratch_shapes=[pltpu.VMEM((tm, tn), jnp.float32)],
        compiler_params=pltpu.CompilerParams(
            dimension_semantics=("parallel", "parallel", "arbitrary")),
        cost_estimate=pl.CostEstimate(
            flops=2 * Mp * Np * Kp,
            transcendentals=(Mp * Np if activation == "gelu" else 0),
            bytes_accessed=bytes_accessed),
    )(*inputs)
    if (Mp, Np) != (M, N):
        out = out[:M, :N]
    return out


# ----------------------------------------------------------------------------
# Row-tiled layernorm kernel (PreNorm over d_model)
# ----------------------------------------------------------------------------
def _ln_kernel(x_ref, g_ref, b_ref, o_ref):
    x = x_ref[...]
    mu = jnp.mean(x, axis=-1, keepdims=True)
    xc = x - mu
    var = jnp.mean(xc * xc, axis=-1, keepdims=True)
    o_ref[...] = xc * jax.lax.rsqrt(var + 1e-5) * g_ref[...] + b_ref[...]


def layer_norm(x, gamma, beta):
    """nn.LayerNorm over the last dim (eps=1e-5), tiled over rows."""
    shp = x.shape
    D = shp[-1]
    x2 = x.reshape(-1, D).astype(F32)
    M = x2.shape[0]
    if M <= 256:
        tm = _round_up(M, 8)
    else:
        tm = 256
    Mp = _round_up(M, tm)
    if Mp != M:
        x2 = jnp.pad(x2, ((0, Mp - M), (0, 0)))
    out = pl.pallas_call(
        _ln_kernel,
        out_shape=jax.ShapeDtypeStruct((Mp, D), F32),
        grid=(Mp // tm,),
        in_specs=[pl.BlockSpec((tm, D), lambda i: (i, 0)),
                  pl.BlockSpec((1, D), lambda i: (0, 0)),
                  pl.BlockSpec((1, D), lambda i: (0, 0))],
        out_specs=pl.BlockSpec((tm, D), lambda i: (i, 0)),
        compiler_params=pltpu.CompilerParams(dimension_semantics=("parallel",)),
    )(x2, gamma.reshape(1, D).astype(F32), beta.reshape(1, D).astype(F32))
    if Mp != M:
        out = out[:M]
    return out.reshape(shp)


# ----------------------------------------------------------------------------
# Long-short attention core kernel
#   grid = (batch, windows); all heads handled per step; masks from iota;
#   local_norm / global_norm fused; lane-dense (w, h*d) output.
# ----------------------------------------------------------------------------
def _lsattn_kernel(q_ref, kvc_ref, kvp_ref, gkv_ref, km_ref, ln_ref, o_ref,
                   *, heads, w, seg):
    wi = pl.program_id(1)
    d = q_ref.shape[-1]
    jj = 2 * w
    ng = gkv_ref.shape[2]

    # position-only masks generated in-kernel (no HBM traffic)
    row = jax.lax.broadcasted_iota(jnp.int32, (w, jj), 0)
    col = jax.lax.broadcasted_iota(jnp.int32, (w, jj), 1)
    causal_keep = (col - row) < (jj - w + 1)
    pad_keep = (col + wi * w) >= w                 # backward look-around pad of window 0
    key_keep = km_ref[0, 0] != 0                   # (1, jj) looked-around key-padding mask
    lkeep = causal_keep & pad_keep & key_keep      # (w, jj)

    qrow = jax.lax.broadcasted_iota(jnp.int32, (w, ng), 0) + wi * w
    gcol = jax.lax.broadcasted_iota(jnp.int32, (w, ng), 1)
    gkeep = qrow >= (gcol + 1) * seg - 1           # (w, ng)

    lg = ln_ref[0:1, :]
    lb = ln_ref[1:2, :]
    gg = ln_ref[2:3, :]
    gb = ln_ref[3:4, :]

    def lnorm(v, g, bt):
        mu = jnp.mean(v, axis=-1, keepdims=True)
        vc = v - mu
        var = jnp.mean(vc * vc, axis=-1, keepdims=True)
        return vc * jax.lax.rsqrt(var + 1e-5) * g + bt

    # window 0 has a pad_value=-1.0 "previous window" (matches reference look_around)
    prev_flag = jnp.minimum(wi, 1).astype(jnp.float32)
    dn = (((1,), (1,)), ((), ()))

    outs = []
    for hh in range(heads):
        qh = q_ref[0, hh]                                  # (w, d)
        cur = kvc_ref[0, hh]                               # (w, d)
        prev = kvp_ref[0, hh] * prev_flag + (prev_flag - 1.0)
        lkv = lnorm(jnp.concatenate([prev, cur], axis=0), lg, lb)   # (2w, d)
        gkv = lnorm(gkv_ref[0, hh], gg, gb)                         # (ng, d)

        qb = qh.astype(BF16)
        lkvb = lkv.astype(BF16)
        gkvb = gkv.astype(BF16)
        lsim = jax.lax.dot_general(qb, lkvb, dn, preferred_element_type=jnp.float32)
        gsim = jax.lax.dot_general(qb, gkvb, dn, preferred_element_type=jnp.float32)
        lsim = jnp.where(lkeep, lsim, MASK_VALUE)
        gsim = jnp.where(gkeep, gsim, MASK_VALUE)

        # softmax over the concatenated [global | local] key axis, split-wise, f32
        m = jnp.maximum(jnp.max(lsim, axis=-1, keepdims=True),
                        jnp.max(gsim, axis=-1, keepdims=True))
        el = jnp.exp(lsim - m)
        eg = jnp.exp(gsim - m)
        denom = (jnp.sum(el, axis=-1, keepdims=True)
                 + jnp.sum(eg, axis=-1, keepdims=True))
        num = (jnp.dot(eg.astype(BF16), gkvb, preferred_element_type=jnp.float32)
               + jnp.dot(el.astype(BF16), lkvb, preferred_element_type=jnp.float32))
        outs.append(num / denom)

    res = jnp.concatenate(outs, axis=-1) if heads > 1 else outs[0]
    o_ref[0, 0] = res.astype(o_ref.dtype)


def lsattn_core(q4, kv4, gkv, kmask, ln_pack, *, heads, w, seg):
    b, h, padded_len, d = q4.shape
    windows = padded_len // w
    ng = gkv.shape[2]
    kernel = functools.partial(_lsattn_kernel, heads=heads, w=w, seg=seg)
    return pl.pallas_call(
        kernel,
        out_shape=jax.ShapeDtypeStruct((b, windows, w, h * d), F32),
        grid=(b, windows),
        in_specs=[
            pl.BlockSpec((1, h, w, d), lambda bi, wi: (bi, 0, wi, 0)),
            pl.BlockSpec((1, h, w, d), lambda bi, wi: (bi, 0, wi, 0)),
            pl.BlockSpec((1, h, w, d),
                         lambda bi, wi: (bi, 0, jnp.maximum(wi - 1, 0), 0)),
            pl.BlockSpec((1, h, ng, d), lambda bi, wi: (bi, 0, 0, 0)),
            pl.BlockSpec((1, 1, 1, 2 * w), lambda bi, wi: (bi, wi, 0, 0)),
            pl.BlockSpec((4, d), lambda bi, wi: (0, 0)),
        ],
        out_specs=pl.BlockSpec((1, 1, w, h * d), lambda bi, wi: (bi, wi, 0, 0)),
        compiler_params=pltpu.CompilerParams(
            dimension_semantics=("parallel", "parallel")),
    )(q4, kv4, kv4, gkv, kmask, ln_pack)


# ----------------------------------------------------------------------------
# JAX glue (faithful ports of the PyTorch helpers)
# ----------------------------------------------------------------------------
def lcm_(*numbers):
    return int(functools.reduce(lambda a, b: int(a * b / gcd(a, b)), numbers, 1))


def pad_to_multiple_jax(t, multiple, dim=-2, value=0.0):
    seqlen = t.shape[dim]
    rem = (-seqlen) % multiple
    if rem == 0:
        return t
    pad_width = [(0, 0)] * t.ndim
    pad_width[dim] = (0, rem)
    return jnp.pad(t, pad_width, constant_values=value)


def look_around_jax(x, backward=1, forward=0, pad_value=-1, dim=2):
    t = x.shape[1]
    pad_width = [(0, 0)] * x.ndim
    pad_width[1] = (backward, forward)
    padded = jnp.pad(x, pad_width, constant_values=pad_value)
    tensors = [padded[:, ind:ind + t] for ind in range(forward + backward + 1)]
    return jnp.concatenate(tensors, axis=dim)


def get_sinusoid_encoding_table(n_position, d_hid):
    pos = np.arange(n_position)[:, None].astype(np.float64)
    idx = np.arange(d_hid)[None, :]
    angle = pos / np.power(10000, 2 * (idx // 2) / d_hid)
    table = np.array(angle, dtype=np.float64)
    table[:, 0::2] = np.sin(table[:, 0::2])
    table[:, 1::2] = np.cos(table[:, 1::2])
    return jnp.asarray(table, dtype=F32)


def rotary_emb_table(seq_len, dim):
    inv_freq = 1.0 / (10000.0 ** (np.arange(0, dim, 2, dtype=np.float32) / dim))
    t = np.arange(seq_len, dtype=np.float32)
    freqs = np.einsum('i,j->ij', t, inv_freq)
    emb = np.concatenate([freqs, freqs], axis=-1)
    return jnp.asarray(emb, dtype=F32)        # (seq_len, dim)


def apply_rotary(freqs, t):
    rot_dim = freqs.shape[-1]
    t_rot, t_pass = t[..., :rot_dim], t[..., rot_dim:]
    d2 = rot_dim // 2
    x1, x2 = t_rot[..., :d2], t_rot[..., d2:]
    rotated = jnp.concatenate([-x2, x1], axis=-1)
    t_rot = t_rot * jnp.cos(freqs) + rotated * jnp.sin(freqs)
    if t_pass.shape[-1] == 0:
        return t_rot
    return jnp.concatenate([t_rot, t_pass], axis=-1)


def conv1d_matmul(x, weight, bias, ksize, activation=None, residual=None,
                  out_dtype=F32):
    """PyTorch Conv1d (padding=(k-1)//2) via bf16 im2col + one tiled Pallas matmul
    with fused bias/activation/residual.  k=1 skips im2col entirely."""
    b, n, c_in = x.shape
    c_out = weight.shape[0]
    if ksize == 1:
        cols = x.reshape(b * n, c_in)
        wmat = weight[:, :, 0].T
    else:
        p = (ksize - 1) // 2
        xp = jnp.pad(x.astype(BF16), ((0, 0), (p, p), (0, 0)))
        cols = jnp.concatenate([xp[:, dk:dk + n, :] for dk in range(ksize)],
                               axis=-1).reshape(b * n, ksize * c_in)
        wmat = jnp.transpose(weight, (2, 1, 0)).reshape(ksize * c_in, c_out)
    out = matmul(cols, wmat, bias=bias, activation=activation,
                 residual=residual, out_dtype=out_dtype)
    return out.reshape(b, n, c_out)


# ----------------------------------------------------------------------------
# LongShortAttention / FFN / FFTBlock / Decoder
# ----------------------------------------------------------------------------
def long_short_attention(xn, mask, p, residual, *, heads, dim_head, window_size,
                         segment_size, r):
    assert r == 1, "causal branch of reference only supports r == 1"
    b, n, dim = xn.shape
    h, w, s = heads, window_size, segment_size
    d = dim_head
    scale = d ** -0.5
    pad_mult = lcm_(w, s)                               # causal=True

    xpad = pad_to_multiple_jax(xn, pad_mult, dim=-2, value=0.0)
    padded_len = xpad.shape[1]
    windows = padded_len // w
    nseg = padded_len // s
    inner = h * d

    mask_p = pad_to_multiple_jax(mask, w, dim=-1, value=False)   # (b, padded_len)

    # q / kv projections (tiled bf16 Pallas matmuls; no synthetic zero bias)
    xf = xpad.reshape(b * padded_len, dim)
    q = matmul(xf, p['Wq'].T)
    kv = matmul(xf, p['Wkv'].T)

    def to_heads(t):
        return t.reshape(b, padded_len, h, d).transpose(0, 2, 1, 3)  # (b,h,n,d)

    q4, kv4 = to_heads(q), to_heads(kv)
    rot = rotary_emb_table(padded_len, d)[None, None]                # (1,1,n,d)
    q4 = apply_rotary(rot, q4) * scale
    kv4 = apply_rotary(rot, kv4)

    # causal global kv: dynamic projection (r=1) as a VPU reduction + softmax in JAX
    gseg = kv4.reshape(b, h, nseg, s, d)
    pkv = jnp.einsum('bhnsd,d->bhns', gseg, p['Wdyn'][0])
    pmask = jnp.broadcast_to(mask_p.reshape(b, 1, nseg, s), (b, h, nseg, s))
    pkv = jnp.where(pmask, pkv, MASK_VALUE)
    pkv = jax.nn.softmax(pkv, axis=-1)
    gkv = jnp.einsum('bhnsd,bhns->bhnd', gseg, pkv)                  # (b,h,nseg,d)

    # tiny looked-around key-padding mask (head-independent; causal/pad/global
    # masks are generated inside the kernel)
    km = mask_p.reshape(b, windows, w)
    km_la = look_around_jax(km, backward=1, forward=0, pad_value=False, dim=2)
    km_la = km_la.reshape(b, windows, 1, 2 * w).astype(jnp.int32)

    ln_pack = jnp.stack([p['ln_local_g'], p['ln_local_b'],
                         p['ln_global_g'], p['ln_global_b']], axis=0).astype(F32)

    attn = lsattn_core(q4.astype(F32), kv4.astype(F32), gkv.astype(F32),
                       km_la, ln_pack, heads=h, w=w, seg=s)
    # (b, windows, w, h*d) -> (b, padded_len, inner) -> crop -> output proj (+res)
    attn = attn.reshape(b, padded_len, inner)[:, :n].reshape(b * n, inner)
    out = matmul(attn, p['Wo'].T, bias=p['bo'],
                 residual=residual.reshape(b * n, dim))
    return out.reshape(b, n, dim)


def positionwise_ff(x, p, k0, k1, residual):
    b, n, c = x.shape
    h1 = conv1d_matmul(x, p['W1'], p['b1'], k0, activation="gelu", out_dtype=BF16)
    y = conv1d_matmul(h1, p['W2'], p['b2'], k1,
                      residual=residual.reshape(b * n, c))
    return y                                    # dropout: identity at eval


def fft_block(x, mask, layers, *, heads, dim_head, window_size, segment_size,
              r, k0, k1):
    for lp in layers:
        xn = layer_norm(x, lp['ln1_g'], lp['ln1_b'])
        x = long_short_attention(xn, mask, lp['attn'], x, heads=heads,
                                 dim_head=dim_head, window_size=window_size,
                                 segment_size=segment_size, r=r)
        x = jnp.where(mask[:, :, None], 0.0, x)
        xn = layer_norm(x, lp['ln2_g'], lp['ln2_b'])
        x = positionwise_ff(xn, lp['ff'], k0, k1, x)
        x = jnp.where(mask[:, :, None], 0.0, x)
    return x


def decoder_forward(enc_seq, mask, params, config):
    # TODO(synk): the eval-time branch for seq_len > max_seq_len (fresh sinusoid
    # table) is not exercised at these shapes and is omitted.
    tr = config['transformer']
    max_seq_len = config['max_seq_len']
    b, seq_len, _ = enc_seq.shape
    max_len = min(seq_len, max_seq_len)
    dec = enc_seq[:, :max_len, :] + params['position_enc'][:, :max_len, :]
    mask = mask[:, :max_len]
    dec = fft_block(dec, mask, params['layers'],
                    heads=tr['decoder_head'],
                    dim_head=tr['decoder_hidden'] // tr['decoder_head'],
                    window_size=128, segment_size=16, r=1,
                    k0=tr['conv_kernel_size'][0], k1=tr['conv_kernel_size'][1])
    return dec, mask


# ----------------------------------------------------------------------------
# Deterministic parameter init
# ----------------------------------------------------------------------------
def init_params(key, config):
    tr = config['transformer']
    d_model = tr['decoder_hidden']
    n_head = tr['decoder_head']
    d_head = d_model // n_head
    d_inner = tr['conv_filter_size']
    k0, k1 = tr['conv_kernel_size']
    inner_dim = n_head * d_head
    n_layers = tr['decoder_layer']
    r = 1

    keys = iter(jax.random.split(key, 64))

    def rnd(shape, fan_in):
        return (jax.random.normal(next(keys), shape, F32) / np.sqrt(fan_in)).astype(F32)

    layers = []
    for _ in range(n_layers):
        attn = {
            'Wq': rnd((inner_dim, d_model), d_model),
            'Wkv': rnd((inner_dim, d_model), d_model),
            'Wo': rnd((d_model, inner_dim), inner_dim),
            'bo': rnd((d_model,), inner_dim),
            'Wdyn': rnd((r, d_head), d_head),
            'ln_local_g': jnp.ones((d_head,), F32),
            'ln_local_b': jnp.zeros((d_head,), F32),
            'ln_global_g': jnp.ones((d_head,), F32),
            'ln_global_b': jnp.zeros((d_head,), F32),
        }
        ff = {
            'W1': rnd((d_inner, d_model, k0), d_model * k0),
            'b1': rnd((d_inner,), d_model * k0),
            'W2': rnd((d_model, d_inner, k1), d_inner * k1),
            'b2': rnd((d_model,), d_inner * k1),
        }
        layers.append({
            'attn': attn, 'ff': ff,
            'ln1_g': jnp.ones((d_model,), F32), 'ln1_b': jnp.zeros((d_model,), F32),
            'ln2_g': jnp.ones((d_model,), F32), 'ln2_b': jnp.zeros((d_model,), F32),
        })

    pos_enc = get_sinusoid_encoding_table(config['max_seq_len'] + 1, d_model)[None]
    return {'position_enc': pos_enc, 'layers': layers}


# ----------------------------------------------------------------------------
if __name__ == "__main__":
    config = {
        'max_seq_len': 32,
        'transformer': {
            'decoder_hidden': 32,
            'decoder_layer': 1,
            'decoder_head': 2,
            'conv_filter_size': 64,
            'conv_kernel_size': [3, 1],
            'decoder_dropout': 0.1,   # eval mode: dropout is identity
        },
    }

    root = jax.random.PRNGKey(0)
    k_param, k_x = jax.random.split(root)
    params = init_params(k_param, config)

    b, seq, d_model = 2, 8, config['transformer']['decoder_hidden']
    enc_seq = jax.random.normal(k_x, (b, seq, d_model), F32)
    lengths = jnp.array([8, 6])
    mask = jnp.arange(seq)[None, :] >= lengths[:, None]   # True = padding position

    @jax.jit
    def run(e, m):
        return decoder_forward(e, m, params, config)

    dec_out, out_mask = run(enc_seq, mask)
    jax.block_until_ready(dec_out)
    assert dec_out.shape == (b, seq, d_model)
    assert bool(jnp.all(jnp.isfinite(dec_out)))
    print("KERNEL_OK")
</pallas_src>

<mosaic_0001>
module attributes {stable_mosaic.version = 11 : i64} {
  func.func @_ln_kernel(%arg0: i32, %arg1: memref<16x32xf32, #tpu.memory_space<vmem>>, %arg2: memref<1x32xf32, #tpu.memory_space<vmem>>, %arg3: memref<1x32xf32, #tpu.memory_space<vmem>>, %arg4: memref<16x32xf32, #tpu.memory_space<vmem>>) attributes {dimension_semantics = [#tpu.dimension_semantics<parallel>], iteration_bounds = array<i64: 1>, scalar_prefetch = 0 : i64, scratch_operands = 0 : i64, tpu.core_type = #tpu.core_type<tc>, window_params = [{transform_indices = @transform_0, window_bounds = array<i64: 16, 32>}, {pipeline_mode = #tpu.pipeline_mode<synchronous>, transform_indices = @transform_1, window_bounds = array<i64: 1, 32>}, {pipeline_mode = #tpu.pipeline_mode<synchronous>, transform_indices = @transform_2, window_bounds = array<i64: 1, 32>}, {transform_indices = @transform_3, window_bounds = array<i64: 16, 32>}]} {
    %c0 = arith.constant 0 : index
    %c0_0 = arith.constant 0 : index
    %0 = vector.load %arg1[%c0, %c0_0] : memref<16x32xf32, #tpu.memory_space<vmem>>, vector<16x32xf32>
    %cst = arith.constant dense<0.000000e+00> : vector<16xf32>
    %1 = vector.multi_reduction <add>, %0, %cst [1] : vector<16x32xf32> to vector<16xf32>
    %2 = vector.shape_cast %1 : vector<16xf32> to vector<16x1xf32>
    %cst_1 = arith.constant 3.200000e+01 : f32
    %3 = vector.broadcast %cst_1 : f32 to vector<16x1xf32>
    %4 = arith.divf %2, %3 : vector<16x1xf32>
    %5 = vector.broadcast %4 : vector<16x1xf32> to vector<16x32xf32>
    %6 = arith.subf %0, %5 : vector<16x32xf32>
    %7 = arith.mulf %6, %6 : vector<16x32xf32>
    %cst_2 = arith.constant dense<0.000000e+00> : vector<16xf32>
    %8 = vector.multi_reduction <add>, %7, %cst_2 [1] : vector<16x32xf32> to vector<16xf32>
    %9 = vector.shape_cast %8 : vector<16xf32> to vector<16x1xf32>
    %cst_3 = arith.constant 3.200000e+01 : f32
    %10 = vector.broadcast %cst_3 : f32 to vector<16x1xf32>
    %11 = arith.divf %9, %10 : vector<16x1xf32>
    %cst_4 = arith.constant 9.99999974E-6 : f32
    %12 = vector.broadcast %cst_4 : f32 to vector<16x1xf32>
    %13 = arith.addf %11, %12 : vector<16x1xf32>
    %14 = math.rsqrt %13 : vector<16x1xf32>
    %15 = vector.broadcast %14 : vector<16x1xf32> to vector<16x32xf32>
    %16 = arith.mulf %6, %15 : vector<16x32xf32>
    %c0_5 = arith.constant 0 : index
    %c0_6 = arith.constant 0 : index
    %17 = vector.load %arg2[%c0_5, %c0_6] : memref<1x32xf32, #tpu.memory_space<vmem>>, vector<1x32xf32>
    %18 = vector.broadcast %17 : vector<1x32xf32> to vector<16x32xf32>
    %19 = arith.mulf %16, %18 : vector<16x32xf32>
    %c0_7 = arith.constant 0 : index
    %c0_8 = arith.constant 0 : index
    %20 = vector.load %arg3[%c0_7, %c0_8] : memref<1x32xf32, #tpu.memory_space<vmem>>, vector<1x32xf32>
    %21 = vector.broadcast %20 : vector<1x32xf32> to vector<16x32xf32>
    %22 = arith.addf %19, %21 : vector<16x32xf32>
    %c0_9 = arith.constant 0 : index
    %c0_10 = arith.constant 0 : index
    %23 = vector.load %arg4[%c0_9, %c0_10] : memref<16x32xf32, #tpu.memory_space<vmem>>, vector<16x32xf32>
    tpu.vector_store %arg4[%c0_9, %c0_10], %22 {strides = array<i32>} : memref<16x32xf32, #tpu.memory_space<vmem>>, vector<16x32xf32>,
    return
  }
  func.func @transform_0(%arg0: i32) -> (i32, i32) {
    %c0_i32 = arith.constant 0 : i32
    %c0_i32_0 = arith.constant 0 : i32
    return %arg0, %c0_i32 : i32, i32
  }
  func.func @transform_1(%arg0: i32) -> (i32, i32) {
    %c0_i32 = arith.constant 0 : i32
    %c0_i32_0 = arith.constant 0 : i32
    %c0_i32_1 = arith.constant 0 : i32
    return %c0_i32, %c0_i32_0 : i32, i32
  }
  func.func @transform_2(%arg0: i32) -> (i32, i32) {
    %c0_i32 = arith.constant 0 : i32
    %c0_i32_0 = arith.constant 0 : i32
    %c0_i32_1 = arith.constant 0 : i32
    return %c0_i32, %c0_i32_0 : i32, i32
  }
  func.func @transform_3(%arg0: i32) -> (i32, i32) {
    %c0_i32 = arith.constant 0 : i32
    %c0_i32_0 = arith.constant 0 : i32
    return %arg0, %c0_i32 : i32, i32
  }
}

module attributes {stable_mosaic.version = 11 : i64} {
  func.func @_mm_kernel(%arg0: i32, %arg1: i32, %arg2: i32, %arg3: memref<256x32xbf16, #tpu.memory_space<vmem>>, %arg4: memref<32x32xbf16, #tpu.memory_space<vmem>>, %arg5: memref<256x32xf32, #tpu.memory_space<vmem>>, %arg6: memref<256x32xf32, #tpu.memory_space<vmem>>) attributes {dimension_semantics = [#tpu.dimension_semantics<parallel>, #tpu.dimension_semantics<parallel>, #tpu.dimension_semantics<arbitrary>], iteration_bounds = array<i64: 1, 1, 1>, scalar_prefetch = 0 : i64, scratch_operands = 1 : i64, tpu.core_type = #tpu.core_type<tc>, window_params = [{transform_indices = @transform_0, window_bounds = array<i64: 256, 32>}, {transform_indices = @transform_1, window_bounds = array<i64: 32, 32>}, {transform_indices = @transform_2, window_bounds = array<i64: 256, 32>}]} {
    %c0_i32 = arith.constant 0 : i32
    %0 = arith.cmpi eq, %arg2, %c0_i32 : i32
    %1 = arith.extui %0 : i1 to i32
    %c0_i32_0 = arith.constant 0 : i32
    %2 = arith.cmpi ne, %1, %c0_i32_0 : i32
    scf.if %2 {
      %cst_10 = arith.constant 0.000000e+00 : f32
      %12 = vector.broadcast %cst_10 : f32 to vector<256x32xf32>
      %c0_11 = arith.constant 0 : index
      %c0_12 = arith.constant 0 : index
      %13 = vector.load %arg6[%c0_11, %c0_12] : memref<256x32xf32, #tpu.memory_space<vmem>>, vector<256x32xf32>
      tpu.vector_store %arg6[%c0_11, %c0_12], %12 {strides = array<i32>} : memref<256x32xf32, #tpu.memory_space<vmem>>, vector<256x32xf32>,
    } else {
    }
    %c0 = arith.constant 0 : index
    %c0_1 = arith.constant 0 : index
    %3 = vector.load %arg6[%c0, %c0_1] : memref<256x32xf32, #tpu.memory_space<vmem>>, vector<256x32xf32>
    %c0_2 = arith.constant 0 : index
    %c0_3 = arith.constant 0 : index
    %4 = vector.load %arg3[%c0_2, %c0_3] : memref<256x32xbf16, #tpu.memory_space<vmem>>, vector<256x32xbf16>
    %c0_4 = arith.constant 0 : index
    %c0_5 = arith.constant 0 : index
    %5 = vector.load %arg4[%c0_4, %c0_5] : memref<32x32xbf16, #tpu.memory_space<vmem>>, vector<32x32xbf16>
    %cst = arith.constant dense<0.000000e+00> : vector<256x32xf32>
    %6 = tpu.matmul %4, %5, %cst {dimension_numbers = #tpu.dot_dimension_numbers<[1], [0], [0], [1], [0, 0, 1, 1], [], []>} : vector<256x32xbf16>, vector<32x32xbf16>, vector<256x32xf32> -> vector<256x32xf32>
    %7 = arith.addf %3, %6 : vector<256x32xf32>
    %c0_6 = arith.constant 0 : index
    %c0_7 = arith.constant 0 : index
    %8 = vector.load %arg6[%c0_6, %c0_7] : memref<256x32xf32, #tpu.memory_space<vmem>>, vector<256x32xf32>
    tpu.vector_store %arg6[%c0_6, %c0_7], %7 {strides = array<i32>} : memref<256x32xf32, #tpu.memory_space<vmem>>, vector<256x32xf32>,
    %c0_i32_8 = arith.constant 0 : i32
    %9 = arith.cmpi eq, %arg2, %c0_i32_8 : i32
    %10 = arith.extui %9 : i1 to i32
    %c0_i32_9 = arith.constant 0 : i32
    %11 = arith.cmpi ne, %10, %c0_i32_9 : i32
    scf.if %11 {
      %c0_10 = arith.constant 0 : index
      %c0_11 = arith.constant 0 : index
      %12 = vector.load %arg6[%c0_10, %c0_11] : memref<256x32xf32, #tpu.memory_space<vmem>>, vector<256x32xf32>
      %c0_12 = arith.constant 0 : index
      %c0_13 = arith.constant 0 : index
      %13 = vector.load %arg5[%c0_12, %c0_13] : memref<256x32xf32, #tpu.memory_space<vmem>>, vector<256x32xf32>
      tpu.vector_store %arg5[%c0_12, %c0_13], %12 {strides = array<i32>} : memref<256x32xf32, #tpu.memory_space<vmem>>, vector<256x32xf32>,
    } else {
    }
    return
  }
  func.func @transform_0(%arg0: i32, %arg1: i32, %arg2: i32) -> (i32, i32) {
    %c0_i32 = arith.constant 0 : i32
    return %arg0, %arg2 : i32, i32
  }
  func.func @transform_1(%arg0: i32, %arg1: i32, %arg2: i32) -> (i32, i32) {
    %c0_i32 = arith.constant 0 : i32
    return %arg2, %arg1 : i32, i32
  }
  func.func @transform_2(%arg0: i32, %arg1: i32, %arg2: i32) -> (i32, i32) {
    %c0_i32 = arith.constant 0 : i32
    return %arg0, %arg1 : i32, i32
  }
}

module attributes {stable_mosaic.version = 11 : i64} {
  func.func @_lsattn_kernel(%arg0: i32, %arg1: i32, %arg2: memref<1x2x128x16xf32, #tpu.memory_space<vmem>>, %arg3: memref<1x2x128x16xf32, #tpu.memory_space<vmem>>, %arg4: memref<1x2x128x16xf32, #tpu.memory_space<vmem>>, %arg5: memref<1x2x8x16xf32, #tpu.memory_space<vmem>>, %arg6: memref<1x1x1x256xi32, #tpu.memory_space<vmem>>, %arg7: memref<4x16xf32, #tpu.memory_space<vmem>>, %arg8: memref<1x1x128x32xf32, #tpu.memory_space<vmem>>) attributes {dimension_semantics = [#tpu.dimension_semantics<parallel>, #tpu.dimension_semantics<parallel>], iteration_bounds = array<i64: 2, 1>, scalar_prefetch = 0 : i64, scratch_operands = 0 : i64, tpu.core_type = #tpu.core_type<tc>, window_params = [{transform_indices = @transform_0, window_bounds = array<i64: 1, 2, 128, 16>}, {transform_indices = @transform_1, window_bounds = array<i64: 1, 2, 128, 16>}, {transform_indices = @transform_2, window_bounds = array<i64: 1, 2, 128, 16>}, {transform_indices = @transform_3, window_bounds = array<i64: 1, 2, 8, 16>}, {transform_indices = @transform_4, window_bounds = array<i64: 1, 1, 1, 256>}, {pipeline_mode = #tpu.pipeline_mode<synchronous>, transform_indices = @transform_5, window_bounds = array<i64: 4, 16>}, {transform_indices = @transform_6, window_bounds = array<i64: 1, 1, 128, 32>}]} {
    %0 = tpu.iota {dimensions = array<i32: 0>} : vector<128x256xi32>
    %1 = tpu.iota {dimensions = array<i32: 1>} : vector<128x256xi32>
    %2 = arith.subi %1, %0 : vector<128x256xi32>
    %c129_i32 = arith.constant 129 : i32
    %3 = vector.broadcast %c129_i32 : i32 to vector<128x256xi32>
    %4 = arith.cmpi slt, %2, %3 : vector<128x256xi32>
    %c128_i32 = arith.constant 128 : i32
    %5 = arith.muli %arg1, %c128_i32 : i32
    %6 = vector.broadcast %5 : i32 to vector<128x256xi32>
    %7 = arith.addi %1, %6 : vector<128x256xi32>
    %c128_i32_0 = arith.constant 128 : i32
    %8 = vector.broadcast %c128_i32_0 : i32 to vector<128x256xi32>
    %9 = arith.cmpi sge, %7, %8 : vector<128x256xi32>
    %c0 = arith.constant 0 : index
    %c0_1 = arith.constant 0 : index
    %c0_2 = arith.constant 0 : index
    %c0_3 = arith.constant 0 : index
    %10 = vector.load %arg6[%c0, %c0_1, %c0_2, %c0_3] : memref<1x1x1x256xi32, #tpu.memory_space<vmem>>, vector<1x1x1x256xi32>
    %11 = vector.shape_cast %10 : vector<1x1x1x256xi32> to vector<1x256xi32>
    %c0_i32 = arith.constant 0 : i32
    %12 = vector.broadcast %c0_i32 : i32 to vector<1x256xi32>
    %13 = arith.cmpi ne, %11, %12 : vector<1x256xi32>
    %14 = arith.andi %4, %9 : vector<128x256xi1>
    %15 = vector.broadcast %13 : vector<1x256xi1> to vector<128x256xi1>
    %16 = arith.andi %14, %15 : vector<128x256xi1>
    %17 = tpu.iota {dimensions = array<i32: 0>} : vector<128x8xi32>
    %c128_i32_4 = arith.constant 128 : i32
    %18 = arith.muli %arg1, %c128_i32_4 : i32
    %19 = vector.broadcast %18 : i32 to vector<128x8xi32>
    %20 = arith.addi %17, %19 : vector<128x8xi32>
    %21 = tpu.iota {dimensions = array<i32: 1>} : vector<128x8xi32>
    %c1_i32 = arith.constant 1 : i32
    %22 = vector.broadcast %c1_i32 : i32 to vector<128x8xi32>
    %23 = arith.addi %21, %22 : vector<128x8xi32>
    %c16_i32 = arith.constant 16 : i32
    %24 = vector.broadcast %c16_i32 : i32 to vector<128x8xi32>
    %25 = arith.muli %23, %24 : vector<128x8xi32>
    %c1_i32_5 = arith.constant 1 : i32
    %26 = vector.broadcast %c1_i32_5 : i32 to vector<128x8xi32>
    %27 = arith.subi %25, %26 : vector<128x8xi32>
    %28 = arith.cmpi sge, %20, %27 : vector<128x8xi32>
    %c0_6 = arith.constant 0 : index
    %c0_7 = arith.constant 0 : index
    %29 = vector.load %arg7[%c0_6, %c0_7] : memref<4x16xf32, #tpu.memory_space<vmem>>, vector<1x16xf32>
    %c1 = arith.constant 1 : index
    %c0_8 = arith.constant 0 : index
    %30 = vector.load %arg7[%c1, %c0_8] : memref<4x16xf32, #tpu.memory_space<vmem>>, vector<1x16xf32>
    %c2 = arith.constant 2 : index
    %c0_9 = arith.constant 0 : index
    %31 = vector.load %arg7[%c2, %c0_9] : memref<4x16xf32, #tpu.memory_space<vmem>>, vector<1x16xf32>
    %c3 = arith.constant 3 : index
    %c0_10 = arith.constant 0 : index
    %32 = vector.load %arg7[%c3, %c0_10] : memref<4x16xf32, #tpu.memory_space<vmem>>, vector<1x16xf32>
    %c1_i32_11 = arith.constant 1 : i32
    %33 = arith.minsi %arg1, %c1_i32_11 : i32
    %34 = arith.sitofp %33 : i32 to f32
    %c0_12 = arith.constant 0 : index
    %c0_13 = arith.constant 0 : index
    %c0_14 = arith.constant 0 : index
    %c0_15 = arith.constant 0 : index
    %35 = vector.load %arg2[%c0_12, %c0_13, %c0_14, %c0_15] : memref<1x2x128x16xf32, #tpu.memory_space<vmem>>, vector<1x1x128x16xf32>
    %36 = vector.shape_cast %35 : vector<1x1x128x16xf32> to vector<128x16xf32>
    %c0_16 = arith.constant 0 : index
    %c0_17 = arith.constant 0 : index
    %c0_18 = arith.constant 0 : index
    %c0_19 = arith.constant 0 : index
    %37 = vector.load %arg3[%c0_16, %c0_17, %c0_18, %c0_19] : memref<1x2x128x16xf32, #tpu.memory_space<vmem>>, vector<1x1x128x16xf32>
    %38 = vector.shape_cast %37 : vector<1x1x128x16xf32> to vector<128x16xf32>
    %c0_20 = arith.constant 0 : index
    %c0_21 = arith.constant 0 : index
    %c0_22 = arith.constant 0 : index
    %c0_23 = arith.constant 0 : index
    %39 = vector.load %arg4[%c0_20, %c0_21, %c0_22, %c0_23] : memref<1x2x128x16xf32, #tpu.memory_space<vmem>>, vector<1x1x128x16xf32>
    %40 = vector.shape_cast %39 : vector<1x1x128x16xf32> to vector<128x16xf32>
    %41 = vector.broadcast %34 : f32 to vector<128x16xf32>
    %42 = arith.mulf %40, %41 : vector<128x16xf32>
    %cst = arith.constant 1.000000e+00 : f32
    %43 = arith.subf %34, %cst : f32
    %44 = vector.broadcast %43 : f32 to vector<128x16xf32>
    %45 = arith.addf %42, %44 : vector<128x16xf32>
    %46 = tpu.concatenate %45, %38 in 0 : vector<128x16xf32>, vector<128x16xf32> -> vector<256x16xf32>
    %cst_24 = arith.constant dense<0.000000e+00> : vector<256xf32>
    %47 = vector.multi_reduction <add>, %46, %cst_24 [1] : vector<256x16xf32> to vector<256xf32>
    %48 = vector.shape_cast %47 : vector<256xf32> to vector<256x1xf32>
    %cst_25 = arith.constant 1.600000e+01 : f32
    %49 = vector.broadcast %cst_25 : f32 to vector<256x1xf32>
    %50 = arith.divf %48, %49 : vector<256x1xf32>
    %51 = vector.broadcast %50 : vector<256x1xf32> to vector<256x16xf32>
    %52 = arith.subf %46, %51 : vector<256x16xf32>
    %53 = arith.mulf %52, %52 : vector<256x16xf32>
    %cst_26 = arith.constant dense<0.000000e+00> : vector<256xf32>
    %54 = vector.multi_reduction <add>, %53, %cst_26 [1] : vector<256x16xf32> to vector<256xf32>
    %55 = vector.shape_cast %54 : vector<256xf32> to vector<256x1xf32>
    %cst_27 = arith.constant 1.600000e+01 : f32
    %56 = vector.broadcast %cst_27 : f32 to vector<256x1xf32>
    %57 = arith.divf %55, %56 : vector<256x1xf32>
    %cst_28 = arith.constant 9.99999974E-6 : f32
    %58 = vector.broadcast %cst_28 : f32 to vector<256x1xf32>
    %59 = arith.addf %57, %58 : vector<256x1xf32>
    %60 = math.rsqrt %59 : vector<256x1xf32>
    %61 = vector.broadcast %60 : vector<256x1xf32> to vector<256x16xf32>
    %62 = arith.mulf %52, %61 : vector<256x16xf32>
    %63 = vector.broadcast %29 : vector<1x16xf32> to vector<256x16xf32>
    %64 = arith.mulf %62, %63 : vector<256x16xf32>
    %65 = vector.broadcast %30 : vector<1x16xf32> to vector<256x16xf32>
    %66 = arith.addf %64, %65 : vector<256x16xf32>
    %c0_29 = arith.constant 0 : index
    %c0_30 = arith.constant 0 : index
    %c0_31 = arith.constant 0 : index
    %c0_32 = arith.constant 0 : index
    %67 = vector.load %arg5[%c0_29, %c0_30, %c0_31, %c0_32] : memref<1x2x8x16xf32, #tpu.memory_space<vmem>>, vector<1x1x8x16xf32>
    %68 = vector.shape_cast %67 : vector<1x1x8x16xf32> to vector<8x16xf32>
    %cst_33 = arith.constant dense<0.000000e+00> : vector<8xf32>
    %69 = vector.multi_reduction <add>, %68, %cst_33 [1] : vector<8x16xf32> to vector<8xf32>
    %70 = vector.shape_cast %69 : vector<8xf32> to vector<8x1xf32>
    %cst_34 = arith.constant 1.600000e+01 : f32
    %71 = vector.broadcast %cst_34 : f32 to vector<8x1xf32>
    %72 = arith.divf %70, %71 : vector<8x1xf32>
    %73 = vector.broadcast %72 : vector<8x1xf32> to vector<8x16xf32>
    %74 = arith.subf %68, %73 : vector<8x16xf32>
    %75 = arith.mulf %74, %74 : vector<8x16xf32>
    %cst_35 = arith.constant dense<0.000000e+00> : vector<8xf32>
    %76 = vector.multi_reduction <add>, %75, %cst_35 [1] : vector<8x16xf32> to vector<8xf32>
    %77 = vector.shape_cast %76 : vector<8xf32> to vector<8x1xf32>
    %cst_36 = arith.constant 1.600000e+01 : f32
    %78 = vector.broadcast %cst_36 : f32 to vector<8x1xf32>
    %79 = arith.divf %77, %78 : vector<8x1xf32>
    %cst_37 = arith.constant 9.99999974E-6 : f32
    %80 = vector.broadcast %cst_37 : f32 to vector<8x1xf32>
    %81 = arith.addf %79, %80 : vector<8x1xf32>
    %82 = math.rsqrt %81 : vector<8x1xf32>
    %83 = vector.broadcast %82 : vector<8x1xf32> to vector<8x16xf32>
    %84 = arith.mulf %74, %83 : vector<8x16xf32>
    %85 = vector.broadcast %31 : vector<1x16xf32> to vector<8x16xf32>
    %86 = arith.mulf %84, %85 : vector<8x16xf32>
    %87 = vector.broadcast %32 : vector<1x16xf32> to vector<8x16xf32>
    %88 = arith.addf %86, %87 : vector<8x16xf32>
    %89 = arith.truncf %36 : vector<128x16xf32> to vector<128x16xbf16>
    %90 = arith.truncf %66 : vector<256x16xf32> to vector<256x16xbf16>
    %91 = arith.truncf %88 : vector<8x16xf32> to vector<8x16xbf16>
    %cst_38 = arith.constant dense<0.000000e+00> : vector<128x256xf32>
    %92 = tpu.matmul %89, %90, %cst_38 {dimension_numbers = #tpu.dot_dimension_numbers<[1], [1], [0], [0], [0, 0, 1, 0], [], []>} : vector<128x16xbf16>, vector<256x16xbf16>, vector<128x256xf32> -> vector<128x256xf32>
    %cst_39 = arith.constant dense<0.000000e+00> : vector<128x8xf32>
    %93 = tpu.matmul %89, %91, %cst_39 {dimension_numbers = #tpu.dot_dimension_numbers<[1], [1], [0], [0], [0, 0, 1, 0], [], []>} : vector<128x16xbf16>, vector<8x16xbf16>, vector<128x8xf32> -> vector<128x8xf32>
    %cst_40 = arith.constant -3.40282347E+38 : f32
    %94 = vector.broadcast %cst_40 : f32 to vector<128x256xf32>
    %95 = arith.select %16, %92, %94 : vector<128x256xi1>, vector<128x256xf32>
    %cst_41 = arith.constant -3.40282347E+38 : f32
    %96 = vector.broadcast %cst_41 : f32 to vector<128x8xf32>
    %97 = arith.select %28, %93, %96 : vector<128x8xi1>, vector<128x8xf32>
    %cst_42 = arith.constant dense<0xFF800000> : vector<128xf32>
    %98 = vector.multi_reduction <maximumf>, %95, %cst_42 [1] : vector<128x256xf32> to vector<128xf32>
    %99 = vector.shape_cast %98 : vector<128xf32> to vector<128x1xf32>
    %cst_43 = arith.constant dense<0xFF800000> : vector<128xf32>
    %100 = vector.multi_reduction <maximumf>, %97, %cst_43 [1] : vector<128x8xf32> to vector<128xf32>
    %101 = vector.shape_cast %100 : vector<128xf32> to vector<128x1xf32>
    %102 = arith.maximumf %99, %101 : vector<128x1xf32>
    %103 = vector.broadcast %102 : vector<128x1xf32> to vector<128x256xf32>
    %104 = arith.subf %95, %103 : vector<128x256xf32>
    %105 = math.exp %104 : vector<128x256xf32>
    %106 = vector.broadcast %102 : vector<128x1xf32> to vector<128x8xf32>
    %107 = arith.subf %97, %106 : vector<128x8xf32>
    %108 = math.exp %107 : vector<128x8xf32>
    %cst_44 = arith.constant dense<0.000000e+00> : vector<128xf32>
    %109 = vector.multi_reduction <add>, %105, %cst_44 [1] : vector<128x256xf32> to vector<128xf32>
    %110 = vector.shape_cast %109 : vector<128xf32> to vector<128x1xf32>
    %cst_45 = arith.constant dense<0.000000e+00> : vector<128xf32>
    %111 = vector.multi_reduction <add>, %108, %cst_45 [1] : vector<128x8xf32> to vector<128xf32>
    %112 = vector.shape_cast %111 : vector<128xf32> to vector<128x1xf32>
    %113 = arith.addf %110, %112 : vector<128x1xf32>
    %114 = arith.truncf %108 : vector<128x8xf32> to vector<128x8xbf16>
    %cst_46 = arith.constant dense<0.000000e+00> : vector<128x16xf32>
    %115 = tpu.matmul %114, %91, %cst_46 {dimension_numbers = #tpu.dot_dimension_numbers<[1], [0], [0], [1], [0, 0, 1, 1], [], []>} : vector<128x8xbf16>, vector<8x16xbf16>, vector<128x16xf32> -> vector<128x16xf32>
    %116 = arith.truncf %105 : vector<128x256xf32> to vector<128x256xbf16>
    %cst_47 = arith.constant dense<0.000000e+00> : vector<128x16xf32>
    %117 = tpu.matmul %116, %90, %cst_47 {dimension_numbers = #tpu.dot_dimension_numbers<[1], [0], [0], [1], [0, 0, 1, 1], [], []>} : vector<128x256xbf16>, vector<256x16xbf16>, vector<128x16xf32> -> vector<128x16xf32>
    %118 = arith.addf %115, %117 : vector<128x16xf32>
    %119 = vector.broadcast %113 : vector<128x1xf32> to vector<128x16xf32>
    %120 = arith.divf %118, %119 : vector<128x16xf32>
    %c0_48 = arith.constant 0 : index
    %c1_49 = arith.constant 1 : index
    %c0_50 = arith.constant 0 : index
    %c0_51 = arith.constant 0 : index
    %121 = vector.load %arg2[%c0_48, %c1_49, %c0_50, %c0_51] : memref<1x2x128x16xf32, #tpu.memory_space<vmem>>, vector<1x1x128x16xf32>
    %122 = vector.shape_cast %121 : vector<1x1x128x16xf32> to vector<128x16xf32>
    %c0_52 = arith.constant 0 : index
    %c1_53 = arith.constant 1 : index
    %c0_54 = arith.constant 0 : index
    %c0_55 = arith.constant 0 : index
    %123 = vector.load %arg3[%c0_52, %c1_53, %c0_54, %c0_55] : memref<1x2x128x16xf32, #tpu.memory_space<vmem>>, vector<1x1x128x16xf32>
    %124 = vector.shape_cast %123 : vector<1x1x128x16xf32> to vector<128x16xf32>
    %c0_56 = arith.constant 0 : index
    %c1_57 = arith.constant 1 : index
    %c0_58 = arith.constant 0 : index
    %c0_59 = arith.constant 0 : index
    %125 = vector.load %arg4[%c0_56, %c1_57, %c0_58, %c0_59] : memref<1x2x128x16xf32, #tpu.memory_space<vmem>>, vector<1x1x128x16xf32>
    %126 = vector.shape_cast %125 : vector<1x1x128x16xf32> to vector<128x16xf32>
    %127 = vector.broadcast %34 : f32 to vector<128x16xf32>
    %128 = arith.mulf %126, %127 : vector<128x16xf32>
    %cst_60 = arith.constant 1.000000e+00 : f32
    %129 = arith.subf %34, %cst_60 : f32
    %130 = vector.broadcast %129 : f32 to vector<128x16xf32>
    %131 = arith.addf %128, %130 : vector<128x16xf32>
    %132 = tpu.concatenate %131, %124 in 0 : vector<128x16xf32>, vector<128x16xf32> -> vector<256x16xf32>
    %cst_61 = arith.constant dense<0.000000e+00> : vector<256xf32>
    %133 = vector.multi_reduction <add>, %132, %cst_61 [1] : vector<256x16xf32> to vector<256xf32>
    %134 = vector.shape_cast %133 : vector<256xf32> to vector<256x1xf32>
    %cst_62 = arith.constant 1.600000e+01 : f32
    %135 = vector.broadcast %cst_62 : f32 to vector<256x1xf32>
    %136 = arith.divf %134, %135 : vector<256x1xf32>
    %137 = vector.broadcast %136 : vector<256x1xf32> to vector<256x16xf32>
    %138 = arith.subf %132, %137 : vector<256x16xf32>
    %139 = arith.mulf %138, %138 : vector<256x16xf32>
    %cst_63 = arith.constant dense<0.000000e+00> : vector<256xf32>
    %140 = vector.multi_reduction <add>, %139, %cst_63 [1] : vector<256x16xf32> to vector<256xf32>
    %141 = vector.shape_cast %140 : vector<256xf32> to vector<256x1xf32>
    %cst_64 = arith.constant 1.600000e+01 : f32
    %142 = vector.broadcast %cst_64 : f32 to vector<256x1xf32>
    %143 = arith.divf %141, %142 : vector<256x1xf32>
    %cst_65 = arith.constant 9.99999974E-6 : f32
    %144 = vector.broadcast %cst_65 : f32 to vector<256x1xf32>
    %145 = arith.addf %143, %144 : vector<256x1xf32>
    %146 = math.rsqrt %145 : vector<256x1xf32>
    %147 = vector.broadcast %146 : vector<256x1xf32> to vector<256x16xf32>
    %148 = arith.mulf %138, %147 : vector<256x16xf32>
    %149 = vector.broadcast %29 : vector<1x16xf32> to vector<256x16xf32>
    %150 = arith.mulf %148, %149 : vector<256x16xf32>
    %151 = vector.broadcast %30 : vector<1x16xf32> to vector<256x16xf32>
    %152 = arith.addf %150, %151 : vector<256x16xf32>
    %c0_66 = arith.constant 0 : index
    %c1_67 = arith.constant 1 : index
    %c0_68 = arith.constant 0 : index
    %c0_69 = arith.constant 0 : index
    %153 = vector.load %arg5[%c0_66, %c1_67, %c0_68, %c0_69] : memref<1x2x8x16xf32, #tpu.memory_space<vmem>>, vector<1x1x8x16xf32>
    %154 = vector.shape_cast %153 : vector<1x1x8x16xf32> to vector<8x16xf32>
    %cst_70 = arith.constant dense<0.000000e+00> : vector<8xf32>
    %155 = vector.multi_reduction <add>, %154, %cst_70 [1] : vector<8x16xf32> to vector<8xf32>
    %156 = vector.shape_cast %155 : vector<8xf32> to vector<8x1xf32>
    %cst_71 = arith.constant 1.600000e+01 : f32
    %157 = vector.broadcast %cst_71 : f32 to vector<8x1xf32>
    %158 = arith.divf %156, %157 : vector<8x1xf32>
    %159 = vector.broadcast %158 : vector<8x1xf32> to vector<8x16xf32>
    %160 = arith.subf %154, %159 : vector<8x16xf32>
    %161 = arith.mulf %160, %160 : vector<8x16xf32>
    %cst_72 = arith.constant dense<0.000000e+00> : vector<8xf32>
    %162 = vector.multi_reduction <add>, %161, %cst_72 [1] : vector<8x16xf32> to vector<8xf32>
    %163 = vector.shape_cast %162 : vector<8xf32> to vector<8x1xf32>
    %cst_73 = arith.constant 1.600000e+01 : f32
    %164 = vector.broadcast %cst_73 : f32 to vector<8x1xf32>
    %165 = arith.divf %163, %164 : vector<8x1xf32>
    %cst_74 = arith.constant 9.99999974E-6 : f32
    %166 = vector.broadcast %cst_74 : f32 to vector<8x1xf32>
    %167 = arith.addf %165, %166 : vector<8x1xf32>
    %168 = math.rsqrt %167 : vector<8x1xf32>
    %169 = vector.broadcast %168 : vector<8x1xf32> to vector<8x16xf32>
    %170 = arith.mulf %160, %169 : vector<8x16xf32>
    %171 = vector.broadcast %31 : vector<1x16xf32> to vector<8x16xf32>
    %172 = arith.mulf %170, %171 : vector<8x16xf32>
    %173 = vector.broadcast %32 : vector<1x16xf32> to vector<8x16xf32>
    %174 = arith.addf %172, %173 : vector<8x16xf32>
    %175 = arith.truncf %122 : vector<128x16xf32> to vector<128x16xbf16>
    %176 = arith.truncf %152 : vector<256x16xf32> to vector<256x16xbf16>
    %177 = arith.truncf %174 : vector<8x16xf32> to vector<8x16xbf16>
    %cst_75 = arith.constant dense<0.000000e+00> : vector<128x256xf32>
    %178 = tpu.matmul %175, %176, %cst_75 {dimension_numbers = #tpu.dot_dimension_numbers<[1], [1], [0], [0], [0, 0, 1, 0], [], []>} : vector<128x16xbf16>, vector<256x16xbf16>, vector<128x256xf32> -> vector<128x256xf32>
    %cst_76 = arith.constant dense<0.000000e+00> : vector<128x8xf32>
    %179 = tpu.matmul %175, %177, %cst_76 {dimension_numbers = #tpu.dot_dimension_numbers<[1], [1], [0], [0], [0, 0, 1, 0], [], []>} : vector<128x16xbf16>, vector<8x16xbf16>, vector<128x8xf32> -> vector<128x8xf32>
    %cst_77 = arith.constant -3.40282347E+38 : f32
    %180 = vector.broadcast %cst_77 : f32 to vector<128x256xf32>
    %181 = arith.select %16, %178, %180 : vector<128x256xi1>, vector<128x256xf32>
    %cst_78 = arith.constant -3.40282347E+38 : f32
    %182 = vector.broadcast %cst_78 : f32 to vector<128x8xf32>
    %183 = arith.select %28, %179, %182 : vector<128x8xi1>, vector<128x8xf32>
    %cst_79 = arith.constant dense<0xFF800000> : vector<128xf32>
    %184 = vector.multi_reduction <maximumf>, %181, %cst_79 [1] : vector<128x256xf32> to vector<128xf32>
    %185 = vector.shape_cast %184 : vector<128xf32> to vector<128x1xf32>
    %cst_80 = arith.constant dense<0xFF800000> : vector<128xf32>
    %186 = vector.multi_reduction <maximumf>, %183, %cst_80 [1] : vector<128x8xf32> to vector<128xf32>
    %187 = vector.shape_cast %186 : vector<128xf32> to vector<128x1xf32>
    %188 = arith.maximumf %185, %187 : vector<128x1xf32>
    %189 = vector.broadcast %188 : vector<128x1xf32> to vector<128x256xf32>
    %190 = arith.subf %181, %189 : vector<128x256xf32>
    %191 = math.exp %190 : vector<128x256xf32>
    %192 = vector.broadcast %188 : vector<128x1xf32> to vector<128x8xf32>
    %193 = arith.subf %183, %192 : vector<128x8xf32>
    %194 = math.exp %193 : vector<128x8xf32>
    %cst_81 = arith.constant dense<0.000000e+00> : vector<128xf32>
    %195 = vector.multi_reduction <add>, %191, %cst_81 [1] : vector<128x256xf32> to vector<128xf32>
    %196 = vector.shape_cast %195 : vector<128xf32> to vector<128x1xf32>
    %cst_82 = arith.constant dense<0.000000e+00> : vector<128xf32>
    %197 = vector.multi_reduction <add>, %194, %cst_82 [1] : vector<128x8xf32> to vector<128xf32>
    %198 = vector.shape_cast %197 : vector<128xf32> to vector<128x1xf32>
    %199 = arith.addf %196, %198 : vector<128x1xf32>
    %200 = arith.truncf %194 : vector<128x8xf32> to vector<128x8xbf16>
    %cst_83 = arith.constant dense<0.000000e+00> : vector<128x16xf32>
    %201 = tpu.matmul %200, %177, %cst_83 {dimension_numbers = #tpu.dot_dimension_numbers<[1], [0], [0], [1], [0, 0, 1, 1], [], []>} : vector<128x8xbf16>, vector<8x16xbf16>, vector<128x16xf32> -> vector<128x16xf32>
    %202 = arith.truncf %191 : vector<128x256xf32> to vector<128x256xbf16>
    %cst_84 = arith.constant dense<0.000000e+00> : vector<128x16xf32>
    %203 = tpu.matmul %202, %176, %cst_84 {dimension_numbers = #tpu.dot_dimension_numbers<[1], [0], [0], [1], [0, 0, 1, 1], [], []>} : vector<128x256xbf16>, vector<256x16xbf16>, vector<128x16xf32> -> vector<128x16xf32>
    %204 = arith.addf %201, %203 : vector<128x16xf32>
    %205 = vector.broadcast %199 : vector<128x1xf32> to vector<128x16xf32>
    %206 = arith.divf %204, %205 : vector<128x16xf32>
    %207 = tpu.concatenate %120, %206 in 1 : vector<128x16xf32>, vector<128x16xf32> -> vector<128x32xf32>
    %c0_85 = arith.constant 0 : index
    %c0_86 = arith.constant 0 : index
    %c0_87 = arith.constant 0 : index
    %c0_88 = arith.constant 0 : index
    %208 = vector.load %arg8[%c0_85, %c0_86, %c0_87, %c0_88] : memref<1x1x128x32xf32, #tpu.memory_space<vmem>>, vector<1x1x128x32xf32>
    %209 = vector.shape_cast %208 : vector<1x1x128x32xf32> to vector<128x32xf32>
    %210 = vector.shape_cast %207 : vector<128x32xf32> to vector<1x1x128x32xf32>
    tpu.vector_store %arg8[%c0_85, %c0_86, %c0_87, %c0_88], %210 {strides = array<i32>} : memref<1x1x128x32xf32, #tpu.memory_space<vmem>>, vector<1x1x128x32xf32>,
    return
  }
  func.func @transform_0(%arg0: i32, %arg1: i32) -> (i32, i32, i32, i32) {
    %c0_i32 = arith.constant 0 : i32
    %c0_i32_0 = arith.constant 0 : i32
    %c0_i32_1 = arith.constant 0 : i32
    return %arg0, %c0_i32, %arg1, %c0_i32_0 : i32, i32, i32, i32
  }
  func.func @transform_1(%arg0: i32, %arg1: i32) -> (i32, i32, i32, i32) {
    %c0_i32 = arith.constant 0 : i32
    %c0_i32_0 = arith.constant 0 : i32
    %c0_i32_1 = arith.constant 0 : i32
    return %arg0, %c0_i32, %arg1, %c0_i32_0 : i32, i32, i32, i32
  }
  func.func @transform_2(%arg0: i32, %arg1: i32) -> (i32, i32, i32, i32) {
    %c1_i32 = arith.constant 1 : i32
    %0 = arith.subi %arg1, %c1_i32 : i32
    %c0_i32 = arith.constant 0 : i32
    %1 = arith.maxsi %0, %c0_i32 : i32
    %c0_i32_0 = arith.constant 0 : i32
    %c0_i32_1 = arith.constant 0 : i32
    %c0_i32_2 = arith.constant 0 : i32
    return %arg0, %c0_i32_0, %1, %c0_i32_1 : i32, i32, i32, i32
  }
  func.func @transform_3(%arg0: i32, %arg1: i32) -> (i32, i32, i32, i32) {
    %c0_i32 = arith.constant 0 : i32
    %c0_i32_0 = arith.constant 0 : i32
    %c0_i32_1 = arith.constant 0 : i32
    %c0_i32_2 = arith.constant 0 : i32
    return %arg0, %c0_i32, %c0_i32_0, %c0_i32_1 : i32, i32, i32, i32
  }
  func.func @transform_4(%arg0: i32, %arg1: i32) -> (i32, i32, i32, i32) {
    %c0_i32 = arith.constant 0 : i32
    %c0_i32_0 = arith.constant 0 : i32
    %c0_i32_1 = arith.constant 0 : i32
    return %arg0, %arg1, %c0_i32, %c0_i32_0 : i32, i32, i32, i32
  }
  func.func @transform_5(%arg0: i32, %arg1: i32) -> (i32, i32) {
    %c0_i32 = arith.constant 0 : i32
    %c0_i32_0 = arith.constant 0 : i32
    %c0_i32_1 = arith.constant 0 : i32
    return %c0_i32, %c0_i32_0 : i32, i32
  }
  func.func @transform_6(%arg0: i32, %arg1: i32) -> (i32, i32, i32, i32) {
    %c0_i32 = arith.constant 0 : i32
    %c0_i32_0 = arith.constant 0 : i32
    %c0_i32_1 = arith.constant 0 : i32
    return %arg0, %arg1, %c0_i32, %c0_i32_0 : i32, i32, i32, i32
  }
}

module attributes {stable_mosaic.version = 11 : i64} {
  func.func @_mm_kernel(%arg0: i32, %arg1: i32, %arg2: i32, %arg3: memref<16x32xbf16, #tpu.memory_space<vmem>>, %arg4: memref<32x32xbf16, #tpu.memory_space<vmem>>, %arg5: memref<1x32xf32, #tpu.memory_space<vmem>>, %arg6: memref<16x32xf32, #tpu.memory_space<vmem>>, %arg7: memref<16x32xf32, #tpu.memory_space<vmem>>, %arg8: memref<16x32xf32, #tpu.memory_space<vmem>>) attributes {dimension_semantics = [#tpu.dimension_semantics<parallel>, #tpu.dimension_semantics<parallel>, #tpu.dimension_semantics<arbitrary>], iteration_bounds = array<i64: 1, 1, 1>, scalar_prefetch = 0 : i64, scratch_operands = 1 : i64, tpu.core_type = #tpu.core_type<tc>, window_params = [{transform_indices = @transform_0, window_bounds = array<i64: 16, 32>}, {transform_indices = @transform_1, window_bounds = array<i64: 32, 32>}, {transform_indices = @transform_2, window_bounds = array<i64: 1, 32>}, {transform_indices = @transform_3, window_bounds = array<i64: 16, 32>}, {transform_indices = @transform_4, window_bounds = array<i64: 16, 32>}]} {
    %c0_i32 = arith.constant 0 : i32
    %0 = arith.cmpi eq, %arg2, %c0_i32 : i32
    %1 = arith.extui %0 : i1 to i32
    %c0_i32_0 = arith.constant 0 : i32
    %2 = arith.cmpi ne, %1, %c0_i32_0 : i32
    scf.if %2 {
      %cst_10 = arith.constant 0.000000e+00 : f32
      %12 = vector.broadcast %cst_10 : f32 to vector<16x32xf32>
      %c0_11 = arith.constant 0 : index
      %c0_12 = arith.constant 0 : index
      %13 = vector.load %arg8[%c0_11, %c0_12] : memref<16x32xf32, #tpu.memory_space<vmem>>, vector<16x32xf32>
      tpu.vector_store %arg8[%c0_11, %c0_12], %12 {strides = array<i32>} : memref<16x32xf32, #tpu.memory_space<vmem>>, vector<16x32xf32>,
    } else {
    }
    %c0 = arith.constant 0 : index
    %c0_1 = arith.constant 0 : index
    %3 = vector.load %arg8[%c0, %c0_1] : memref<16x32xf32, #tpu.memory_space<vmem>>, vector<16x32xf32>
    %c0_2 = arith.constant 0 : index
    %c0_3 = arith.constant 0 : index
    %4 = vector.load %arg3[%c0_2, %c0_3] : memref<16x32xbf16, #tpu.memory_space<vmem>>, vector<16x32xbf16>
    %c0_4 = arith.constant 0 : index
    %c0_5 = arith.constant 0 : index
    %5 = vector.load %arg4[%c0_4, %c0_5] : memref<32x32xbf16, #tpu.memory_space<vmem>>, vector<32x32xbf16>
    %cst = arith.constant dense<0.000000e+00> : vector<16x32xf32>
    %6 = tpu.matmul %4, %5, %cst {dimension_numbers = #tpu.dot_dimension_numbers<[1], [0], [0], [1], [0, 0, 1, 1], [], []>} : vector<16x32xbf16>, vector<32x32xbf16>, vector<16x32xf32> -> vector<16x32xf32>
    %7 = arith.addf %3, %6 : vector<16x32xf32>
    %c0_6 = arith.constant 0 : index
    %c0_7 = arith.constant 0 : index
    %8 = vector.load %arg8[%c0_6, %c0_7] : memref<16x32xf32, #tpu.memory_space<vmem>>, vector<16x32xf32>
    tpu.vector_store %arg8[%c0_6, %c0_7], %7 {strides = array<i32>} : memref<16x32xf32, #tpu.memory_space<vmem>>, vector<16x32xf32>,
    %c0_i32_8 = arith.constant 0 : i32
    %9 = arith.cmpi eq, %arg2, %c0_i32_8 : i32
    %10 = arith.extui %9 : i1 to i32
    %c0_i32_9 = arith.constant 0 : i32
    %11 = arith.cmpi ne, %10, %c0_i32_9 : i32
    scf.if %11 {
      %c0_10 = arith.constant 0 : index
      %c0_11 = arith.constant 0 : index
      %12 = vector.load %arg8[%c0_10, %c0_11] : memref<16x32xf32, #tpu.memory_space<vmem>>, vector<16x32xf32>
      %c0_12 = arith.constant 0 : index
      %c0_13 = arith.constant 0 : index
      %13 = vector.load %arg5[%c0_12, %c0_13] : memref<1x32xf32, #tpu.memory_space<vmem>>, vector<1x32xf32>
      %14 = vector.broadcast %13 : vector<1x32xf32> to vector<16x32xf32>
      %15 = arith.addf %12, %14 : vector<16x32xf32>
      %c0_14 = arith.constant 0 : index
      %c0_15 = arith.constant 0 : index
      %16 = vector.load %arg6[%c0_14, %c0_15] : memref<16x32xf32, #tpu.memory_space<vmem>>, vector<16x32xf32>
      %17 = arith.addf %15, %16 : vector<16x32xf32>
      %c0_16 = arith.constant 0 : index
      %c0_17 = arith.constant 0 : index
      %18 = vector.load %arg7[%c0_16, %c0_17] : memref<16x32xf32, #tpu.memory_space<vmem>>, vector<16x32xf32>
      tpu.vector_store %arg7[%c0_16, %c0_17], %17 {strides = array<i32>} : memref<16x32xf32, #tpu.memory_space<vmem>>, vector<16x32xf32>,
    } else {
    }
    return
  }
  func.func @transform_0(%arg0: i32, %arg1: i32, %arg2: i32) -> (i32, i32) {
    %c0_i32 = arith.constant 0 : i32
    return %arg0, %arg2 : i32, i32
  }
  func.func @transform_1(%arg0: i32, %arg1: i32, %arg2: i32) -> (i32, i32) {
    %c0_i32 = arith.constant 0 : i32
    return %arg2, %arg1 : i32, i32
  }
  func.func @transform_2(%arg0: i32, %arg1: i32, %arg2: i32) -> (i32, i32) {
    %c0_i32 = arith.constant 0 : i32
    %c0_i32_0 = arith.constant 0 : i32
    return %c0_i32, %arg1 : i32, i32
  }
  func.func @transform_3(%arg0: i32, %arg1: i32, %arg2: i32) -> (i32, i32) {
    %c0_i32 = arith.constant 0 : i32
    return %arg0, %arg1 : i32, i32
  }
  func.func @transform_4(%arg0: i32, %arg1: i32, %arg2: i32) -> (i32, i32) {
    %c0_i32 = arith.constant 0 : i32
    return %arg0, %arg1 : i32, i32
  }
}

module attributes {stable_mosaic.version = 11 : i64} {
  func.func @_mm_kernel(%arg0: i32, %arg1: i32, %arg2: i32, %arg3: memref<16x64xbf16, #tpu.memory_space<vmem>>, %arg4: memref<64x32xbf16, #tpu.memory_space<vmem>>, %arg5: memref<1x32xf32, #tpu.memory_space<vmem>>, %arg6: memref<16x32xf32, #tpu.memory_space<vmem>>, %arg7: memref<16x32xf32, #tpu.memory_space<vmem>>, %arg8: memref<16x32xf32, #tpu.memory_space<vmem>>) attributes {dimension_semantics = [#tpu.dimension_semantics<parallel>, #tpu.dimension_semantics<parallel>, #tpu.dimension_semantics<arbitrary>], iteration_bounds = array<i64: 1, 1, 1>, scalar_prefetch = 0 : i64, scratch_operands = 1 : i64, tpu.core_type = #tpu.core_type<tc>, window_params = [{transform_indices = @transform_0, window_bounds = array<i64: 16, 64>}, {transform_indices = @transform_1, window_bounds = array<i64: 64, 32>}, {transform_indices = @transform_2, window_bounds = array<i64: 1, 32>}, {transform_indices = @transform_3, window_bounds = array<i64: 16, 32>}, {transform_indices = @transform_4, window_bounds = array<i64: 16, 32>}]} {
    %c0_i32 = arith.constant 0 : i32
    %0 = arith.cmpi eq, %arg2, %c0_i32 : i32
    %1 = arith.extui %0 : i1 to i32
    %c0_i32_0 = arith.constant 0 : i32
    %2 = arith.cmpi ne, %1, %c0_i32_0 : i32
    scf.if %2 {
      %cst_10 = arith.constant 0.000000e+00 : f32
      %12 = vector.broadcast %cst_10 : f32 to vector<16x32xf32>
      %c0_11 = arith.constant 0 : index
      %c0_12 = arith.constant 0 : index
      %13 = vector.load %arg8[%c0_11, %c0_12] : memref<16x32xf32, #tpu.memory_space<vmem>>, vector<16x32xf32>
      tpu.vector_store %arg8[%c0_11, %c0_12], %12 {strides = array<i32>} : memref<16x32xf32, #tpu.memory_space<vmem>>, vector<16x32xf32>,
    } else {
    }
    %c0 = arith.constant 0 : index
    %c0_1 = arith.constant 0 : index
    %3 = vector.load %arg8[%c0, %c0_1] : memref<16x32xf32, #tpu.memory_space<vmem>>, vector<16x32xf32>
    %c0_2 = arith.constant 0 : index
    %c0_3 = arith.constant 0 : index
    %4 = vector.load %arg3[%c0_2, %c0_3] : memref<16x64xbf16, #tpu.memory_space<vmem>>, vector<16x64xbf16>
    %c0_4 = arith.constant 0 : index
    %c0_5 = arith.constant 0 : index
    %5 = vector.load %arg4[%c0_4, %c0_5] : memref<64x32xbf16, #tpu.memory_space<vmem>>, vector<64x32xbf16>
    %cst = arith.constant dense<0.000000e+00> : vector<16x32xf32>
    %6 = tpu.matmul %4, %5, %cst {dimension_numbers = #tpu.dot_dimension_numbers<[1], [0], [0], [1], [0, 0, 1, 1], [], []>} : vector<16x64xbf16>, vector<64x32xbf16>, vector<16x32xf32> -> vector<16x32xf32>
    %7 = arith.addf %3, %6 : vector<16x32xf32>
    %c0_6 = arith.constant 0 : index
    %c0_7 = arith.constant 0 : index
    %8 = vector.load %arg8[%c0_6, %c0_7] : memref<16x32xf32, #tpu.memory_space<vmem>>, vector<16x32xf32>
    tpu.vector_store %arg8[%c0_6, %c0_7], %7 {strides = array<i32>} : memref<16x32xf32, #tpu.memory_space<vmem>>, vector<16x32xf32>,
    %c0_i32_8 = arith.constant 0 : i32
    %9 = arith.cmpi eq, %arg2, %c0_i32_8 : i32
    %10 = arith.extui %9 : i1 to i32
    %c0_i32_9 = arith.constant 0 : i32
    %11 = arith.cmpi ne, %10, %c0_i32_9 : i32
    scf.if %11 {
      %c0_10 = arith.constant 0 : index
      %c0_11 = arith.constant 0 : index
      %12 = vector.load %arg8[%c0_10, %c0_11] : memref<16x32xf32, #tpu.memory_space<vmem>>, vector<16x32xf32>
      %c0_12 = arith.constant 0 : index
      %c0_13 = arith.constant 0 : index
      %13 = vector.load %arg5[%c0_12, %c0_13] : memref<1x32xf32, #tpu.memory_space<vmem>>, vector<1x32xf32>
      %14 = vector.broadcast %13 : vector<1x32xf32> to vector<16x32xf32>
      %15 = arith.addf %12, %14 : vector<16x32xf32>
      %c0_14 = arith.constant 0 : index
      %c0_15 = arith.constant 0 : index
      %16 = vector.load %arg6[%c0_14, %c0_15] : memref<16x32xf32, #tpu.memory_space<vmem>>, vector<16x32xf32>
      %17 = arith.addf %15, %16 : vector<16x32xf32>
      %c0_16 = arith.constant 0 : index
      %c0_17 = arith.constant 0 : index
      %18 = vector.load %arg7[%c0_16, %c0_17] : memref<16x32xf32, #tpu.memory_space<vmem>>, vector<16x32xf32>
      tpu.vector_store %arg7[%c0_16, %c0_17], %17 {strides = array<i32>} : memref<16x32xf32, #tpu.memory_space<vmem>>, vector<16x32xf32>,
    } else {
    }
    return
  }
  func.func @transform_0(%arg0: i32, %arg1: i32, %arg2: i32) -> (i32, i32) {
    %c0_i32 = arith.constant 0 : i32
    return %arg0, %arg2 : i32, i32
  }
  func.func @transform_1(%arg0: i32, %arg1: i32, %arg2: i32) -> (i32, i32) {
    %c0_i32 = arith.constant 0 : i32
    return %arg2, %arg1 : i32, i32
  }
  func.func @transform_2(%arg0: i32, %arg1: i32, %arg2: i32) -> (i32, i32) {
    %c0_i32 = arith.constant 0 : i32
    %c0_i32_0 = arith.constant 0 : i32
    return %c0_i32, %arg1 : i32, i32
  }
  func.func @transform_3(%arg0: i32, %arg1: i32, %arg2: i32) -> (i32, i32) {
    %c0_i32 = arith.constant 0 : i32
    return %arg0, %arg1 : i32, i32
  }
  func.func @transform_4(%arg0: i32, %arg1: i32, %arg2: i32) -> (i32, i32) {
    %c0_i32 = arith.constant 0 : i32
    return %arg0, %arg1 : i32, i32
  }
}

module attributes {stable_mosaic.version = 11 : i64} {
  func.func @_mm_kernel(%arg0: i32, %arg1: i32, %arg2: i32, %arg3: memref<16x96xbf16, #tpu.memory_space<vmem>>, %arg4: memref<96x64xbf16, #tpu.memory_space<vmem>>, %arg5: memref<1x64xf32, #tpu.memory_space<vmem>>, %arg6: memref<16x64xbf16, #tpu.memory_space<vmem>>, %arg7: memref<16x64xf32, #tpu.memory_space<vmem>>) attributes {dimension_semantics = [#tpu.dimension_semantics<parallel>, #tpu.dimension_semantics<parallel>, #tpu.dimension_semantics<arbitrary>], iteration_bounds = array<i64: 1, 1, 1>, scalar_prefetch = 0 : i64, scratch_operands = 1 : i64, tpu.core_type = #tpu.core_type<tc>, window_params = [{transform_indices = @transform_0, window_bounds = array<i64: 16, 96>}, {transform_indices = @transform_1, window_bounds = array<i64: 96, 64>}, {transform_indices = @transform_2, window_bounds = array<i64: 1, 64>}, {transform_indices = @transform_3, window_bounds = array<i64: 16, 64>}]} {
    %c0_i32 = arith.constant 0 : i32
    %0 = arith.cmpi eq, %arg2, %c0_i32 : i32
    %1 = arith.extui %0 : i1 to i32
    %c0_i32_0 = arith.constant 0 : i32
    %2 = arith.cmpi ne, %1, %c0_i32_0 : i32
    scf.if %2 {
      %cst_10 = arith.constant 0.000000e+00 : f32
      %12 = vector.broadcast %cst_10 : f32 to vector<16x64xf32>
      %c0_11 = arith.constant 0 : index
      %c0_12 = arith.constant 0 : index
      %13 = vector.load %arg7[%c0_11, %c0_12] : memref<16x64xf32, #tpu.memory_space<vmem>>, vector<16x64xf32>
      tpu.vector_store %arg7[%c0_11, %c0_12], %12 {strides = array<i32>} : memref<16x64xf32, #tpu.memory_space<vmem>>, vector<16x64xf32>,
    } else {
    }
    %c0 = arith.constant 0 : index
    %c0_1 = arith.constant 0 : index
    %3 = vector.load %arg7[%c0, %c0_1] : memref<16x64xf32, #tpu.memory_space<vmem>>, vector<16x64xf32>
    %c0_2 = arith.constant 0 : index
    %c0_3 = arith.constant 0 : index
    %4 = vector.load %arg3[%c0_2, %c0_3] : memref<16x96xbf16, #tpu.memory_space<vmem>>, vector<16x96xbf16>
    %c0_4 = arith.constant 0 : index
    %c0_5 = arith.constant 0 : index
    %5 = vector.load %arg4[%c0_4, %c0_5] : memref<96x64xbf16, #tpu.memory_space<vmem>>, vector<96x64xbf16>
    %cst = arith.constant dense<0.000000e+00> : vector<16x64xf32>
    %6 = tpu.matmul %4, %5, %cst {dimension_numbers = #tpu.dot_dimension_numbers<[1], [0], [0], [1], [0, 0, 1, 1], [], []>} : vector<16x96xbf16>, vector<96x64xbf16>, vector<16x64xf32> -> vector<16x64xf32>
    %7 = arith.addf %3, %6 : vector<16x64xf32>
    %c0_6 = arith.constant 0 : index
    %c0_7 = arith.constant 0 : index
    %8 = vector.load %arg7[%c0_6, %c0_7] : memref<16x64xf32, #tpu.memory_space<vmem>>, vector<16x64xf32>
    tpu.vector_store %arg7[%c0_6, %c0_7], %7 {strides = array<i32>} : memref<16x64xf32, #tpu.memory_space<vmem>>, vector<16x64xf32>,
    %c0_i32_8 = arith.constant 0 : i32
    %9 = arith.cmpi eq, %arg2, %c0_i32_8 : i32
    %10 = arith.extui %9 : i1 to i32
    %c0_i32_9 = arith.constant 0 : i32
    %11 = arith.cmpi ne, %10, %c0_i32_9 : i32
    scf.if %11 {
      %c0_10 = arith.constant 0 : index
      %c0_11 = arith.constant 0 : index
      %12 = vector.load %arg7[%c0_10, %c0_11] : memref<16x64xf32, #tpu.memory_space<vmem>>, vector<16x64xf32>
      %c0_12 = arith.constant 0 : index
      %c0_13 = arith.constant 0 : index
      %13 = vector.load %arg5[%c0_12, %c0_13] : memref<1x64xf32, #tpu.memory_space<vmem>>, vector<1x64xf32>
      %14 = vector.broadcast %13 : vector<1x64xf32> to vector<16x64xf32>
      %15 = arith.addf %12, %14 : vector<16x64xf32>
      %cst_14 = arith.constant 5.000000e-01 : f32
      %16 = vector.broadcast %cst_14 : f32 to vector<16x64xf32>
      %17 = arith.mulf %15, %16 : vector<16x64xf32>
      %cst_15 = arith.constant 0.707106769 : f32
      %18 = vector.broadcast %cst_15 : f32 to vector<16x64xf32>
      %19 = arith.mulf %15, %18 : vector<16x64xf32>
      %cst_16 = arith.constant 0.000000e+00 : f32
      %20 = vector.broadcast %cst_16 : f32 to vector<16x64xf32>
      %21 = arith.cmpf oge, %19, %20 : vector<16x64xf32>
      %cst_17 = arith.constant 1.000000e+00 : f32
      %cst_18 = arith.constant -1.000000e+00 : f32
      %22 = vector.broadcast %cst_17 : f32 to vector<16x64xf32>
      %23 = vector.broadcast %cst_18 : f32 to vector<16x64xf32>
      %24 = arith.select %21, %22, %23 : vector<16x64xi1>, vector<16x64xf32>
      %25 = math.absf %19 : vector<16x64xf32>
      %cst_19 = arith.constant 0.327591091 : f32
      %26 = vector.broadcast %cst_19 : f32 to vector<16x64xf32>
      %27 = arith.mulf %26, %25 : vector<16x64xf32>
      %cst_20 = arith.constant 1.000000e+00 : f32
      %28 = vector.broadcast %cst_20 : f32 to vector<16x64xf32>
      %29 = arith.addf %28, %27 : vector<16x64xf32>
      %cst_21 = arith.constant 1.000000e+00 : f32
      %30 = vector.broadcast %cst_21 : f32 to vector<16x64xf32>
      %31 = arith.divf %30, %29 : vector<16x64xf32>
      %cst_22 = arith.constant 1.06140542 : f32
      %32 = vector.broadcast %cst_22 : f32 to vector<16x64xf32>
      %33 = arith.mulf %32, %31 : vector<16x64xf32>
      %cst_23 = arith.constant -1.45315206 : f32
      %34 = vector.broadcast %cst_23 : f32 to vector<16x64xf32>
      %35 = arith.addf %33, %34 : vector<16x64xf32>
      %36 = arith.mulf %35, %31 : vector<16x64xf32>
      %cst_24 = arith.constant 1.42141378 : f32
      %37 = vector.broadcast %cst_24 : f32 to vector<16x64xf32>
      %38 = arith.addf %36, %37 : vector<16x64xf32>
      %39 = arith.mulf %38, %31 : vector<16x64xf32>
      %cst_25 = arith.constant -0.284496725 : f32
      %40 = vector.broadcast %cst_25 : f32 to vector<16x64xf32>
      %41 = arith.addf %39, %40 : vector<16x64xf32>
      %42 = arith.mulf %41, %31 : vector<16x64xf32>
      %cst_26 = arith.constant 0.254829586 : f32
      %43 = vector.broadcast %cst_26 : f32 to vector<16x64xf32>
      %44 = arith.addf %42, %43 : vector<16x64xf32>
      %45 = arith.mulf %44, %31 : vector<16x64xf32>
      %cst_27 = arith.constant 0.000000e+00 : f32
      %46 = vector.broadcast %cst_27 : f32 to vector<16x64xf32>
      %47 = arith.subf %46, %25 : vector<16x64xf32>
      %48 = arith.mulf %47, %25 : vector<16x64xf32>
      %49 = math.exp %48 : vector<16x64xf32>
      %50 = arith.mulf %45, %49 : vector<16x64xf32>
      %cst_28 = arith.constant 1.000000e+00 : f32
      %51 = vector.broadcast %cst_28 : f32 to vector<16x64xf32>
      %52 = arith.subf %51, %50 : vector<16x64xf32>
      %53 = arith.mulf %24, %52 : vector<16x64xf32>
      %cst_29 = arith.constant 1.000000e+00 : f32
      %54 = vector.broadcast %cst_29 : f32 to vector<16x64xf32>
      %55 = arith.addf %54, %53 : vector<16x64xf32>
      %56 = arith.mulf %17, %55 : vector<16x64xf32>
      %57 = arith.truncf %56 : vector<16x64xf32> to vector<16x64xbf16>
      %c0_30 = arith.constant 0 : index
      %c0_31 = arith.constant 0 : index
      %58 = vector.load %arg6[%c0_30, %c0_31] : memref<16x64xbf16, #tpu.memory_space<vmem>>, vector<16x64xbf16>
      tpu.vector_store %arg6[%c0_30, %c0_31], %57 {strides = array<i32>} : memref<16x64xbf16, #tpu.memory_space<vmem>>, vector<16x64xbf16>,
    } else {
    }
    return
  }
  func.func @transform_0(%arg0: i32, %arg1: i32, %arg2: i32) -> (i32, i32) {
    %c0_i32 = arith.constant 0 : i32
    return %arg0, %arg2 : i32, i32
  }
  func.func @transform_1(%arg0: i32, %arg1: i32, %arg2: i32) -> (i32, i32) {
    %c0_i32 = arith.constant 0 : i32
    return %arg2, %arg1 : i32, i32
  }
  func.func @transform_2(%arg0: i32, %arg1: i32, %arg2: i32) -> (i32, i32) {
    %c0_i32 = arith.constant 0 : i32
    %c0_i32_0 = arith.constant 0 : i32
    return %c0_i32, %arg1 : i32, i32
  }
  func.func @transform_3(%arg0: i32, %arg1: i32, %arg2: i32) -> (i32, i32) {
    %c0_i32 = arith.constant 0 : i32
    return %arg0, %arg1 : i32, i32
  }
}

</mosaic_0001>

<llo_original>
// kernel: run.8
$region0: #{run.8}
  #allocation0 [shape = 'u32[]', space=smem, size = 0x4, offset = 0x4, fixed_abs, tag = 'smem constant byte address 0x4 - core index']
  #allocation1 [shape = 'u32[144,128]{1,0:T(1,128)}', space=vmem, size = 0x12000, scoped, tag = 'internal scratch']
  %s0 = inlined_call_operand.vmem [shape: f32[16,32], index: 0, kind: input, shape index: {}]
  %s1 = inlined_call_operand.vmem [shape: f32[1,32], index: 1, kind: input, shape index: {}]
  %s2 = inlined_call_operand.vmem [shape: f32[1,32], index: 2, kind: input, shape index: {}]
  %s3 = inlined_call_operand.vmem [shape: f32[16,32], index: 3, kind: output, shape index: {}]
  %s4 = sld [smem:[#allocation0]]
  $region22: #{run.8} parent=0
    _
  %s6 = ssub.s32 1, %s4
  %s7 = scalar_select 0, %s6, %s4
  // Predicated region
  $region2: #{run.8} parent=0 // pred_check
    _
  $region3: #{run.8} parent=0 // pred_check_branch
    %9 = sbr.rel (0) target = $region5
  $region4: #{run.8} parent=0 // pred_region
    _
  $region5: #{run.8} parent=0 // pred_fallthru
    _
  // Predicated region
  $region6: #{run.8} parent=0 // pred_check
    _
  $region7: #{run.8} parent=0 // pred_check_branch
    %11 = sbr.rel (0) target = $region9
  $region8: #{run.8} parent=0 // pred_region
    _
  $region9: #{run.8} parent=0 // pred_fallthru
    _
  // Predicated region
  $region10: #{run.8} parent=0 // pred_check
    _
  $region11: #{run.8} parent=0 // pred_check_branch
    %13 = sbr.rel (0) target = $region13
  $region12: #{run.8} parent=0 // pred_region
    _
  $region13: #{run.8} parent=0 // pred_fallthru
    _
  %v14 = vld [vmem:[%s0] sm:$0xff]
  %v15 = vld [vmem:[%s0 + $0x8] sm:$0xff]
  %vm16 = vcmask 261120
  %v17 = vsel %vm16, %v14, 0.0
  %18 = vadd.xlane.f32.xlu0 %v17
  %v19 = vpop.xlane.xlu0 %18
  %v20 = vsel %vm16, %v15, 0.0
  %21 = vadd.xlane.f32.xlu0 %v20
  %v22 = vpop.xlane.xlu0 %21
  %v23 = vrcp.pop 32.0
  %v24 = vmul.f32 %v19, %v23
  %v25 = vmul.f32 %v22, %v23
  %v26 = vsub.f32 %v14, %v24
  %v27 = vsub.f32 %v15, %v25
  %v28 = vmul.f32 %v26, %v26
  %v29 = vmul.f32 %v27, %v27
  %v30 = vsel %vm16, %v28, 0.0
  %31 = vadd.xlane.f32.xlu0 %v30
  %v32 = vpop.xlane.xlu0 %31
  %v33 = vsel %vm16, %v29, 0.0
  %34 = vadd.xlane.f32.xlu0 %v33
  %v35 = vpop.xlane.xlu0 %34
  %v36 = vmul.f32 %v32, %v23
  %v37 = vmul.f32 %v35, %v23
  %v38 = vadd.f32 %v36, 1e-05
  %v39 = vadd.f32 %v37, 1e-05
  %v40 = vrsqrt.pop %v38
  %v41 = vrsqrt.pop %v39
  %v42 = vmul.f32 %v26, %v40
  %v43 = vmul.f32 %v27, %v41
  %v44 = vld [vmem:[%s1] sm:$0x1]
  %v46 = vlaneseq
  %v47 = vshrl.u32 %v46, 7
  %v48 = vsub.s32 0, %v47
  %v49 = vrot.slane %v44, %v48
  %v51 = vmul.f32 %v42, %v49
  %v52 = vmul.f32 %v43, %v49
  %v53 = vld [vmem:[%s2] sm:$0x1]
  %v55 = vlaneseq
  %v56 = vshrl.u32 %v55, 7
  %v57 = vsub.s32 0, %v56
  %v58 = vrot.slane %v53, %v57
  %v60 = vadd.f32 %v51, %v58
  %v61 = vadd.f32 %v52, %v58
  %62 = vst.msk [vmem:[%s3] sm:$0xff] %vm16, %v60
  %63 = vst.msk [vmem:[%s3 + $0x8] sm:$0xff] %vm16, %v61
  // Predicated region
  $region14: #{run.8} parent=0 // pred_check
    _
  $region15: #{run.8} parent=0 // pred_check_branch
    %65 = sbr.rel (0) target = $region17
  $region16: #{run.8} parent=0 // pred_region
    _
  $region17: #{run.8} parent=0 // pred_fallthru
    _
  // Predicated region
  $region18: #{run.8} parent=0 // pred_check
    _
  $region19: #{run.8} parent=0 // pred_check_branch
    %67 = sbr.rel (0) target = $region21
  $region20: #{run.8} parent=0 // pred_region
    _
  $region21: #{run.8} parent=0 // pred_fallthru
    _

// kernel: run.9
$region0: #{run.9}
  #allocation0 [shape = 'u32[]', space=smem, size = 0x4, offset = 0x4, fixed_abs, tag = 'smem constant byte address 0x4 - core index']
  #allocation1 [shape = 'u32[144,128]{1,0:T(1,128)}', space=vmem, size = 0x12000, scoped, tag = 'internal scratch']
  #allocation2 [shape = 'f32[256,32]{1,0:T(8,128)}', space=vmem, size = 0x20000, scoped, tag = 'scratch operand']
  %s0 = inlined_call_operand.vmem [shape: bf16[256,32], index: 0, kind: input, shape index: {}]
  %s1 = inlined_call_operand.vmem [shape: bf16[32,32], index: 1, kind: input, shape index: {}]
  %s2 = inlined_call_operand.vmem [shape: f32[256,32], index: 2, kind: output, shape index: {}]
  %s3 = sld [smem:[#allocation0]]
  $region26: #{run.9} parent=0
    _
  %s5 = ssub.s32 1, %s3
  %s6 = scalar_select 0, %s5, %s3
  // Predicated region
  $region2: #{run.9} parent=0 // pred_check
    _
  $region3: #{run.9} parent=0 // pred_check_branch
    %8 = sbr.rel (0) target = $region5
  $region4: #{run.9} parent=0 // pred_region
    _
  $region5: #{run.9} parent=0 // pred_fallthru
    _
  // Predicated region
  $region6: #{run.9} parent=0 // pred_check
    _
  $region7: #{run.9} parent=0 // pred_check_branch
    %10 = sbr.rel (0) target = $region9
  $region8: #{run.9} parent=0 // pred_region
    _
  $region9: #{run.9} parent=0 // pred_fallthru
    _
  %p12 = scmp.eq.s32.totalorder 0, 0
  // Predicated region
  $region10: #{run.9} parent=0 // pred_check
    %p13 = pneg %p12
  $region11: #{run.9} parent=0 // pred_check_branch
    %15 = sbr.rel (%p13) target = $region13
  $region12: #{run.9} parent=0 // pred_region
    %vm16 = vcmask 261120
    %17 = vst.msk [vmem:[#allocation2] sm:$0xff] %vm16, 0.0
    %18 = vst.msk [vmem:[#allocation2 + $0x8] sm:$0xff] %vm16, 0.0
    %19 = vst.msk [vmem:[#allocation2 + $0x10] sm:$0xff] %vm16, 0.0
    %20 = vst.msk [vmem:[#allocation2 + $0x18] sm:$0xff] %vm16, 0.0
    %21 = vst.msk [vmem:[#allocation2 + $0x20] sm:$0xff] %vm16, 0.0
    %22 = vst.msk [vmem:[#allocation2 + $0x28] sm:$0xff] %vm16, 0.0
    %23 = vst.msk [vmem:[#allocation2 + $0x30] sm:$0xff] %vm16, 0.0
    %24 = vst.msk [vmem:[#allocation2 + $0x38] sm:$0xff] %vm16, 0.0
    %25 = vst.msk [vmem:[#allocation2 + $0x40] sm:$0xff] %vm16, 0.0
    %26 = vst.msk [vmem:[#allocation2 + $0x48] sm:$0xff] %vm16, 0.0
    %27 = vst.msk [vmem:[#allocation2 + $0x50] sm:$0xff] %vm16, 0.0
    %28 = vst.msk [vmem:[#allocation2 + $0x58] sm:$0xff] %vm16, 0.0
    %29 = vst.msk [vmem:[#allocation2 + $0x60] sm:$0xff] %vm16, 0.0
    %30 = vst.msk [vmem:[#allocation2 + $0x68] sm:$0xff] %vm16, 0.0
    %31 = vst.msk [vmem:[#allocation2 + $0x70] sm:$0xff] %vm16, 0.0
    %32 = vst.msk [vmem:[#allocation2 + $0x78] sm:$0xff] %vm16, 0.0
    %33 = vst.msk [vmem:[#allocation2 + $0x80] sm:$0xff] %vm16, 0.0
    %34 = vst.msk [vmem:[#allocation2 + $0x88] sm:$0xff] %vm16, 0.0
    %35 = vst.msk [vmem:[#allocation2 + $0x90] sm:$0xff] %vm16, 0.0
    %36 = vst.msk [vmem:[#allocation2 + $0x98] sm:$0xff] %vm16, 0.0
    %37 = vst.msk [vmem:[#allocation2 + $0xa0] sm:$0xff] %vm16, 0.0
    %38 = vst.msk [vmem:[#allocation2 + $0xa8] sm:$0xff] %vm16, 0.0
    %39 = vst.msk [vmem:[#allocation2 + $0xb0] sm:$0xff] %vm16, 0.0
    %40 = vst.msk [vmem:[#allocation2 + $0xb8] sm:$0xff] %vm16, 0.0
    %41 = vst.msk [vmem:[#allocation2 + $0xc0] sm:$0xff] %vm16, 0.0
    %42 = vst.msk [vmem:[#allocation2 + $0xc8] sm:$0xff] %vm16, 0.0
    %43 = vst.msk [vmem:[#allocation2 + $0xd0] sm:$0xff] %vm16, 0.0
    %44 = vst.msk [vmem:[#allocation2 + $0xd8] sm:$0xff] %vm16, 0.0
    %45 = vst.msk [vmem:[#allocation2 + $0xe0] sm:$0xff] %vm16, 0.0
    %46 = vst.msk [vmem:[#allocation2 + $0xe8] sm:$0xff] %vm16, 0.0
    %47 = vst.msk [vmem:[#allocation2 + $0xf0] sm:$0xff] %vm16, 0.0
    %48 = vst.msk [vmem:[#allocation2 + $0xf8] sm:$0xff] %vm16, 0.0
  $region13: #{run.9} parent=0 // pred_fallthru
    _
  %v49 = vld [vmem:[#allocation2] sm:$0xff]
  %v50 = vld [vmem:[#allocation2 + $0x8] sm:$0xff]
  %v51 = vld [vmem:[#allocation2 + $0x10] sm:$0xff]
  %v52 = vld [vmem:[#allocation2 + $0x18] sm:$0xff]
  %v53 = vld [vmem:[#allocation2 + $0x20] sm:$0xff]
  %v54 = vld [vmem:[#allocation2 + $0x28] sm:$0xff]
  %v55 = vld [vmem:[#allocation2 + $0x30] sm:$0xff]
  %v56 = vld [vmem:[#allocation2 + $0x38] sm:$0xff]
  %v57 = vld [vmem:[#allocation2 + $0x40] sm:$0xff]
  %v58 = vld [vmem:[#allocation2 + $0x48] sm:$0xff]
  %v59 = vld [vmem:[#allocation2 + $0x50] sm:$0xff]
  %v60 = vld [vmem:[#allocation2 + $0x58] sm:$0xff]
  %v61 = vld [vmem:[#allocation2 + $0x60] sm:$0xff]
  %v62 = vld [vmem:[#allocation2 + $0x68] sm:$0xff]
  %v63 = vld [vmem:[#allocation2 + $0x70] sm:$0xff]
  %v64 = vld [vmem:[#allocation2 + $0x78] sm:$0xff]
  %v65 = vld [vmem:[#allocation2 + $0x80] sm:$0xff]
  %v66 = vld [vmem:[#allocation2 + $0x88] sm:$0xff]
  %v67 = vld [vmem:[#allocation2 + $0x90] sm:$0xff]
  %v68 = vld [vmem:[#allocation2 + $0x98] sm:$0xff]
  %v69 = vld [vmem:[#allocation2 + $0xa0] sm:$0xff]
  %v70 = vld [vmem:[#allocation2 + $0xa8] sm:$0xff]
  %v71 = vld [vmem:[#allocation2 + $0xb0] sm:$0xff]
  %v72 = vld [vmem:[#allocation2 + $0xb8] sm:$0xff]
  %v73 = vld [vmem:[#allocation2 + $0xc0] sm:$0xff]
  %v74 = vld [vmem:[#allocation2 + $0xc8] sm:$0xff]
  %v75 = vld [vmem:[#allocation2 + $0xd0] sm:$0xff]
  %v76 = vld [vmem:[#allocation2 + $0xd8] sm:$0xff]
  %v77 = vld [vmem:[#allocation2 + $0xe0] sm:$0xff]
  %v78 = vld [vmem:[#allocation2 + $0xe8] sm:$0xff]
  %v79 = vld [vmem:[#allocation2 + $0xf0] sm:$0xff]
  %v80 = vld [vmem:[#allocation2 + $0xf8] sm:$0xff]
  %v81 = vld [vmem:[%s0] sm:$0xf]
  %v82 = vld [vmem:[%s0 + $0x4] sm:$0xf]
  %v83 = vld [vmem:[%s0 + $0x8] sm:$0xf]
  %v84 = vld [vmem:[%s0 + $0xc] sm:$0xf]
  %v85 = vld [vmem:[%s0 + $0x10] sm:$0xf]
  %v86 = vld [vmem:[%s0 + $0x14] sm:$0xf]
  %v87 = vld [vmem:[%s0 + $0x18] sm:$0xf]
  %v88 = vld [vmem:[%s0 + $0x1c] sm:$0xf]
  %v89 = vld [vmem:[%s0 + $0x20] sm:$0xf]
  %v90 = vld [vmem:[%s0 + $0x24] sm:$0xf]
  %v91 = vld [vmem:[%s0 + $0x28] sm:$0xf]
  %v92 = vld [vmem:[%s0 + $0x2c] sm:$0xf]
  %v93 = vld [vmem:[%s0 + $0x30] sm:$0xf]
  %v94 = vld [vmem:[%s0 + $0x34] sm:$0xf]
  %v95 = vld [vmem:[%s0 + $0x38] sm:$0xf]
  %v96 = vld [vmem:[%s0 + $0x3c] sm:$0xf]
  %v97 = vld [vmem:[%s0 + $0x40] sm:$0xf]
  %v98 = vld [vmem:[%s0 + $0x44] sm:$0xf]
  %v99 = vld [vmem:[%s0 + $0x48] sm:$0xf]
  %v100 = vld [vmem:[%s0 + $0x4c] sm:$0xf]
  %v101 = vld [vmem:[%s0 + $0x50] sm:$0xf]
  %v102 = vld [vmem:[%s0 + $0x54] sm:$0xf]
  %v103 = vld [vmem:[%s0 + $0x58] sm:$0xf]
  %v104 = vld [vmem:[%s0 + $0x5c] sm:$0xf]
  %v105 = vld [vmem:[%s0 + $0x60] sm:$0xf]
  %v106 = vld [vmem:[%s0 + $0x64] sm:$0xf]
  %v107 = vld [vmem:[%s0 + $0x68] sm:$0xf]
  %v108 = vld [vmem:[%s0 + $0x6c] sm:$0xf]
  %v109 = vld [vmem:[%s0 + $0x70] sm:$0xf]
  %v110 = vld [vmem:[%s0 + $0x74] sm:$0xf]
  %v111 = vld [vmem:[%s0 + $0x78] sm:$0xf]
  %v112 = vld [vmem:[%s0 + $0x7c] sm:$0xf]
  %v113 = vld [vmem:[%s1] sm:$0xf]
  %v114 = vld [vmem:[%s1 + $0x4] sm:$0xf]
  %v115 = vld [vmem:[%s1 + $0x8] sm:$0xf]
  %v116 = vld [vmem:[%s1 + $0xc] sm:$0xf]
  %v149 = vunpack.c.l.b16 %v81
  %v150 = vunpack.c.l.b16 %v82
  %v151 = vunpack.c.l.b16 %v83
  %v152 = vunpack.c.l.b16 %v84
  %v153 = vunpack.c.l.b16 %v85
  %v154 = vunpack.c.l.b16 %v86
  %v155 = vunpack.c.l.b16 %v87
  %v156 = vunpack.c.l.b16 %v88
  %v157 = vunpack.c.l.b16 %v89
  %v158 = vunpack.c.l.b16 %v90
  %v159 = vunpack.c.l.b16 %v91
  %v160 = vunpack.c.l.b16 %v92
  %v161 = vunpack.c.l.b16 %v93
  %v162 = vunpack.c.l.b16 %v94
  %v163 = vunpack.c.l.b16 %v95
  %v164 = vunpack.c.l.b16 %v96
  %v165 = vunpack.c.l.b16 %v97
  %v166 = vunpack.c.l.b16 %v98
  %v167 = vunpack.c.l.b16 %v99
  %v168 = vunpack.c.l.b16 %v100
  %v169 = vunpack.c.l.b16 %v101
  %v170 = vunpack.c.l.b16 %v102
  %v171 = vunpack.c.l.b16 %v103
  %v172 = vunpack.c.l.b16 %v104
  %v173 = vunpack.c.l.b16 %v105
  %v174 = vunpack.c.l.b16 %v106
  %v175 = vunpack.c.l.b16 %v107
  %v176 = vunpack.c.l.b16 %v108
  %v177 = vunpack.c.l.b16 %v109
  %v178 = vunpack.c.l.b16 %v110
  %v179 = vunpack.c.l.b16 %v111
  %v180 = vunpack.c.l.b16 %v112
  %v181 = vpack.c.b16 %v150, %v149
  %v182 = vpack.c.b16 %v152, %v151
  %v183 = vpack.c.b16 %v154, %v153
  %v184 = vpack.c.b16 %v156, %v155
  %v185 = vpack.c.b16 %v158, %v157
  %v186 = vpack.c.b16 %v160, %v159
  %v187 = vpack.c.b16 %v162, %v161
  %v188 = vpack.c.b16 %v164, %v163
  %v189 = vpack.c.b16 %v166, %v165
  %v190 = vpack.c.b16 %v168, %v167
  %v191 = vpack.c.b16 %v170, %v169
  %v192 = vpack.c.b16 %v172, %v171
  %v193 = vpack.c.b16 %v174, %v173
  %v194 = vpack.c.b16 %v176, %v175
  %v195 = vpack.c.b16 %v178, %v177
  %v196 = vpack.c.b16 %v180, %v179
  %v201 = vunpack.c.l.b16 %v113
  %v202 = vunpack.c.l.b16 %v114
  %v203 = vunpack.c.l.b16 %v115
  %v204 = vunpack.c.l.b16 %v116
  %v205 = vpack.c.b16 %v202, %v201
  %v206 = vpack.c.b16 %v204, %v203
  %vm209 = vcmask 261120
  %v211 = vsel %vm209, %v181, 0
  %v214 = vsel %vm209, %v182, 0
  %v217 = vsel %vm209, %v183, 0
  %v220 = vsel %vm209, %v184, 0
  %v223 = vsel %vm209, %v185, 0
  %v226 = vsel %vm209, %v186, 0
  %v229 = vsel %vm209, %v187, 0
  %v232 = vsel %vm209, %v188, 0
  %v235 = vsel %vm209, %v189, 0
  %v238 = vsel %vm209, %v190, 0
  %v241 = vsel %vm209, %v191, 0
  %v244 = vsel %vm209, %v192, 0
  %v247 = vsel %vm209, %v193, 0
  %v250 = vsel %vm209, %v194, 0
  %v253 = vsel %vm209, %v195, 0
  %v256 = vsel %vm209, %v196, 0
  %258 = vmatprep.subr.bf16.mxu0 0
  %259 = vmatpush1.bf16.msra.mxu0 %v205
  %260 = vmatprep.subr.bf16.mxu0 0
  %261 = vmatpush1.bf16.msra.mxu0 %v206
  %262 = vmatprep.subr.bf16.mxu0 0
  %263 = vmatpush1.bf16.msra.mxu0 0
  %264 = vmatprep.subr.bf16.mxu0 0
  %265 = vmatpush1.bf16.msra.mxu0 0
  %266 = vmatprep.subr.bf16.mxu0 0
  %267 = vmatpush1.bf16.msra.mxu0 0
  %268 = vmatprep.subr.bf16.mxu0 0
  %269 = vmatpush1.bf16.msra.mxu0 0
  %270 = vmatprep.subr.bf16.mxu0 0
  %271 = vmatpush1.bf16.msra.mxu0 0
  %272 = vmatprep.subr.bf16.mxu0 0
  %273 = vmatpush1.bf16.msra.mxu0 0
  %274 = vmatprep.subr.bf16.mxu0 0
  %275 = vmatpush1.bf16.msra.mxu0 0
  %276 = vmatprep.subr.bf16.mxu0 0
  %277 = vmatpush1.bf16.msra.mxu0 0
  %278 = vmatprep.subr.bf16.mxu0 0
  %279 = vmatpush1.bf16.msra.mxu0 0
  %280 = vmatprep.subr.bf16.mxu0 0
  %281 = vmatpush1.bf16.msra.mxu0 0
  %282 = vmatprep.subr.bf16.mxu0 0
  %283 = vmatpush1.bf16.msra.mxu0 0
  %284 = vmatprep.subr.bf16.mxu0 0
  %285 = vmatpush1.bf16.msra.mxu0 0
  %286 = vmatprep.subr.bf16.mxu0 0
  %287 = vmatpush1.bf16.msra.mxu0 0
  %288 = vmatprep.subr.bf16.mxu0 0
  %289 = vmatpush1.bf16.msra.mxu0 0
  %290 = vmatprep.mubr.bf16.mxu0 0
  %291 = vmatmul.mubr.bf16.gmra.mrb[0].mxu0 %v211
  %v292 = vpop.f32.mrb[0].mxu0
  %v293 = vadd.f32 0.0, %v292
  %v294 = vpop.f32.mrb[0].mxu0
  %v295 = vpop.f32.mrb[0].mxu0
  %v296 = vadd.f32 0.0, %v295
  %v297 = vpop.f32.mrb[0].mxu0
  %298 = vmatprep.mubr.bf16.mxu0 0
  %299 = vmatmul.mubr.bf16.gmra.mrb[0].mxu0 %v214
  %v300 = vpop.f32.mrb[0].mxu0
  %v301 = vadd.f32 0.0, %v300
  %v302 = vpop.f32.mrb[0].mxu0
  %v303 = vpop.f32.mrb[0].mxu0
  %v304 = vadd.f32 0.0, %v303
  %v305 = vpop.f32.mrb[0].mxu0
  %306 = vmatprep.mubr.bf16.mxu0 0
  %307 = vmatmul.mubr.bf16.gmra.mrb[0].mxu0 %v217
  %v308 = vpop.f32.mrb[0].mxu0
  %v309 = vadd.f32 0.0, %v308
  %v310 = vpop.f32.mrb[0].mxu0
  %v311 = vpop.f32.mrb[0].mxu0
  %v312 = vadd.f32 0.0, %v311
  %v313 = vpop.f32.mrb[0].mxu0
  %314 = vmatprep.mubr.bf16.mxu0 0
  %315 = vmatmul.mubr.bf16.gmra.mrb[0].mxu0 %v220
  %v316 = vpop.f32.mrb[0].mxu0
  %v317 = vadd.f32 0.0, %v316
  %v318 = vpop.f32.mrb[0].mxu0
  %v319 = vpop.f32.mrb[0].mxu0
  %v320 = vadd.f32 0.0, %v319
  %v321 = vpop.f32.mrb[0].mxu0
  %322 = vmatprep.mubr.bf16.mxu0 0
  %323 = vmatmul.mubr.bf16.gmra.mrb[0].mxu0 %v223
  %v324 = vpop.f32.mrb[0].mxu0
  %v325 = vadd.f32 0.0, %v324
  %v326 = vpop.f32.mrb[0].mxu0
  %v327 = vpop.f32.mrb[0].mxu0
  %v328 = vadd.f32 0.0, %v327
  %v329 = vpop.f32.mrb[0].mxu0
  %330 = vmatprep.mubr.bf16.mxu0 0
  %331 = vmatmul.mubr.bf16.gmra.mrb[0].mxu0 %v226
  %v332 = vpop.f32.mrb[0].mxu0
  %v333 = vadd.f32 0.0, %v332
  %v334 = vpop.f32.mrb[0].mxu0
  %v335 = vpop.f32.mrb[0].mxu0
  %v336 = vadd.f32 0.0, %v335
  %v337 = vpop.f32.mrb[0].mxu0
  %338 = vmatprep.mubr.bf16.mxu0 0
  %339 = vmatmul.mubr.bf16.gmra.mrb[0].mxu0 %v229
  %v340 = vpop.f32.mrb[0].mxu0
  %v341 = vadd.f32 0.0, %v340
  %v342 = vpop.f32.mrb[0].mxu0
  %v343 = vpop.f32.mrb[0].mxu0
  %v344 = vadd.f32 0.0, %v343
  %v345 = vpop.f32.mrb[0].mxu0
  %346 = vmatprep.mubr.bf16.mxu0 0
  %347 = vmatmul.mubr.bf16.gmra.mrb[0].mxu0 %v232
  %v348 = vpop.f32.mrb[0].mxu0
  %v349 = vadd.f32 0.0, %v348
  %v350 = vpop.f32.mrb[0].mxu0
  %v351 = vpop.f32.mrb[0].mxu0
  %v352 = vadd.f32 0.0, %v351
  %v353 = vpop.f32.mrb[0].mxu0
  %354 = vmatprep.mubr.bf16.mxu0 0
  %355 = vmatmul.mubr.bf16.gmra.mrb[0].mxu0 %v235
  %v356 = vpop.f32.mrb[0].mxu0
  %v357 = vadd.f32 0.0, %v356
  %v358 = vpop.f32.mrb[0].mxu0
  %v359 = vpop.f32.mrb[0].mxu0
  %v360 = vadd.f32 0.0, %v359
  %v361 = vpop.f32.mrb[0].mxu0
  %362 = vmatprep.mubr.bf16.mxu0 0
  %363 = vmatmul.mubr.bf16.gmra.mrb[0].mxu0 %v238
  %v364 = vpop.f32.mrb[0].mxu0
  %v365 = vadd.f32 0.0, %v364
  %v366 = vpop.f32.mrb[0].mxu0
  %v367 = vpop.f32.mrb[0].mxu0
  %v368 = vadd.f32 0.0, %v367
  %v369 = vpop.f32.mrb[0].mxu0
  %370 = vmatprep.mubr.bf16.mxu0 0
  %371 = vmatmul.mubr.bf16.gmra.mrb[0].mxu0 %v241
  %v372 = vpop.f32.mrb[0].mxu0
  %v373 = vadd.f32 0.0, %v372
  %v374 = vpop.f32.mrb[0].mxu0
  %v375 = vpop.f32.mrb[0].mxu0
  %v376 = vadd.f32 0.0, %v375
  %v377 = vpop.f32.mrb[0].mxu0
  %378 = vmatprep.mubr.bf16.mxu0 0
  %379 = vmatmul.mubr.bf16.gmra.mrb[0].mxu0 %v244
  %v380 = vpop.f32.mrb[0].mxu0
  %v381 = vadd.f32 0.0, %v380
  %v382 = vpop.f32.mrb[0].mxu0
  %v383 = vpop.f32.mrb[0].mxu0
  %v384 = vadd.f32 0.0, %v383
  %v385 = vpop.f32.mrb[0].mxu0
  %386 = vmatprep.mubr.bf16.mxu0 0
  %387 = vmatmul.mubr.bf16.gmra.mrb[0].mxu0 %v247
  %v388 = vpop.f32.mrb[0].mxu0
  %v389 = vadd.f32 0.0, %v388
  %v390 = vpop.f32.mrb[0].mxu0
  %v391 = vpop.f32.mrb[0].mxu0
  %v392 = vadd.f32 0.0, %v391
  %v393 = vpop.f32.mrb[0].mxu0
  %394 = vmatprep.mubr.bf16.mxu0 0
  %395 = vmatmul.mubr.bf16.gmra.mrb[0].mxu0 %v250
  %v396 = vpop.f32.mrb[0].mxu0
  %v397 = vadd.f32 0.0, %v396
  %v398 = vpop.f32.mrb[0].mxu0
  %v399 = vpop.f32.mrb[0].mxu0
  %v400 = vadd.f32 0.0, %v399
  %v401 = vpop.f32.mrb[0].mxu0
  %402 = vmatprep.mubr.bf16.mxu0 0
  %403 = vmatmul.mubr.bf16.gmra.mrb[0].mxu0 %v253
  %v404 = vpop.f32.mrb[0].mxu0
  %v405 = vadd.f32 0.0, %v404
  %v406 = vpop.f32.mrb[0].mxu0
  %v407 = vpop.f32.mrb[0].mxu0
  %v408 = vadd.f32 0.0, %v407
  %v409 = vpop.f32.mrb[0].mxu0
  %410 = vmatprep.mubr.bf16.mxu0 0
  %411 = vmatmul.mubr.bf16.gmra.mrb[0].mxu0 %v256
  %v412 = vpop.f32.mrb[0].mxu0
  %v413 = vadd.f32 0.0, %v412
  %v414 = vpop.f32.mrb[0].mxu0
  %v415 = vpop.f32.mrb[0].mxu0
  %v416 = vadd.f32 0.0, %v415
  %v417 = vpop.f32.mrb[0].mxu0
  %418 = vdwg.mxu0
  %v419 = vadd.f32 %v49, %v293
  %v420 = vadd.f32 %v50, %v296
  %v421 = vadd.f32 %v51, %v301
  %v422 = vadd.f32 %v52, %v304
  %v423 = vadd.f32 %v53, %v309
  %v424 = vadd.f32 %v54, %v312
  %v425 = vadd.f32 %v55, %v317
  %v426 = vadd.f32 %v56, %v320
  %v427 = vadd.f32 %v57, %v325
  %v428 = vadd.f32 %v58, %v328
  %v429 = vadd.f32 %v59, %v333
  %v430 = vadd.f32 %v60, %v336
  %v431 = vadd.f32 %v61, %v341
  %v432 = vadd.f32 %v62, %v344
  %v433 = vadd.f32 %v63, %v349
  %v434 = vadd.f32 %v64, %v352
  %v435 = vadd.f32 %v65, %v357
  %v436 = vadd.f32 %v66, %v360
  %v437 = vadd.f32 %v67, %v365
  %v438 = vadd.f32 %v68, %v368
  %v439 = vadd.f32 %v69, %v373
  %v440 = vadd.f32 %v70, %v376
  %v441 = vadd.f32 %v71, %v381
  %v442 = vadd.f32 %v72, %v384
  %v443 = vadd.f32 %v73, %v389
  %v444 = vadd.f32 %v74, %v392
  %v445 = vadd.f32 %v75, %v397
  %v446 = vadd.f32 %v76, %v400
  %v447 = vadd.f32 %v77, %v405
  %v448 = vadd.f32 %v78, %v408
  %v449 = vadd.f32 %v79, %v413
  %v450 = vadd.f32 %v80, %v416
  %451 = vst.msk [vmem:[#allocation2] sm:$0xff] %vm209, %v419
  %452 = vst.msk [vmem:[#allocation2 + $0x8] sm:$0xff] %vm209, %v420
  %453 = vst.msk [vmem:[#allocation2 + $0x10] sm:$0xff] %vm209, %v421
  %454 = vst.msk [vmem:[#allocation2 + $0x18] sm:$0xff] %vm209, %v422
  %455 = vst.msk [vmem:[#allocation2 + $0x20] sm:$0xff] %vm209, %v423
  %456 = vst.msk [vmem:[#allocation2 + $0x28] sm:$0xff] %vm209, %v424
  %457 = vst.msk [vmem:[#allocation2 + $0x30] sm:$0xff] %vm209, %v425
  %458 = vst.msk [vmem:[#allocation2 + $0x38] sm:$0xff] %vm209, %v426
  %459 = vst.msk [vmem:[#allocation2 + $0x40] sm:$0xff] %vm209, %v427
  %460 = vst.msk [vmem:[#allocation2 + $0x48] sm:$0xff] %vm209, %v428
  %461 = vst.msk [vmem:[#allocation2 + $0x50] sm:$0xff] %vm209, %v429
  %462 = vst.msk [vmem:[#allocation2 + $0x58] sm:$0xff] %vm209, %v430
  %463 = vst.msk [vmem:[#allocation2 + $0x60] sm:$0xff] %vm209, %v431
  %464 = vst.msk [vmem:[#allocation2 + $0x68] sm:$0xff] %vm209, %v432
  %465 = vst.msk [vmem:[#allocation2 + $0x70] sm:$0xff] %vm209, %v433
  %466 = vst.msk [vmem:[#allocation2 + $0x78] sm:$0xff] %vm209, %v434
  %467 = vst.msk [vmem:[#allocation2 + $0x80] sm:$0xff] %vm209, %v435
  %468 = vst.msk [vmem:[#allocation2 + $0x88] sm:$0xff] %vm209, %v436
  %469 = vst.msk [vmem:[#allocation2 + $0x90] sm:$0xff] %vm209, %v437
  %470 = vst.msk [vmem:[#allocation2 + $0x98] sm:$0xff] %vm209, %v438
  %471 = vst.msk [vmem:[#allocation2 + $0xa0] sm:$0xff] %vm209, %v439
  %472 = vst.msk [vmem:[#allocation2 + $0xa8] sm:$0xff] %vm209, %v440
  %473 = vst.msk [vmem:[#allocation2 + $0xb0] sm:$0xff] %vm209, %v441
  %474 = vst.msk [vmem:[#allocation2 + $0xb8] sm:$0xff] %vm209, %v442
  %475 = vst.msk [vmem:[#allocation2 + $0xc0] sm:$0xff] %vm209, %v443
  %476 = vst.msk [vmem:[#allocation2 + $0xc8] sm:$0xff] %vm209, %v444
  %477 = vst.msk [vmem:[#allocation2 + $0xd0] sm:$0xff] %vm209, %v445
  %478 = vst.msk [vmem:[#allocation2 + $0xd8] sm:$0xff] %vm209, %v446
  %479 = vst.msk [vmem:[#allocation2 + $0xe0] sm:$0xff] %vm209, %v447
  %480 = vst.msk [vmem:[#allocation2 + $0xe8] sm:$0xff] %vm209, %v448
  %481 = vst.msk [vmem:[#allocation2 + $0xf0] sm:$0xff] %vm209, %v449
  %482 = vst.msk [vmem:[#allocation2 + $0xf8] sm:$0xff] %vm209, %v450
  // Predicated region
  $region14: #{run.9} parent=0 // pred_check
    %p483 = pneg %p12
  $region15: #{run.9} parent=0 // pred_check_branch
    %485 = sbr.rel (%p483) target = $region17
  $region16: #{run.9} parent=0 // pred_region
    %v486 = vld [vmem:[#allocation2] sm:$0xff]
    %v487 = vld [vmem:[#allocation2 + $0x8] sm:$0xff]
    %v488 = vld [vmem:[#allocation2 + $0x10] sm:$0xff]
    %v489 = vld [vmem:[#allocation2 + $0x18] sm:$0xff]
    %v490 = vld [vmem:[#allocation2 + $0x20] sm:$0xff]
    %v491 = vld [vmem:[#allocation2 + $0x28] sm:$0xff]
    %v492 = vld [vmem:[#allocation2 + $0x30] sm:$0xff]
    %v493 = vld [vmem:[#allocation2 + $0x38] sm:$0xff]
    %v494 = vld [vmem:[#allocation2 + $0x40] sm:$0xff]
    %v495 = vld [vmem:[#allocation2 + $0x48] sm:$0xff]
    %v496 = vld [vmem:[#allocation2 + $0x50] sm:$0xff]
    %v497 = vld [vmem:[#allocation2 + $0x58] sm:$0xff]
    %v498 = vld [vmem:[#allocation2 + $0x60] sm:$0xff]
    %v499 = vld [vmem:[#allocation2 + $0x68] sm:$0xff]
    %v500 = vld [vmem:[#allocation2 + $0x70] sm:$0xff]
    %v501 = vld [vmem:[#allocation2 + $0x78] sm:$0xff]
    %v502 = vld [vmem:[#allocation2 + $0x80] sm:$0xff]
    %v503 = vld [vmem:[#allocation2 + $0x88] sm:$0xff]
    %v504 = vld [vmem:[#allocation2 + $0x90] sm:$0xff]
    %v505 = vld [vmem:[#allocation2 + $0x98] sm:$0xff]
    %v506 = vld [vmem:[#allocation2 + $0xa0] sm:$0xff]
    %v507 = vld [vmem:[#allocation2 + $0xa8] sm:$0xff]
    %v508 = vld [vmem:[#allocation2 + $0xb0] sm:$0xff]
    %v509 = vld [vmem:[#allocation2 + $0xb8] sm:$0xff]
    %v510 = vld [vmem:[#allocation2 + $0xc0] sm:$0xff]
    %v511 = vld [vmem:[#allocation2 + $0xc8] sm:$0xff]
    %v512 = vld [vmem:[#allocation2 + $0xd0] sm:$0xff]
    %v513 = vld [vmem:[#allocation2 + $0xd8] sm:$0xff]
    %v514 = vld [vmem:[#allocation2 + $0xe0] sm:$0xff]
    %v515 = vld [vmem:[#allocation2 + $0xe8] sm:$0xff]
    %v516 = vld [vmem:[#allocation2 + $0xf0] sm:$0xff]
    %v517 = vld [vmem:[#allocation2 + $0xf8] sm:$0xff]
    %518 = vst.msk [vmem:[%s2] sm:$0xff] %vm209, %v486
    %519 = vst.msk [vmem:[%s2 + $0x8] sm:$0xff] %vm209, %v487
    %520 = vst.msk [vmem:[%s2 + $0x10] sm:$0xff] %vm209, %v488
    %521 = vst.msk [vmem:[%s2 + $0x18] sm:$0xff] %vm209, %v489
    %522 = vst.msk [vmem:[%s2 + $0x20] sm:$0xff] %vm209, %v490
    %523 = vst.msk [vmem:[%s2 + $0x28] sm:$0xff] %vm209, %v491
    %524 = vst.msk [vmem:[%s2 + $0x30] sm:$0xff] %vm209, %v492
    %525 = vst.msk [vmem:[%s2 + $0x38] sm:$0xff] %vm209, %v493
    %526 = vst.msk [vmem:[%s2 + $0x40] sm:$0xff] %vm209, %v494
    %527 = vst.msk [vmem:[%s2 + $0x48] sm:$0xff] %vm209, %v495
    %528 = vst.msk [vmem:[%s2 + $0x50] sm:$0xff] %vm209, %v496
    %529 = vst.msk [vmem:[%s2 + $0x58] sm:$0xff] %vm209, %v497
    %530 = vst.msk [vmem:[%s2 + $0x60] sm:$0xff] %vm209, %v498
    %531 = vst.msk [vmem:[%s2 + $0x68] sm:$0xff] %vm209, %v499
    %532 = vst.msk [vmem:[%s2 + $0x70] sm:$0xff] %vm209, %v500
    %533 = vst.msk [vmem:[%s2 + $0x78] sm:$0xff] %vm209, %v501
    %534 = vst.msk [vmem:[%s2 + $0x80] sm:$0xff] %vm209, %v502
    %535 = vst.msk [vmem:[%s2 + $0x88] sm:$0xff] %vm209, %v503
    %536 = vst.msk [vmem:[%s2 + $0x90] sm:$0xff] %vm209, %v504
    %537 = vst.msk [vmem:[%s2 + $0x98] sm:$0xff] %vm209, %v505
    %538 = vst.msk [vmem:[%s2 + $0xa0] sm:$0xff] %vm209, %v506
    %539 = vst.msk [vmem:[%s2 + $0xa8] sm:$0xff] %vm209, %v507
    %540 = vst.msk [vmem:[%s2 + $0xb0] sm:$0xff] %vm209, %v508
    %541 = vst.msk [vmem:[%s2 + $0xb8] sm:$0xff] %vm209, %v509
    %542 = vst.msk [vmem:[%s2 + $0xc0] sm:$0xff] %vm209, %v510
    %543 = vst.msk [vmem:[%s2 + $0xc8] sm:$0xff] %vm209, %v511
    %544 = vst.msk [vmem:[%s2 + $0xd0] sm:$0xff] %vm209, %v512
    %545 = vst.msk [vmem:[%s2 + $0xd8] sm:$0xff] %vm209, %v513
    %546 = vst.msk [vmem:[%s2 + $0xe0] sm:$0xff] %vm209, %v514
    %547 = vst.msk [vmem:[%s2 + $0xe8] sm:$0xff] %vm209, %v515
    %548 = vst.msk [vmem:[%s2 + $0xf0] sm:$0xff] %vm209, %v516
    %549 = vst.msk [vmem:[%s2 + $0xf8] sm:$0xff] %vm209, %v517
  $region17: #{run.9} parent=0 // pred_fallthru
    _
  // Predicated region
  $region18: #{run.9} parent=0 // pred_check
    _
  $region19: #{run.9} parent=0 // pred_check_branch
    %551 = sbr.rel (0) target = $region21
  $region20: #{run.9} parent=0 // pred_region
    _
  $region21: #{run.9} parent=0 // pred_fallthru
    _
  // Predicated region
  $region22: #{run.9} parent=0 // pred_check
    _
  $region23: #{run.9} parent=0 // pred_check_branch
    %553 = sbr.rel (0) target = $region25
  $region24: #{run.9} parent=0 // pred_region
    _
  $region25: #{run.9} parent=0 // pred_fallthru
    _

// kernel: run.12
$region0: #{run.12}
  #allocation0 [shape = 'u32[]', space=smem, size = 0x4, offset = 0x4, fixed_abs, tag = 'smem constant byte address 0x4 - core index']
  #allocation1 [shape = 'u32[144,128]{1,0:T(1,128)}', space=vmem, size = 0x12000, scoped, tag = 'internal scratch']
  #allocation2 [shape = 'f32[16,32]{1,0:T(8,128)}', space=vmem, size = 0x2000, scoped, tag = 'scratch operand']
  %s0 = inlined_call_operand.vmem [shape: bf16[16,32], index: 0, kind: input, shape index: {}]
  %s1 = inlined_call_operand.vmem [shape: bf16[32,32], index: 1, kind: input, shape index: {}]
  %s2 = inlined_call_operand.vmem [shape: f32[1,32], index: 2, kind: input, shape index: {}]
  %s3 = inlined_call_operand.vmem [shape: f32[16,32], index: 3, kind: input, shape index: {}]
  %s4 = inlined_call_operand.vmem [shape: f32[16,32], index: 4, kind: output, shape index: {}]
  %s5 = sld [smem:[#allocation0]]
  $region34: #{run.12} parent=0
    _
  %s7 = ssub.s32 1, %s5
  %s8 = scalar_select 0, %s7, %s5
  // Predicated region
  $region2: #{run.12} parent=0 // pred_check
    _
  $region3: #{run.12} parent=0 // pred_check_branch
    %10 = sbr.rel (0) target = $region5
  $region4: #{run.12} parent=0 // pred_region
    _
  $region5: #{run.12} parent=0 // pred_fallthru
    _
  // Predicated region
  $region6: #{run.12} parent=0 // pred_check
    _
  $region7: #{run.12} parent=0 // pred_check_branch
    %12 = sbr.rel (0) target = $region9
  $region8: #{run.12} parent=0 // pred_region
    _
  $region9: #{run.12} parent=0 // pred_fallthru
    _
  // Predicated region
  $region10: #{run.12} parent=0 // pred_check
    _
  $region11: #{run.12} parent=0 // pred_check_branch
    %14 = sbr.rel (0) target = $region13
  $region12: #{run.12} parent=0 // pred_region
    _
  $region13: #{run.12} parent=0 // pred_fallthru
    _
  // Predicated region
  $region14: #{run.12} parent=0 // pred_check
    _
  $region15: #{run.12} parent=0 // pred_check_branch
    %16 = sbr.rel (0) target = $region17
  $region16: #{run.12} parent=0 // pred_region
    _
  $region17: #{run.12} parent=0 // pred_fallthru
    _
  %p18 = scmp.eq.s32.totalorder 0, 0
  // Predicated region
  $region18: #{run.12} parent=0 // pred_check
    %p19 = pneg %p18
  $region19: #{run.12} parent=0 // pred_check_branch
    %21 = sbr.rel (%p19) target = $region21
  $region20: #{run.12} parent=0 // pred_region
    %vm22 = vcmask 261120
    %23 = vst.msk [vmem:[#allocation2] sm:$0xff] %vm22, 0.0
    %24 = vst.msk [vmem:[#allocation2 + $0x8] sm:$0xff] %vm22, 0.0
  $region21: #{run.12} parent=0 // pred_fallthru
    _
  %v25 = vld [vmem:[#allocation2] sm:$0xff]
  %v26 = vld [vmem:[#allocation2 + $0x8] sm:$0xff]
  %v27 = vld [vmem:[%s0] sm:$0xf]
  %v28 = vld [vmem:[%s0 + $0x4] sm:$0xf]
  %v29 = vld [vmem:[%s1] sm:$0xf]
  %v30 = vld [vmem:[%s1 + $0x4] sm:$0xf]
  %v31 = vld [vmem:[%s1 + $0x8] sm:$0xf]
  %v32 = vld [vmem:[%s1 + $0xc] sm:$0xf]
  %v35 = vunpack.c.l.b16 %v27
  %v36 = vunpack.c.l.b16 %v28
  %v37 = vpack.c.b16 %v36, %v35
  %v42 = vunpack.c.l.b16 %v29
  %v43 = vunpack.c.l.b16 %v30
  %v44 = vunpack.c.l.b16 %v31
  %v45 = vunpack.c.l.b16 %v32
  %v46 = vpack.c.b16 %v43, %v42
  %v47 = vpack.c.b16 %v45, %v44
  %vm50 = vcmask 261120
  %v52 = vsel %vm50, %v37, 0
  %54 = vmatprep.subr.bf16.mxu0 0
  %55 = vmatpush1.bf16.msra.mxu0 %v46
  %56 = vmatprep.subr.bf16.mxu0 0
  %57 = vmatpush1.bf16.msra.mxu0 %v47
  %58 = vmatprep.subr.bf16.mxu0 0
  %59 = vmatpush1.bf16.msra.mxu0 0
  %60 = vmatprep.subr.bf16.mxu0 0
  %61 = vmatpush1.bf16.msra.mxu0 0
  %62 = vmatprep.subr.bf16.mxu0 0
  %63 = vmatpush1.bf16.msra.mxu0 0
  %64 = vmatprep.subr.bf16.mxu0 0
  %65 = vmatpush1.bf16.msra.mxu0 0
  %66 = vmatprep.subr.bf16.mxu0 0
  %67 = vmatpush1.bf16.msra.mxu0 0
  %68 = vmatprep.subr.bf16.mxu0 0
  %69 = vmatpush1.bf16.msra.mxu0 0
  %70 = vmatprep.subr.bf16.mxu0 0
  %71 = vmatpush1.bf16.msra.mxu0 0
  %72 = vmatprep.subr.bf16.mxu0 0
  %73 = vmatpush1.bf16.msra.mxu0 0
  %74 = vmatprep.subr.bf16.mxu0 0
  %75 = vmatpush1.bf16.msra.mxu0 0
  %76 = vmatprep.subr.bf16.mxu0 0
  %77 = vmatpush1.bf16.msra.mxu0 0
  %78 = vmatprep.subr.bf16.mxu0 0
  %79 = vmatpush1.bf16.msra.mxu0 0
  %80 = vmatprep.subr.bf16.mxu0 0
  %81 = vmatpush1.bf16.msra.mxu0 0
  %82 = vmatprep.subr.bf16.mxu0 0
  %83 = vmatpush1.bf16.msra.mxu0 0
  %84 = vmatprep.subr.bf16.mxu0 0
  %85 = vmatpush1.bf16.msra.mxu0 0
  %86 = vmatprep.mubr.bf16.mxu0 0
  %87 = vmatmul.mubr.bf16.gmra.mrb[0].mxu0 %v52
  %v88 = vpop.f32.mrb[0].mxu0
  %v89 = vadd.f32 0.0, %v88
  %v90 = vpop.f32.mrb[0].mxu0
  %v91 = vpop.f32.mrb[0].mxu0
  %v92 = vadd.f32 0.0, %v91
  %v93 = vpop.f32.mrb[0].mxu0
  %94 = vdwg.mxu0
  %v95 = vadd.f32 %v25, %v89
  %v96 = vadd.f32 %v26, %v92
  %97 = vst.msk [vmem:[#allocation2] sm:$0xff] %vm50, %v95
  %98 = vst.msk [vmem:[#allocation2 + $0x8] sm:$0xff] %vm50, %v96
  // Predicated region
  $region22: #{run.12} parent=0 // pred_check
    %p99 = pneg %p18
  $region23: #{run.12} parent=0 // pred_check_branch
    %101 = sbr.rel (%p99) target = $region25
  $region24: #{run.12} parent=0 // pred_region
    %v102 = vld [vmem:[#allocation2] sm:$0xff]
    %v103 = vld [vmem:[#allocation2 + $0x8] sm:$0xff]
    %v104 = vld [vmem:[%s2] sm:$0x1]
    %v106 = vlaneseq
    %v107 = vshrl.u32 %v106, 7
    %v108 = vsub.s32 0, %v107
    %v109 = vrot.slane %v104, %v108
    %v111 = vadd.f32 %v102, %v109
    %v112 = vadd.f32 %v103, %v109
    %v113 = vld [vmem:[%s3] sm:$0xff]
    %v114 = vld [vmem:[%s3 + $0x8] sm:$0xff]
    %v115 = vadd.f32 %v111, %v113
    %v116 = vadd.f32 %v112, %v114
    %117 = vst.msk [vmem:[%s4] sm:$0xff] %vm50, %v115
    %118 = vst.msk [vmem:[%s4 + $0x8] sm:$0xff] %vm50, %v116
  $region25: #{run.12} parent=0 // pred_fallthru
    _
  // Predicated region
  $region26: #{run.12} parent=0 // pred_check
    _
  $region27: #{run.12} parent=0 // pred_check_branch
    %120 = sbr.rel (0) target = $region29
  $region28: #{run.12} parent=0 // pred_region
    _
  $region29: #{run.12} parent=0 // pred_fallthru
    _
  // Predicated region
  $region30: #{run.12} parent=0 // pred_check
    _
  $region31: #{run.12} parent=0 // pred_check_branch
    %122 = sbr.rel (0) target = $region33
  $region32: #{run.12} parent=0 // pred_region
    _
  $region33: #{run.12} parent=0 // pred_fallthru
    _

// kernel: run.15
$region0: #{run.15}
  #allocation0 [shape = 'u32[]', space=smem, size = 0x4, offset = 0x4, fixed_abs, tag = 'smem constant byte address 0x4 - core index']
  #allocation1 [shape = 'u32[144,128]{1,0:T(1,128)}', space=vmem, size = 0x12000, scoped, tag = 'internal scratch']
  #allocation2 [shape = 'f32[16,32]{1,0:T(8,128)}', space=vmem, size = 0x2000, scoped, tag = 'scratch operand']
  %s0 = inlined_call_operand.vmem [shape: bf16[16,64], index: 0, kind: input, shape index: {}]
  %s1 = inlined_call_operand.vmem [shape: bf16[64,32], index: 1, kind: input, shape index: {}]
  %s2 = inlined_call_operand.vmem [shape: f32[1,32], index: 2, kind: input, shape index: {}]
  %s3 = inlined_call_operand.vmem [shape: f32[16,32], index: 3, kind: input, shape index: {}]
  %s4 = inlined_call_operand.vmem [shape: f32[16,32], index: 4, kind: output, shape index: {}]
  %s5 = sld [smem:[#allocation0]]
  $region34: #{run.15} parent=0
    _
  %s7 = ssub.s32 1, %s5
  %s8 = scalar_select 0, %s7, %s5
  // Predicated region
  $region2: #{run.15} parent=0 // pred_check
    _
  $region3: #{run.15} parent=0 // pred_check_branch
    %10 = sbr.rel (0) target = $region5
  $region4: #{run.15} parent=0 // pred_region
    _
  $region5: #{run.15} parent=0 // pred_fallthru
    _
  // Predicated region
  $region6: #{run.15} parent=0 // pred_check
    _
  $region7: #{run.15} parent=0 // pred_check_branch
    %12 = sbr.rel (0) target = $region9
  $region8: #{run.15} parent=0 // pred_region
    _
  $region9: #{run.15} parent=0 // pred_fallthru
    _
  // Predicated region
  $region10: #{run.15} parent=0 // pred_check
    _
  $region11: #{run.15} parent=0 // pred_check_branch
    %14 = sbr.rel (0) target = $region13
  $region12: #{run.15} parent=0 // pred_region
    _
  $region13: #{run.15} parent=0 // pred_fallthru
    _
  // Predicated region
  $region14: #{run.15} parent=0 // pred_check
    _
  $region15: #{run.15} parent=0 // pred_check_branch
    %16 = sbr.rel (0) target = $region17
  $region16: #{run.15} parent=0 // pred_region
    _
  $region17: #{run.15} parent=0 // pred_fallthru
    _
  %p18 = scmp.eq.s32.totalorder 0, 0
  // Predicated region
  $region18: #{run.15} parent=0 // pred_check
    %p19 = pneg %p18
  $region19: #{run.15} parent=0 // pred_check_branch
    %21 = sbr.rel (%p19) target = $region21
  $region20: #{run.15} parent=0 // pred_region
    %vm22 = vcmask 261120
    %23 = vst.msk [vmem:[#allocation2] sm:$0xff] %vm22, 0.0
    %24 = vst.msk [vmem:[#allocation2 + $0x8] sm:$0xff] %vm22, 0.0
  $region21: #{run.15} parent=0 // pred_fallthru
    _
  %v25 = vld [vmem:[#allocation2] sm:$0xff]
  %v26 = vld [vmem:[#allocation2 + $0x8] sm:$0xff]
  %v27 = vld [vmem:[%s0] sm:$0xf]
  %v28 = vld [vmem:[%s0 + $0x4] sm:$0xf]
  %v29 = vld [vmem:[%s1] sm:$0xf]
  %v30 = vld [vmem:[%s1 + $0x4] sm:$0xf]
  %v31 = vld [vmem:[%s1 + $0x8] sm:$0xf]
  %v32 = vld [vmem:[%s1 + $0xc] sm:$0xf]
  %v33 = vld [vmem:[%s1 + $0x10] sm:$0xf]
  %v34 = vld [vmem:[%s1 + $0x14] sm:$0xf]
  %v35 = vld [vmem:[%s1 + $0x18] sm:$0xf]
  %v36 = vld [vmem:[%s1 + $0x1c] sm:$0xf]
  %v39 = vunpack.c.l.b16 %v27
  %v40 = vunpack.c.l.b16 %v28
  %v41 = vpack.c.b16 %v40, %v39
  %v50 = vunpack.c.l.b16 %v29
  %v51 = vunpack.c.l.b16 %v30
  %v52 = vunpack.c.l.b16 %v31
  %v53 = vunpack.c.l.b16 %v32
  %v54 = vunpack.c.l.b16 %v33
  %v55 = vunpack.c.l.b16 %v34
  %v56 = vunpack.c.l.b16 %v35
  %v57 = vunpack.c.l.b16 %v36
  %v58 = vpack.c.b16 %v51, %v50
  %v59 = vpack.c.b16 %v53, %v52
  %v60 = vpack.c.b16 %v55, %v54
  %v61 = vpack.c.b16 %v57, %v56
  %vm66 = vcmask 523264
  %v68 = vsel %vm66, %v41, 0
  %70 = vmatprep.subr.bf16.mxu0 0
  %71 = vmatpush1.bf16.msra.mxu0 %v58
  %72 = vmatprep.subr.bf16.mxu0 0
  %73 = vmatpush1.bf16.msra.mxu0 %v59
  %74 = vmatprep.subr.bf16.mxu0 0
  %75 = vmatpush1.bf16.msra.mxu0 %v60
  %76 = vmatprep.subr.bf16.mxu0 0
  %77 = vmatpush1.bf16.msra.mxu0 %v61
  %78 = vmatprep.subr.bf16.mxu0 0
  %79 = vmatpush1.bf16.msra.mxu0 0
  %80 = vmatprep.subr.bf16.mxu0 0
  %81 = vmatpush1.bf16.msra.mxu0 0
  %82 = vmatprep.subr.bf16.mxu0 0
  %83 = vmatpush1.bf16.msra.mxu0 0
  %84 = vmatprep.subr.bf16.mxu0 0
  %85 = vmatpush1.bf16.msra.mxu0 0
  %86 = vmatprep.subr.bf16.mxu0 0
  %87 = vmatpush1.bf16.msra.mxu0 0
  %88 = vmatprep.subr.bf16.mxu0 0
  %89 = vmatpush1.bf16.msra.mxu0 0
  %90 = vmatprep.subr.bf16.mxu0 0
  %91 = vmatpush1.bf16.msra.mxu0 0
  %92 = vmatprep.subr.bf16.mxu0 0
  %93 = vmatpush1.bf16.msra.mxu0 0
  %94 = vmatprep.subr.bf16.mxu0 0
  %95 = vmatpush1.bf16.msra.mxu0 0
  %96 = vmatprep.subr.bf16.mxu0 0
  %97 = vmatpush1.bf16.msra.mxu0 0
  %98 = vmatprep.subr.bf16.mxu0 0
  %99 = vmatpush1.bf16.msra.mxu0 0
  %100 = vmatprep.subr.bf16.mxu0 0
  %101 = vmatpush1.bf16.msra.mxu0 0
  %102 = vmatprep.mubr.bf16.mxu0 0
  %103 = vmatmul.mubr.bf16.gmra.mrb[0].mxu0 %v68
  %v104 = vpop.f32.mrb[0].mxu0
  %v105 = vadd.f32 0.0, %v104
  %v106 = vpop.f32.mrb[0].mxu0
  %v107 = vpop.f32.mrb[0].mxu0
  %v108 = vadd.f32 0.0, %v107
  %v109 = vpop.f32.mrb[0].mxu0
  %110 = vdwg.mxu0
  %v111 = vadd.f32 %v25, %v105
  %v112 = vadd.f32 %v26, %v108
  %vm113 = vcmask 261120
  %114 = vst.msk [vmem:[#allocation2] sm:$0xff] %vm113, %v111
  %115 = vst.msk [vmem:[#allocation2 + $0x8] sm:$0xff] %vm113, %v112
  // Predicated region
  $region22: #{run.15} parent=0 // pred_check
    %p116 = pneg %p18
  $region23: #{run.15} parent=0 // pred_check_branch
    %118 = sbr.rel (%p116) target = $region25
  $region24: #{run.15} parent=0 // pred_region
    %v119 = vld [vmem:[#allocation2] sm:$0xff]
    %v120 = vld [vmem:[#allocation2 + $0x8] sm:$0xff]
    %v121 = vld [vmem:[%s2] sm:$0x1]
    %v123 = vlaneseq
    %v124 = vshrl.u32 %v123, 7
    %v125 = vsub.s32 0, %v124
    %v126 = vrot.slane %v121, %v125
    %v128 = vadd.f32 %v119, %v126
    %v129 = vadd.f32 %v120, %v126
    %v130 = vld [vmem:[%s3] sm:$0xff]
    %v131 = vld [vmem:[%s3 + $0x8] sm:$0xff]
    %v132 = vadd.f32 %v128, %v130
    %v133 = vadd.f32 %v129, %v131
    %134 = vst.msk [vmem:[%s4] sm:$0xff] %vm113, %v132
    %135 = vst.msk [vmem:[%s4 + $0x8] sm:$0xff] %vm113, %v133
  $region25: #{run.15} parent=0 // pred_fallthru
    _
  // Predicated region
  $region26: #{run.15} parent=0 // pred_check
    _
  $region27: #{run.15} parent=0 // pred_check_branch
    %137 = sbr.rel (0) target = $region29
  $region28: #{run.15} parent=0 // pred_region
    _
  $region29: #{run.15} parent=0 // pred_fallthru
    _
  // Predicated region
  $region30: #{run.15} parent=0 // pred_check
    _
  $region31: #{run.15} parent=0 // pred_check_branch
    %139 = sbr.rel (0) target = $region33
  $region32: #{run.15} parent=0 // pred_region
    _
  $region33: #{run.15} parent=0 // pred_fallthru
    _

// kernel: run.14
$region0: #{run.14}
  #allocation0 [shape = 'u32[]', space=smem, size = 0x4, offset = 0x4, fixed_abs, tag = 'smem constant byte address 0x4 - core index']
  #allocation1 [shape = 'u32[144,128]{1,0:T(1,128)}', space=vmem, size = 0x12000, scoped, tag = 'internal scratch']
  #allocation2 [shape = 'f32[16,64]{1,0:T(8,128)}', space=vmem, size = 0x2000, scoped, tag = 'scratch operand']
  %s0 = inlined_call_operand.vmem [shape: bf16[16,96], index: 0, kind: input, shape index: {}]
  %s1 = inlined_call_operand.vmem [shape: bf16[96,64], index: 1, kind: input, shape index: {}]
  %s2 = inlined_call_operand.vmem [shape: f32[1,64], index: 2, kind: input, shape index: {}]
  %s3 = inlined_call_operand.vmem [shape: bf16[16,64], index: 3, kind: output, shape index: {}]
  %s4 = sld [smem:[#allocation0]]
  $region30: #{run.14} parent=0
    _
  %s6 = ssub.s32 1, %s4
  %s7 = scalar_select 0, %s6, %s4
  // Predicated region
  $region2: #{run.14} parent=0 // pred_check
    _
  $region3: #{run.14} parent=0 // pred_check_branch
    %9 = sbr.rel (0) target = $region5
  $region4: #{run.14} parent=0 // pred_region
    _
  $region5: #{run.14} parent=0 // pred_fallthru
    _
  // Predicated region
  $region6: #{run.14} parent=0 // pred_check
    _
  $region7: #{run.14} parent=0 // pred_check_branch
    %11 = sbr.rel (0) target = $region9
  $region8: #{run.14} parent=0 // pred_region
    _
  $region9: #{run.14} parent=0 // pred_fallthru
    _
  // Predicated region
  $region10: #{run.14} parent=0 // pred_check
    _
  $region11: #{run.14} parent=0 // pred_check_branch
    %13 = sbr.rel (0) target = $region13
  $region12: #{run.14} parent=0 // pred_region
    _
  $region13: #{run.14} parent=0 // pred_fallthru
    _
  %p15 = scmp.eq.s32.totalorder 0, 0
  // Predicated region
  $region14: #{run.14} parent=0 // pred_check
    %p16 = pneg %p15
  $region15: #{run.14} parent=0 // pred_check_branch
    %18 = sbr.rel (%p16) target = $region17
  $region16: #{run.14} parent=0 // pred_region
    %vm19 = vcmask 523264
    %20 = vst.msk [vmem:[#allocation2] sm:$0xff] %vm19, 0.0
    %21 = vst.msk [vmem:[#allocation2 + $0x8] sm:$0xff] %vm19, 0.0
  $region17: #{run.14} parent=0 // pred_fallthru
    _
  %v22 = vld [vmem:[#allocation2] sm:$0xff]
  %v23 = vld [vmem:[#allocation2 + $0x8] sm:$0xff]
  %v24 = vld [vmem:[%s0] sm:$0xf]
  %v25 = vld [vmem:[%s0 + $0x4] sm:$0xf]
  %v26 = vld [vmem:[%s1] sm:$0xf]
  %v27 = vld [vmem:[%s1 + $0x4] sm:$0xf]
  %v28 = vld [vmem:[%s1 + $0x8] sm:$0xf]
  %v29 = vld [vmem:[%s1 + $0xc] sm:$0xf]
  %v30 = vld [vmem:[%s1 + $0x10] sm:$0xf]
  %v31 = vld [vmem:[%s1 + $0x14] sm:$0xf]
  %v32 = vld [vmem:[%s1 + $0x18] sm:$0xf]
  %v33 = vld [vmem:[%s1 + $0x1c] sm:$0xf]
  %v34 = vld [vmem:[%s1 + $0x20] sm:$0xf]
  %v35 = vld [vmem:[%s1 + $0x24] sm:$0xf]
  %v36 = vld [vmem:[%s1 + $0x28] sm:$0xf]
  %v37 = vld [vmem:[%s1 + $0x2c] sm:$0xf]
  %v40 = vunpack.c.l.b16 %v24
  %v41 = vunpack.c.l.b16 %v25
  %v42 = vpack.c.b16 %v41, %v40
  %v55 = vunpack.c.l.b16 %v26
  %v56 = vunpack.c.l.b16 %v27
  %v57 = vunpack.c.l.b16 %v28
  %v58 = vunpack.c.l.b16 %v29
  %v59 = vunpack.c.l.b16 %v30
  %v60 = vunpack.c.l.b16 %v31
  %v61 = vunpack.c.l.b16 %v32
  %v62 = vunpack.c.l.b16 %v33
  %v63 = vunpack.c.l.b16 %v34
  %v64 = vunpack.c.l.b16 %v35
  %v65 = vunpack.c.l.b16 %v36
  %v66 = vunpack.c.l.b16 %v37
  %v67 = vpack.c.b16 %v56, %v55
  %v68 = vpack.c.b16 %v58, %v57
  %v69 = vpack.c.b16 %v60, %v59
  %v70 = vpack.c.b16 %v62, %v61
  %v71 = vpack.c.b16 %v64, %v63
  %v72 = vpack.c.b16 %v66, %v65
  %vm79 = vcmask 785408
  %v81 = vsel %vm79, %v42, 0
  %83 = vmatprep.subr.bf16.mxu0 0
  %84 = vmatpush1.bf16.msra.mxu0 %v67
  %85 = vmatprep.subr.bf16.mxu0 0
  %86 = vmatpush1.bf16.msra.mxu0 %v68
  %87 = vmatprep.subr.bf16.mxu0 0
  %88 = vmatpush1.bf16.msra.mxu0 %v69
  %89 = vmatprep.subr.bf16.mxu0 0
  %90 = vmatpush1.bf16.msra.mxu0 %v70
  %91 = vmatprep.subr.bf16.mxu0 0
  %92 = vmatpush1.bf16.msra.mxu0 %v71
  %93 = vmatprep.subr.bf16.mxu0 0
  %94 = vmatpush1.bf16.msra.mxu0 %v72
  %95 = vmatprep.subr.bf16.mxu0 0
  %96 = vmatpush1.bf16.msra.mxu0 0
  %97 = vmatprep.subr.bf16.mxu0 0
  %98 = vmatpush1.bf16.msra.mxu0 0
  %99 = vmatprep.subr.bf16.mxu0 0
  %100 = vmatpush1.bf16.msra.mxu0 0
  %101 = vmatprep.subr.bf16.mxu0 0
  %102 = vmatpush1.bf16.msra.mxu0 0
  %103 = vmatprep.subr.bf16.mxu0 0
  %104 = vmatpush1.bf16.msra.mxu0 0
  %105 = vmatprep.subr.bf16.mxu0 0
  %106 = vmatpush1.bf16.msra.mxu0 0
  %107 = vmatprep.subr.bf16.mxu0 0
  %108 = vmatpush1.bf16.msra.mxu0 0
  %109 = vmatprep.subr.bf16.mxu0 0
  %110 = vmatpush1.bf16.msra.mxu0 0
  %111 = vmatprep.subr.bf16.mxu0 0
  %112 = vmatpush1.bf16.msra.mxu0 0
  %113 = vmatprep.subr.bf16.mxu0 0
  %114 = vmatpush1.bf16.msra.mxu0 0
  %115 = vmatprep.mubr.bf16.mxu0 0
  %116 = vmatmul.mubr.bf16.gmra.mrb[0].mxu0 %v81
  %v117 = vpop.f32.mrb[0].mxu0
  %v118 = vadd.f32 0.0, %v117
  %v119 = vpop.f32.mrb[0].mxu0
  %v120 = vpop.f32.mrb[0].mxu0
  %v121 = vadd.f32 0.0, %v120
  %v122 = vpop.f32.mrb[0].mxu0
  %123 = vdwg.mxu0
  %v124 = vadd.f32 %v22, %v118
  %v125 = vadd.f32 %v23, %v121
  %vm126 = vcmask 523264
  %127 = vst.msk [vmem:[#allocation2] sm:$0xff] %vm126, %v124
  %128 = vst.msk [vmem:[#allocation2 + $0x8] sm:$0xff] %vm126, %v125
  // Predicated region
  $region18: #{run.14} parent=0 // pred_check
    %p129 = pneg %p15
  $region19: #{run.14} parent=0 // pred_check_branch
    %131 = sbr.rel (%p129) target = $region21
  $region20: #{run.14} parent=0 // pred_region
    %v132 = vld [vmem:[#allocation2] sm:$0xff]
    %v133 = vld [vmem:[#allocation2 + $0x8] sm:$0xff]
    %v134 = vld [vmem:[%s2] sm:$0x1]
    %v136 = vlaneseq
    %v137 = vshrl.u32 %v136, 7
    %v138 = vsub.s32 0, %v137
    %v139 = vrot.slane %v134, %v138
    %v141 = vadd.f32 %v132, %v139
    %v142 = vadd.f32 %v133, %v139
    %v143 = vmul.f32 %v141, 0.5
    %v144 = vmul.f32 %v142, 0.5
    %v145 = vmul.f32 %v141, 0.70710677
    %v146 = vmul.f32 %v142, 0.70710677
    %vm147 = vcmp.ge.f32.partialorder %v145, 0.0
    %vm148 = vcmp.ge.f32.partialorder %v146, 0.0
    %v149 = vsel %vm147, 1.0, -1.0
    %v150 = vsel %vm148, 1.0, -1.0
    %v151 = vand.u32 2147483647, %v145
    %v152 = vand.u32 2147483647, %v146
    %v153 = vmul.f32 %v151, 0.3275911
    %v154 = vmul.f32 %v152, 0.3275911
    %v155 = vadd.f32 %v153, 1.0
    %v156 = vadd.f32 %v154, 1.0
    %v157 = vrcp.pop %v155
    %v158 = vmul.f32 1.0, %v157
    %v159 = vrcp.pop %v156
    %v160 = vmul.f32 1.0, %v159
    %v161 = vmul.f32 %v158, 1.0614054
    %v162 = vmul.f32 %v160, 1.0614054
    %v163 = vadd.f32 %v161, -1.4531521
    %v164 = vadd.f32 %v162, -1.4531521
    %v165 = vmul.f32 %v163, %v158
    %v166 = vmul.f32 %v164, %v160
    %v167 = vadd.f32 %v165, 1.4214138
    %v168 = vadd.f32 %v166, 1.4214138
    %v169 = vmul.f32 %v167, %v158
    %v170 = vmul.f32 %v168, %v160
    %v171 = vadd.f32 %v169, -0.28449672
    %v172 = vadd.f32 %v170, -0.28449672
    %v173 = vmul.f32 %v171, %v158
    %v174 = vmul.f32 %v172, %v160
    %v175 = vadd.f32 %v173, 0.2548296
    %v176 = vadd.f32 %v174, 0.2548296
    %v177 = vmul.f32 %v175, %v158
    %v178 = vmul.f32 %v176, %v160
    %v179 = vsub.f32 0.0, %v151
    %v180 = vsub.f32 0.0, %v152
    %v181 = vmul.f32 %v179, %v151
    %v182 = vmul.f32 %v180, %v152
    %v183 = vmul.f32 %v181, 1.442695
    %v184 = vpow.pop %v183
    %v185 = vmul.f32 %v182, 1.442695
    %v186 = vpow.pop %v185
    %v187 = vmul.f32 %v177, %v184
    %v188 = vmul.f32 %v178, %v186
    %v189 = vsub.f32 1.0, %v187
    %v190 = vsub.f32 1.0, %v188
    %v191 = vmul.f32 %v149, %v189
    %v192 = vmul.f32 %v150, %v190
    %v193 = vadd.f32 %v191, 1.0
    %v194 = vadd.f32 %v192, 1.0
    %v195 = vmul.f32 %v143, %v193
    %v196 = vmul.f32 %v144, %v194
    %v197 = vpack.c.bf16 %v196, %v195
    %v199 = vunpack.c.l.b16 %v197
    %v200 = vunpack.c.h.b16 %v197
    %v201 = vpack.c.b16 %v199, %v199
    %v202 = vpack.c.b16 %v200, %v200
    %vm205 = vcmask 519168
    %206 = vst.msk [vmem:[%s3] sm:$0xf] %vm205, %v201
    %207 = vst.msk [vmem:[%s3 + $0x4] sm:$0xf] %vm205, %v202
  $region21: #{run.14} parent=0 // pred_fallthru
    _
  // Predicated region
  $region22: #{run.14} parent=0 // pred_check
    _
  $region23: #{run.14} parent=0 // pred_check_branch
    %209 = sbr.rel (0) target = $region25
  $region24: #{run.14} parent=0 // pred_region
    _
  $region25: #{run.14} parent=0 // pred_fallthru
    _
  // Predicated region
  $region26: #{run.14} parent=0 // pred_check
    _
  $region27: #{run.14} parent=0 // pred_check_branch
    %211 = sbr.rel (0) target = $region29
  $region28: #{run.14} parent=0 // pred_region
    _
  $region29: #{run.14} parent=0 // pred_fallthru
    _

// kernel: run.11
$region0: #{run.11}
  #allocation0 [shape = 'u32[]', space=smem, size = 0x4, offset = 0x4, fixed_abs, tag = 'smem constant byte address 0x4 - core index']
  #allocation1 [shape = 'u32[144,128]{1,0:T(1,128)}', space=vmem, size = 0x12000, scoped, tag = 'internal scratch']
  %s0 = inlined_call_operand.vmem [shape: f32[2,2,128,16], index: 0, kind: input, shape index: {}]
  %s1 = inlined_call_operand.vmem [shape: f32[2,2,128,16], index: 1, kind: input, shape index: {}, may-alias: {1,2}]
  %s2 = inlined_call_operand.vmem [shape: f32[2,2,128,16], index: 2, kind: input, shape index: {}, may-alias: {1,2}]
  %s3 = inlined_call_operand.vmem [shape: f32[2,2,8,16], index: 3, kind: input, shape index: {}]
  %s4 = inlined_call_operand.vmem [shape: s32[2,1,1,256], index: 4, kind: input, shape index: {}]
  %s5 = inlined_call_operand.vmem [shape: f32[4,16], index: 5, kind: input, shape index: {}]
  %s6 = inlined_call_operand.vmem [shape: f32[2,1,128,32], index: 6, kind: output, shape index: {}]
  %s7 = sld [smem:[#allocation0]]
  $region57: #{run.11} parent=0
    _
  %s9 = ssub.s32 1, %s7
  %s10 = scalar_select 0, %s9, %s7
  loop: start=0, step=1, limit=4
  $region2: #{run.11} parent=0 // loop_pre_header
    _
  $region3: #{run.11} parent=0 // loop_header
    %s12 = sphi 0, %s16
    %p13 = scmp.ge.s32.totalorder %s12, 4
    %s19 = sphi 0, %s31
    %s20 = sphi 0, %s27
    %s21 = sphi 0, %s19
    %s22 = sphi 0, %s20
    %s23 = sphi 0, %s21
    %s24 = sphi 0, %s22
    %s36 = sphi 0, %s38
    %s39 = sphi 0, %s36
    %s40 = sphi 0, %s39
    %s56 = sphi 0, %s40
    %s64 = sphi 0, %s66
    %s67 = sphi 0, %s64
    %s68 = sphi 0, %s67
    %s84 = sphi 0, %s68
    %s98 = sphi 0, %s100
    %s101 = sphi 0, %s98
    %s102 = sphi 0, %s101
    %s118 = sphi 0, %s102
    %s124 = sphi 0, %s126
    %s127 = sphi 0, %s124
    %s128 = sphi 0, %s127
    %s144 = sphi 0, %s128
    %s152 = sphi 0, %s154
    %s155 = sphi 0, %s152
    %s156 = sphi 0, %s155
    %s172 = sphi 0, %s156
    %s176 = sphi 0, %s176
    %s178 = sphi 0, %s176
    %s179 = sphi 0, %s178
    %s193 = sphi 0, %s179
    %s201 = sphi 0, %s203
    %s204 = sphi 0, %s201
    %s205 = sphi 0, %s204
    %s221 = sphi 0, %s205
  $region4: #{run.11} parent=0 // loop_header_branch
    %15 = sbr.rel (%p13) target = $region8
  $region5: #{run.11} parent=0 // loop_body
    %s17 = ssub.s32 %s12, 1
    %s18 = ssub.s32 %s12, 2
    %s25 = sadd.s32 1, %s20
    %p26 = scmp.ge.s32.totalorder %s25, 1
    %s27 = scalar_select %p26, 0, %s25
    %s28 = sadd.s32 1, %s19
    %s29 = scalar_select %p26, %s28, %s19
    %p30 = scmp.ge.s32.totalorder %s29, 2
    %s31 = scalar_select %p30, 0, %s29
    %s32 = ssub.s32 %s19, %s31
    %s33 = ssub.s32 %s20, %s27
    %s34 = sor.u32 %s32, %s33
    %p35 = scmp.eq.s32.totalorder %s34, 0
    %s37 = sadd.s32 %s36, 1
    %s38 = scalar_select %p35, %s36, %s37
    %p41 = pneg %p35
    %p42 = scmp.eq.s32.totalorder %s12, 1
    %p43 = por %p41, %p42
    %p44 = scmp.ne.s32.totalorder %s36, %s39
    %p45 = scmp.eq.s32.totalorder %s12, 0
    %p46 = por %p44, %p45
    %p47 = scmp.ne.s32.totalorder %s36, %s39
    %p48 = scmp.eq.s32.totalorder %s17, 1
    %p49 = por %p47, %p48
    %p50 = scmp.ne.s32.totalorder %s39, %s40
    %p51 = scmp.eq.s32.totalorder %s17, 0
    %p52 = por %p50, %p51
    %p53 = scmp.ne.s32.totalorder %s39, %s40
    %p54 = scmp.eq.s32.totalorder %s18, 1
    %p55 = por %p53, %p54
    %p57 = scmp.ne.s32.totalorder %s40, %s56
    %p58 = scmp.eq.s32.totalorder %s18, 0
    %p59 = por %p57, %p58
    %s60 = ssub.s32 %s19, %s31
    %s61 = ssub.s32 %s20, %s27
    %s62 = sor.u32 %s60, %s61
    %p63 = scmp.eq.s32.totalorder %s62, 0
    %s65 = sadd.s32 %s64, 1
    %s66 = scalar_select %p63, %s64, %s65
    %p69 = pneg %p63
    %p70 = scmp.eq.s32.totalorder %s12, 1
    %p71 = por %p69, %p70
    %p72 = scmp.ne.s32.totalorder %s64, %s67
    %p73 = scmp.eq.s32.totalorder %s12, 0
    %p74 = por %p72, %p73
    %p75 = scmp.ne.s32.totalorder %s64, %s67
    %p76 = scmp.eq.s32.totalorder %s17, 1
    %p77 = por %p75, %p76
    %p78 = scmp.ne.s32.totalorder %s67, %s68
    %p79 = scmp.eq.s32.totalorder %s17, 0
    %p80 = por %p78, %p79
    %p81 = scmp.ne.s32.totalorder %s67, %s68
    %p82 = scmp.eq.s32.totalorder %s18, 1
    %p83 = por %p81, %p82
    %p85 = scmp.ne.s32.totalorder %s68, %s84
    %p86 = scmp.eq.s32.totalorder %s18, 0
    %p87 = por %p85, %p86
    %s88 = ssub.s32 %s20, 1
    %p89 = scmp.gt.s32.totalorder %s88, 0
    %s90 = scalar_select %p89, %s88, 0
    %s91 = ssub.s32 %s27, 1
    %p92 = scmp.gt.s32.totalorder %s91, 0
    %s93 = scalar_select %p92, %s91, 0
    %s94 = ssub.s32 %s19, %s31
    %s95 = ssub.s32 %s90, %s93
    %s96 = sor.u32 %s94, %s95
    %p97 = scmp.eq.s32.totalorder %s96, 0
    %s99 = sadd.s32 %s98, 1
    %s100 = scalar_select %p97, %s98, %s99
    %p103 = pneg %p97
    %p104 = scmp.eq.s32.totalorder %s12, 1
    %p105 = por %p103, %p104
    %p106 = scmp.ne.s32.totalorder %s98, %s101
    %p107 = scmp.eq.s32.totalorder %s12, 0
    %p108 = por %p106, %p107
    %p109 = scmp.ne.s32.totalorder %s98, %s101
    %p110 = scmp.eq.s32.totalorder %s17, 1
    %p111 = por %p109, %p110
    %p112 = scmp.ne.s32.totalorder %s101, %s102
    %p113 = scmp.eq.s32.totalorder %s17, 0
    %p114 = por %p112, %p113
    %p115 = scmp.ne.s32.totalorder %s101, %s102
    %p116 = scmp.eq.s32.totalorder %s18, 1
    %p117 = por %p115, %p116
    %p119 = scmp.ne.s32.totalorder %s102, %s118
    %p120 = scmp.eq.s32.totalorder %s18, 0
    %p121 = por %p119, %p120
    %s122 = ssub.s32 %s19, %s31
    %p123 = scmp.eq.s32.totalorder %s122, 0
    %s125 = sadd.s32 %s124, 1
    %s126 = scalar_select %p123, %s124, %s125
    %p129 = pneg %p123
    %p130 = scmp.eq.s32.totalorder %s12, 1
    %p131 = por %p129, %p130
    %p132 = scmp.ne.s32.totalorder %s124, %s127
    %p133 = scmp.eq.s32.totalorder %s12, 0
    %p134 = por %p132, %p133
    %p135 = scmp.ne.s32.totalorder %s124, %s127
    %p136 = scmp.eq.s32.totalorder %s17, 1
    %p137 = por %p135, %p136
    %p138 = scmp.ne.s32.totalorder %s127, %s128
    %p139 = scmp.eq.s32.totalorder %s17, 0
    %p140 = por %p138, %p139
    %p141 = scmp.ne.s32.totalorder %s127, %s128
    %p142 = scmp.eq.s32.totalorder %s18, 1
    %p143 = por %p141, %p142
    %p145 = scmp.ne.s32.totalorder %s128, %s144
    %p146 = scmp.eq.s32.totalorder %s18, 0
    %p147 = por %p145, %p146
    %s148 = ssub.s32 %s19, %s31
    %s149 = ssub.s32 %s20, %s27
    %s150 = sor.u32 %s148, %s149
    %p151 = scmp.eq.s32.totalorder %s150, 0
    %s153 = sadd.s32 %s152, 1
    %s154 = scalar_select %p151, %s152, %s153
    %p157 = pneg %p151
    %p158 = scmp.eq.s32.totalorder %s12, 1
    %p159 = por %p157, %p158
    %p160 = scmp.ne.s32.totalorder %s152, %s155
    %p161 = scmp.eq.s32.totalorder %s12, 0
    %p162 = por %p160, %p161
    %p163 = scmp.ne.s32.totalorder %s152, %s155
    %p164 = scmp.eq.s32.totalorder %s17, 1
    %p165 = por %p163, %p164
    %p166 = scmp.ne.s32.totalorder %s155, %s156
    %p167 = scmp.eq.s32.totalorder %s17, 0
    %p168 = por %p166, %p167
    %p169 = scmp.ne.s32.totalorder %s155, %s156
    %p170 = scmp.eq.s32.totalorder %s18, 1
    %p171 = por %p169, %p170
    %p173 = scmp.ne.s32.totalorder %s156, %s172
    %p174 = scmp.eq.s32.totalorder %s18, 0
    %p175 = por %p173, %p174
    %s177 = sadd.s32 %s176, 1
    %p180 = scmp.eq.s32.totalorder %s12, 1
    %p181 = scmp.ne.s32.totalorder %s176, %s178
    %p182 = scmp.eq.s32.totalorder %s12, 0
    %p183 = por %p181, %p182
    %p184 = scmp.ne.s32.totalorder %s176, %s178
    %p185 = scmp.eq.s32.totalorder %s17, 1
    %p186 = por %p184, %p185
    %p187 = scmp.ne.s32.totalorder %s178, %s179
    %p188 = scmp.eq.s32.totalorder %s17, 0
    %p189 = por %p187, %p188
    %p190 = scmp.ne.s32.totalorder %s178, %s179
    %p191 = scmp.eq.s32.totalorder %s18, 1
    %p192 = por %p190, %p191
    %p194 = scmp.ne.s32.totalorder %s179, %s193
    %p195 = scmp.eq.s32.totalorder %s18, 0
    %p196 = por %p194, %p195
    %s197 = ssub.s32 %s19, %s31
    %s198 = ssub.s32 %s20, %s27
    %s199 = sor.u32 %s197, %s198
    %p200 = scmp.eq.s32.totalorder %s199, 0
    %s202 = sadd.s32 %s201, 1
    %s203 = scalar_select %p200, %s201, %s202
    %p206 = pneg %p200
    %p207 = scmp.eq.s32.totalorder %s12, 1
    %p208 = por %p206, %p207
    %p209 = scmp.ne.s32.totalorder %s201, %s204
    %p210 = scmp.eq.s32.totalorder %s12, 0
    %p211 = por %p209, %p210
    %p212 = scmp.ne.s32.totalorder %s201, %s204
    %p213 = scmp.eq.s32.totalorder %s17, 1
    %p214 = por %p212, %p213
    %p215 = scmp.ne.s32.totalorder %s204, %s205
    %p216 = scmp.eq.s32.totalorder %s17, 0
    %p217 = por %p215, %p216
    %p218 = scmp.ne.s32.totalorder %s204, %s205
    %p219 = scmp.eq.s32.totalorder %s18, 1
    %p220 = por %p218, %p219
    %p222 = scmp.ne.s32.totalorder %s205, %s221
    %p223 = scmp.eq.s32.totalorder %s18, 0
    %p224 = por %p222, %p223
    %p225 = scmp.le.s32.totalorder 1, %s12
    %p226 = scmp.lt.s32.totalorder %s12, 3
    %p227 = pnand %p225, %p226
    %p228 = pneg %p227
    // Predicated region
    $region9: #{run.11} parent=5 // pred_check
      _
    $region10: #{run.11} parent=5 // pred_check_branch
      %230 = sbr.rel (%p227) target = $region12
    $region11: #{run.11} parent=5 // pred_region
      %s231 = ssub.s32 %s12, 1
      // Predicated region
      $region13: #{run.11} parent=11 // pred_check
        %p232 = pneg %p189
      $region14: #{run.11} parent=11 // pred_check_branch
        %234 = sbr.rel (%p232) target = $region16
      $region15: #{run.11} parent=11 // pred_region
        _
      $region16: #{run.11} parent=11 // pred_fallthru
        _
    $region12: #{run.11} parent=5 // pred_fallthru
      _
    %p235 = scmp.lt.s32.totalorder %s12, 2
    // Predicated region
    $region17: #{run.11} parent=5 // pred_check
      %p236 = pneg %p235
    $region18: #{run.11} parent=5 // pred_check_branch
      %238 = sbr.rel (%p236) target = $region20
    $region19: #{run.11} parent=5 // pred_region
      // Predicated region
      $region21: #{run.11} parent=19 // pred_check
        %p239 = pneg %p46
      $region22: #{run.11} parent=19 // pred_check_branch
        %241 = sbr.rel (%p239) target = $region24
      $region23: #{run.11} parent=19 // pred_region
        %s242 = smul.u32 16, %s20
        %p243 = scmp.lt.s32.totalorder %s19, 1
        %s244 = scalar_select %p243, %s19, 1
        %p245 = scmp.lt.s32.totalorder %s242, 15
        %s246 = scalar_select %p245, %s242, 15
        %s247 = smul.addr %s244, 32
        %s248 = sadd.s32 %s246, %s247
        %s249 = smul.addr %s248, 8
        %s250 = scalar_lea.vmem %s0, %s249
        %s251 = smul.u32 16, %s20
      $region24: #{run.11} parent=19 // pred_fallthru
        _
      // Predicated region
      $region25: #{run.11} parent=19 // pred_check
        %p252 = pneg %p74
      $region26: #{run.11} parent=19 // pred_check_branch
        %254 = sbr.rel (%p252) target = $region28
      $region27: #{run.11} parent=19 // pred_region
        %s255 = smul.u32 16, %s20
        %p256 = scmp.lt.s32.totalorder %s19, 1
        %s257 = scalar_select %p256, %s19, 1
        %p258 = scmp.lt.s32.totalorder %s255, 15
        %s259 = scalar_select %p258, %s255, 15
        %s260 = smul.addr %s257, 32
        %s261 = sadd.s32 %s259, %s260
        %s262 = smul.addr %s261, 8
        %s263 = scalar_lea.vmem %s1, %s262
        %s264 = smul.u32 16, %s20
      $region28: #{run.11} parent=19 // pred_fallthru
        _
      // Predicated region
      $region29: #{run.11} parent=19 // pred_check
        %p265 = pneg %p108
      $region30: #{run.11} parent=19 // pred_check_branch
        %267 = sbr.rel (%p265) target = $region32
      $region31: #{run.11} parent=19 // pred_region
        %s268 = ssub.s32 %s20, 1
        %p269 = scmp.gt.s32.totalorder %s268, 0
        %s270 = scalar_select %p269, %s268, 0
        %s271 = smul.u32 16, %s270
        %p272 = scmp.lt.s32.totalorder %s19, 1
        %s273 = scalar_select %p272, %s19, 1
        %p274 = scmp.lt.s32.totalorder %s271, 15
        %s275 = scalar_select %p274, %s271, 15
        %s276 = smul.addr %s273, 32
        %s277 = sadd.s32 %s275, %s276
        %s278 = smul.addr %s277, 8
        %s279 = scalar_lea.vmem %s2, %s278
        %s280 = ssub.s32 %s20, 1
        %p281 = scmp.gt.s32.totalorder %s280, 0
        %s282 = scalar_select %p281, %s280, 0
        %s283 = smul.u32 16, %s282
      $region32: #{run.11} parent=19 // pred_fallthru
        _
      // Predicated region
      $region33: #{run.11} parent=19 // pred_check
        %p284 = pneg %p134
      $region34: #{run.11} parent=19 // pred_check_branch
        %286 = sbr.rel (%p284) target = $region36
      $region35: #{run.11} parent=19 // pred_region
        %p287 = scmp.lt.s32.totalorder %s19, 1
        %s288 = scalar_select %p287, %s19, 1
        %s289 = smul.addr %s288, 2
        %s290 = smul.addr %s289, 8
        %s291 = scalar_lea.vmem %s3, %s290
      $region36: #{run.11} parent=19 // pred_fallthru
        _
      // Predicated region
      $region37: #{run.11} parent=19 // pred_check
        %p292 = pneg %p162
      $region38: #{run.11} parent=19 // pred_check_branch
        %294 = sbr.rel (%p292) target = $region40
      $region39: #{run.11} parent=19 // pred_region
        %p295 = scmp.lt.s32.totalorder %s19, 1
        %s296 = scalar_select %p295, %s19, 1
        %p297 = scmp.lt.s32.totalorder %s20, 0
        %s298 = scalar_select %p297, %s20, 0
        %s299 = smul.addr %s298, 2
        %s300 = smul.addr %s296, 2
        %s301 = sadd.s32 %s299, %s300
        %s302 = scalar_lea.vmem %s4, %s301
      $region40: #{run.11} parent=19 // pred_fallthru
        _
    $region20: #{run.11} parent=5 // pred_fallthru
      _
    %p303 = scmp.le.s32.totalorder 1, %s12
    %p304 = scmp.lt.s32.totalorder %s12, 3
    %p305 = pnand %p303, %p304
    %p306 = pneg %p305
    // Predicated region
    $region41: #{run.11} parent=5 // pred_check
      _
    $region42: #{run.11} parent=5 // pred_check_branch
      %308 = sbr.rel (%p305) target = $region44
    $region43: #{run.11} parent=5 // pred_region
      %s309 = ssub.s32 %s12, 1
      %s310 = smul.u32 16, %s22
      %p311 = scmp.lt.s32.totalorder %s21, 1
      %s312 = scalar_select %p311, %s21, 1
      %p313 = scmp.lt.s32.totalorder %s310, 15
      %s314 = scalar_select %p313, %s310, 15
      %s315 = smul.addr %s312, 32
      %s316 = sadd.s32 %s314, %s315
      %s317 = smul.addr %s316, 8
      %s318 = scalar_lea.vmem %s0, %s317
      %p319 = pneg %p52
      %p320 = pneg %p49
      %s321 = smul.u32 16, %s22
      %p322 = scmp.lt.s32.totalorder %s21, 1
      %s323 = scalar_select %p322, %s21, 1
      %p324 = scmp.lt.s32.totalorder %s321, 15
      %s325 = scalar_select %p324, %s321, 15
      %s326 = smul.addr %s323, 32
      %s327 = sadd.s32 %s325, %s326
      %s328 = smul.addr %s327, 8
      %s329 = scalar_lea.vmem %s1, %s328
      %p330 = pneg %p80
      %p331 = pneg %p77
      %s332 = ssub.s32 %s22, 1
      %p333 = scmp.gt.s32.totalorder %s332, 0
      %s334 = scalar_select %p333, %s332, 0
      %s335 = smul.u32 16, %s334
      %p336 = scmp.lt.s32.totalorder %s21, 1
      %s337 = scalar_select %p336, %s21, 1
      %p338 = scmp.lt.s32.totalorder %s335, 15
      %s339 = scalar_select %p338, %s335, 15
      %s340 = smul.addr %s337, 32
      %s341 = sadd.s32 %s339, %s340
      %s342 = smul.addr %s341, 8
      %s343 = scalar_lea.vmem %s2, %s342
      %p344 = pneg %p114
      %p345 = pneg %p111
      %p346 = scmp.lt.s32.totalorder %s21, 1
      %s347 = scalar_select %p346, %s21, 1
      %s348 = smul.addr %s347, 2
      %s349 = smul.addr %s348, 8
      %s350 = scalar_lea.vmem %s3, %s349
      %p351 = pneg %p140
      %p352 = pneg %p137
      %p353 = scmp.lt.s32.totalorder %s21, 1
      %s354 = scalar_select %p353, %s21, 1
      %p355 = scmp.lt.s32.totalorder %s22, 0
      %s356 = scalar_select %p355, %s22, 0
      %s357 = smul.addr %s356, 2
      %s358 = smul.addr %s354, 2
      %s359 = sadd.s32 %s357, %s358
      %s360 = scalar_lea.vmem %s4, %s359
      %p361 = pneg %p168
      %p362 = pneg %p165
      %p363 = pneg %p189
      %p364 = pneg %p186
      %p365 = pneg %p217
      %p366 = pneg %p214
      %p367 = scmp.lt.s32.totalorder %s21, 1
      %s368 = scalar_select %p367, %s21, 1
      %p369 = scmp.lt.s32.totalorder %s22, 0
      %s370 = scalar_select %p369, %s22, 0
      %s371 = smul.addr %s370, 16
      %s372 = smul.addr %s368, 16
      %s373 = sadd.s32 %s371, %s372
      %s374 = smul.addr %s373, 8
      %s375 = scalar_lea.vmem %s6, %s374
      %s376 = smul.u32 16, %s22
      %p377 = scmp.lt.s32.totalorder %s21, 1
      %s378 = scalar_select %p377, %s21, 1
      %p379 = scmp.lt.s32.totalorder %s376, 15
      %s380 = scalar_select %p379, %s376, 15
      %s381 = smul.addr %s378, 32
      %s382 = sadd.s32 %s380, %s381
      %s383 = smul.addr %s382, 8
      %s384 = scalar_lea.vmem %s0, %s383
      %s385 = smul.u32 16, %s22
      %s386 = smul.u32 16, %s22
      %p387 = scmp.lt.s32.totalorder %s21, 1
      %s388 = scalar_select %p387, %s21, 1
      %p389 = scmp.lt.s32.totalorder %s386, 15
      %s390 = scalar_select %p389, %s386, 15
      %s391 = smul.addr %s388, 32
      %s392 = sadd.s32 %s390, %s391
      %s393 = smul.addr %s392, 8
      %s394 = scalar_lea.vmem %s1, %s393
      %s395 = smul.u32 16, %s22
      %s396 = ssub.s32 %s22, 1
      %p397 = scmp.gt.s32.totalorder %s396, 0
      %s398 = scalar_select %p397, %s396, 0
      %s399 = smul.u32 16, %s398
      %p400 = scmp.lt.s32.totalorder %s21, 1
      %s401 = scalar_select %p400, %s21, 1
      %p402 = scmp.lt.s32.totalorder %s399, 15
      %s403 = scalar_select %p402, %s399, 15
      %s404 = smul.addr %s401, 32
      %s405 = sadd.s32 %s403, %s404
      %s406 = smul.addr %s405, 8
      %s407 = scalar_lea.vmem %s2, %s406
      %s408 = ssub.s32 %s22, 1
      %p409 = scmp.gt.s32.totalorder %s408, 0
      %s410 = scalar_select %p409, %s408, 0
      %s411 = smul.u32 16, %s410
      %p412 = scmp.lt.s32.totalorder %s21, 1
      %s413 = scalar_select %p412, %s21, 1
      %s414 = smul.addr %s413, 2
      %s415 = smul.addr %s414, 8
      %s416 = scalar_lea.vmem %s3, %s415
      %p417 = scmp.lt.s32.totalorder %s21, 1
      %s418 = scalar_select %p417, %s21, 1
      %p419 = scmp.lt.s32.totalorder %s22, 0
      %s420 = scalar_select %p419, %s22, 0
      %s421 = smul.addr %s420, 2
      %s422 = smul.addr %s418, 2
      %s423 = sadd.s32 %s421, %s422
      %s424 = scalar_lea.vmem %s4, %s423
      %p425 = scmp.lt.s32.totalorder %s21, 1
      %s426 = scalar_select %p425, %s21, 1
      %p427 = scmp.lt.s32.totalorder %s22, 0
      %s428 = scalar_select %p427, %s22, 0
      %s429 = smul.addr %s428, 16
      %s430 = smul.addr %s426, 16
      %s431 = sadd.s32 %s429, %s430
      %s432 = smul.addr %s431, 8
      %s433 = scalar_lea.vmem %s6, %s432
      %v435 = vlaneseq
      %v436 = vshrl.u32 %v435, 7
      %v437 = vadd.s32 %v436, 8
      %v438 = vadd.s32 %v436, 16
      %v439 = vadd.s32 %v436, 24
      %v440 = vadd.s32 %v436, 32
      %v441 = vadd.s32 %v436, 40
      %v442 = vadd.s32 %v436, 48
      %v443 = vadd.s32 %v436, 56
      %v444 = vadd.s32 %v436, 64
      %v445 = vadd.s32 %v436, 72
      %v446 = vadd.s32 %v436, 80
      %v447 = vadd.s32 %v436, 88
      %v448 = vadd.s32 %v436, 96
      %v449 = vadd.s32 %v436, 104
      %v450 = vadd.s32 %v436, 112
      %v451 = vadd.s32 %v436, 120
      %v452 = vlaneseq
      %v453 = vand.u32 %v452, 127
      %v454 = vadd.s32 %v453, 128
      %v455 = vsub.s32 %v453, %v436
      %v456 = vsub.s32 %v454, %v436
      %v457 = vsub.s32 %v453, %v437
      %v458 = vsub.s32 %v454, %v437
      %v459 = vsub.s32 %v453, %v438
      %v460 = vsub.s32 %v454, %v438
      %v461 = vsub.s32 %v453, %v439
      %v462 = vsub.s32 %v454, %v439
      %v463 = vsub.s32 %v453, %v440
      %v464 = vsub.s32 %v454, %v440
      %v465 = vsub.s32 %v453, %v441
      %v466 = vsub.s32 %v454, %v441
      %v467 = vsub.s32 %v453, %v442
      %v468 = vsub.s32 %v454, %v442
      %v469 = vsub.s32 %v453, %v443
      %v470 = vsub.s32 %v454, %v443
      %v471 = vsub.s32 %v453, %v444
      %v472 = vsub.s32 %v454, %v444
      %v473 = vsub.s32 %v453, %v445
      %v474 = vsub.s32 %v454, %v445
      %v475 = vsub.s32 %v453, %v446
      %v476 = vsub.s32 %v454, %v446
      %v477 = vsub.s32 %v453, %v447
      %v478 = vsub.s32 %v454, %v447
      %v479 = vsub.s32 %v453, %v448
      %v480 = vsub.s32 %v454, %v448
      %v481 = vsub.s32 %v453, %v449
      %v482 = vsub.s32 %v454, %v449
      %v483 = vsub.s32 %v453, %v450
      %v484 = vsub.s32 %v454, %v450
      %v485 = vsub.s32 %v453, %v451
      %v486 = vsub.s32 %v454, %v451
      %vm487 = vcmp.lt.s32.totalorder %v455, 129
      %vm488 = vcmp.lt.s32.totalorder %v456, 129
      %vm489 = vcmp.lt.s32.totalorder %v457, 129
      %vm490 = vcmp.lt.s32.totalorder %v458, 129
      %vm491 = vcmp.lt.s32.totalorder %v459, 129
      %vm492 = vcmp.lt.s32.totalorder %v460, 129
      %vm493 = vcmp.lt.s32.totalorder %v461, 129
      %vm494 = vcmp.lt.s32.totalorder %v462, 129
      %vm495 = vcmp.lt.s32.totalorder %v463, 129
      %vm496 = vcmp.lt.s32.totalorder %v464, 129
      %vm497 = vcmp.lt.s32.totalorder %v465, 129
      %vm498 = vcmp.lt.s32.totalorder %v466, 129
      %vm499 = vcmp.lt.s32.totalorder %v467, 129
      %vm500 = vcmp.lt.s32.totalorder %v468, 129
      %vm501 = vcmp.lt.s32.totalorder %v469, 129
      %vm502 = vcmp.lt.s32.totalorder %v470, 129
      %vm503 = vcmp.lt.s32.totalorder %v471, 129
      %vm504 = vcmp.lt.s32.totalorder %v472, 129
      %vm505 = vcmp.lt.s32.totalorder %v473, 129
      %vm506 = vcmp.lt.s32.totalorder %v474, 129
      %vm507 = vcmp.lt.s32.totalorder %v475, 129
      %vm508 = vcmp.lt.s32.totalorder %v476, 129
      %vm509 = vcmp.lt.s32.totalorder %v477, 129
      %vm510 = vcmp.lt.s32.totalorder %v478, 129
      %vm511 = vcmp.lt.s32.totalorder %v479, 129
      %vm512 = vcmp.lt.s32.totalorder %v480, 129
      %vm513 = vcmp.lt.s32.totalorder %v481, 129
      %vm514 = vcmp.lt.s32.totalorder %v482, 129
      %vm515 = vcmp.lt.s32.totalorder %v483, 129
      %vm516 = vcmp.lt.s32.totalorder %v484, 129
      %vm517 = vcmp.lt.s32.totalorder %v485, 129
      %vm518 = vcmp.lt.s32.totalorder %v486, 129
      %s519 = smul.u32 %s22, 128
      %v520 = vstv %s519
      %v521 = vadd.s32 %v453, %v520
      %v522 = vadd.s32 %v454, %v520
      %vm523 = vcmp.ge.s32.totalorder %v521, 128
      %vm524 = vcmp.ge.s32.totalorder %v522, 128
      %v525 = vld [vmem:[%s424] sm:$0x3]
      %vm526 = vcmp.ne.s32.totalorder %v525, 0
      %vm527 = vmand %vm487, %vm523
      %vm528 = vmand %vm488, %vm524
      %vm529 = vmand %vm489, %vm523
      %vm530 = vmand %vm490, %vm524
      %vm531 = vmand %vm491, %vm523
      %vm532 = vmand %vm492, %vm524
      %vm533 = vmand %vm493, %vm523
      %vm534 = vmand %vm494, %vm524
      %vm535 = vmand %vm495, %vm523
      %vm536 = vmand %vm496, %vm524
      %vm537 = vmand %vm497, %vm523
      %vm538 = vmand %vm498, %vm524
      %vm539 = vmand %vm499, %vm523
      %vm540 = vmand %vm500, %vm524
      %vm541 = vmand %vm501, %vm523
      %vm542 = vmand %vm502, %vm524
      %vm543 = vmand %vm503, %vm523
      %vm544 = vmand %vm504, %vm524
      %vm545 = vmand %vm505, %vm523
      %vm546 = vmand %vm506, %vm524
      %vm547 = vmand %vm507, %vm523
      %vm548 = vmand %vm508, %vm524
      %vm549 = vmand %vm509, %vm523
      %vm550 = vmand %vm510, %vm524
      %vm551 = vmand %vm511, %vm523
      %vm552 = vmand %vm512, %vm524
      %vm553 = vmand %vm513, %vm523
      %vm554 = vmand %vm514, %vm524
      %vm555 = vmand %vm515, %vm523
      %vm556 = vmand %vm516, %vm524
      %vm557 = vmand %vm517, %vm523
      %vm558 = vmand %vm518, %vm524
      %v559 = vsel %vm526, 1, 0
      %v560 = vlaneseq
      %v561 = vshrl.u32 %v560, 7
      %v562 = vsub.s32 0, %v561
      %v563 = vrot.slane %v559, %v562
      %v564 = vlaneseq
      %v565 = vshrl.u32 %v564, 7
      %v566 = vsub.s32 1, %v565
      %v567 = vrot.slane %v559, %v566
      %vm568 = vcmp.eq.s32.totalorder %v563, 1
      %vm569 = vcmp.eq.s32.totalorder %v567, 1
      %vm570 = vmand %vm527, %vm568
      %vm571 = vmand %vm528, %vm569
      %vm572 = vmand %vm529, %vm568
      %vm573 = vmand %vm530, %vm569
      %vm574 = vmand %vm531, %vm568
      %vm575 = vmand %vm532, %vm569
      %vm576 = vmand %vm533, %vm568
      %vm577 = vmand %vm534, %vm569
      %vm578 = vmand %vm535, %vm568
      %vm579 = vmand %vm536, %vm569
      %vm580 = vmand %vm537, %vm568
      %vm581 = vmand %vm538, %vm569
      %vm582 = vmand %vm539, %vm568
      %vm583 = vmand %vm540, %vm569
      %vm584 = vmand %vm541, %vm568
      %vm585 = vmand %vm542, %vm569
      %vm586 = vmand %vm543, %vm568
      %vm587 = vmand %vm544, %vm569
      %vm588 = vmand %vm545, %vm568
      %vm589 = vmand %vm546, %vm569
      %vm590 = vmand %vm547, %vm568
      %vm591 = vmand %vm548, %vm569
      %vm592 = vmand %vm549, %vm568
      %vm593 = vmand %vm550, %vm569
      %vm594 = vmand %vm551, %vm568
      %vm595 = vmand %vm552, %vm569
      %vm596 = vmand %vm553, %vm568
      %vm597 = vmand %vm554, %vm569
      %vm598 = vmand %vm555, %vm568
      %vm599 = vmand %vm556, %vm569
      %vm600 = vmand %vm557, %vm568
      %vm601 = vmand %vm558, %vm569
      %v602 = vadd.s32 %v436, %v520
      %v603 = vadd.s32 %v437, %v520
      %v604 = vadd.s32 %v438, %v520
      %v605 = vadd.s32 %v439, %v520
      %v606 = vadd.s32 %v440, %v520
      %v607 = vadd.s32 %v441, %v520
      %v608 = vadd.s32 %v442, %v520
      %v609 = vadd.s32 %v443, %v520
      %v610 = vadd.s32 %v444, %v520
      %v611 = vadd.s32 %v445, %v520
      %v612 = vadd.s32 %v446, %v520
      %v613 = vadd.s32 %v447, %v520
      %v614 = vadd.s32 %v448, %v520
      %v615 = vadd.s32 %v449, %v520
      %v616 = vadd.s32 %v450, %v520
      %v617 = vadd.s32 %v451, %v520
      %v618 = vadd.s32 %v453, 1
      %v619 = vmul.u32 %v618, 16
      %v620 = vsub.s32 %v619, 1
      %vm621 = vcmp.ge.s32.totalorder %v602, %v620
      %vm622 = vcmp.ge.s32.totalorder %v603, %v620
      %vm623 = vcmp.ge.s32.totalorder %v604, %v620
      %vm624 = vcmp.ge.s32.totalorder %v605, %v620
      %vm625 = vcmp.ge.s32.totalorder %v606, %v620
      %vm626 = vcmp.ge.s32.totalorder %v607, %v620
      %vm627 = vcmp.ge.s32.totalorder %v608, %v620
      %vm628 = vcmp.ge.s32.totalorder %v609, %v620
      %vm629 = vcmp.ge.s32.totalorder %v610, %v620
      %vm630 = vcmp.ge.s32.totalorder %v611, %v620
      %vm631 = vcmp.ge.s32.totalorder %v612, %v620
      %vm632 = vcmp.ge.s32.totalorder %v613, %v620
      %vm633 = vcmp.ge.s32.totalorder %v614, %v620
      %vm634 = vcmp.ge.s32.totalorder %v615, %v620
      %vm635 = vcmp.ge.s32.totalorder %v616, %v620
      %vm636 = vcmp.ge.s32.totalorder %v617, %v620
      %v637 = vld [vmem:[%s5] sm:$0x1]
      %v638 = vld [vmem:[%s5 + $0x1] sm:$0x1]
      %v639 = vld [vmem:[%s5 + $0x2] sm:$0x1]
      %v640 = vld [vmem:[%s5 + $0x3] sm:$0x1]
      %p641 = scmp.lt.s32.totalorder %s22, 1
      %s642 = scalar_select %p641, %s22, 1
      %s643 = scvt.s32.f32 %s642
      %v644 = vld [vmem:[%s384] sm:$0xff]
      %v645 = vld [vmem:[%s384 + $0x8] sm:$0xff]
      %v646 = vld [vmem:[%s384 + $0x10] sm:$0xff]
      %v647 = vld [vmem:[%s384 + $0x18] sm:$0xff]
      %v648 = vld [vmem:[%s384 + $0x20] sm:$0xff]
      %v649 = vld [vmem:[%s384 + $0x28] sm:$0xff]
      %v650 = vld [vmem:[%s384 + $0x30] sm:$0xff]
      %v651 = vld [vmem:[%s384 + $0x38] sm:$0xff]
      %v652 = vld [vmem:[%s384 + $0x40] sm:$0xff]
      %v653 = vld [vmem:[%s384 + $0x48] sm:$0xff]
      %v654 = vld [vmem:[%s384 + $0x50] sm:$0xff]
      %v655 = vld [vmem:[%s384 + $0x58] sm:$0xff]
      %v656 = vld [vmem:[%s384 + $0x60] sm:$0xff]
      %v657 = vld [vmem:[%s384 + $0x68] sm:$0xff]
      %v658 = vld [vmem:[%s384 + $0x70] sm:$0xff]
      %v659 = vld [vmem:[%s384 + $0x78] sm:$0xff]
      %v660 = vld [vmem:[%s394] sm:$0xff]
      %v661 = vld [vmem:[%s394 + $0x8] sm:$0xff]
      %v662 = vld [vmem:[%s394 + $0x10] sm:$0xff]
      %v663 = vld [vmem:[%s394 + $0x18] sm:$0xff]
      %v664 = vld [vmem:[%s394 + $0x20] sm:$0xff]
      %v665 = vld [vmem:[%s394 + $0x28] sm:$0xff]
      %v666 = vld [vmem:[%s394 + $0x30] sm:$0xff]
      %v667 = vld [vmem:[%s394 + $0x38] sm:$0xff]
      %v668 = vld [vmem:[%s394 + $0x40] sm:$0xff]
      %v669 = vld [vmem:[%s394 + $0x48] sm:$0xff]
      %v670 = vld [vmem:[%s394 + $0x50] sm:$0xff]
      %v671 = vld [vmem:[%s394 + $0x58] sm:$0xff]
      %v672 = vld [vmem:[%s394 + $0x60] sm:$0xff]
      %v673 = vld [vmem:[%s394 + $0x68] sm:$0xff]
      %v674 = vld [vmem:[%s394 + $0x70] sm:$0xff]
      %v675 = vld [vmem:[%s394 + $0x78] sm:$0xff]
      %v676 = vld [vmem:[%s407] sm:$0xff]
      %v677 = vld [vmem:[%s407 + $0x8] sm:$0xff]
      %v678 = vld [vmem:[%s407 + $0x10] sm:$0xff]
      %v679 = vld [vmem:[%s407 + $0x18] sm:$0xff]
      %v680 = vld [vmem:[%s407 + $0x20] sm:$0xff]
      %v681 = vld [vmem:[%s407 + $0x28] sm:$0xff]
      %v682 = vld [vmem:[%s407 + $0x30] sm:$0xff]
      %v683 = vld [vmem:[%s407 + $0x38] sm:$0xff]
      %v684 = vld [vmem:[%s407 + $0x40] sm:$0xff]
      %v685 = vld [vmem:[%s407 + $0x48] sm:$0xff]
      %v686 = vld [vmem:[%s407 + $0x50] sm:$0xff]
      %v687 = vld [vmem:[%s407 + $0x58] sm:$0xff]
      %v688 = vld [vmem:[%s407 + $0x60] sm:$0xff]
      %v689 = vld [vmem:[%s407 + $0x68] sm:$0xff]
      %v690 = vld [vmem:[%s407 + $0x70] sm:$0xff]
      %v691 = vld [vmem:[%s407 + $0x78] sm:$0xff]
      %v692 = vstv %s643
      %v693 = vmul.f32 %v676, %v692
      %v694 = vmul.f32 %v677, %v692
      %v695 = vmul.f32 %v678, %v692
      %v696 = vmul.f32 %v679, %v692
      %v697 = vmul.f32 %v680, %v692
      %v698 = vmul.f32 %v681, %v692
      %v699 = vmul.f32 %v682, %v692
      %v700 = vmul.f32 %v683, %v692
      %v701 = vmul.f32 %v684, %v692
      %v702 = vmul.f32 %v685, %v692
      %v703 = vmul.f32 %v686, %v692
      %v704 = vmul.f32 %v687, %v692
      %v705 = vmul.f32 %v688, %v692
      %v706 = vmul.f32 %v689, %v692
      %v707 = vmul.f32 %v690, %v692
      %v708 = vmul.f32 %v691, %v692
      %s709 = ssub.f32 %s643, 1.0
      %v710 = vstv %s709
      %v711 = vadd.f32 %v693, %v710
      %v712 = vadd.f32 %v694, %v710
      %v713 = vadd.f32 %v695, %v710
      %v714 = vadd.f32 %v696, %v710
      %v715 = vadd.f32 %v697, %v710
      %v716 = vadd.f32 %v698, %v710
      %v717 = vadd.f32 %v699, %v710
      %v718 = vadd.f32 %v700, %v710
      %v719 = vadd.f32 %v701, %v710
      %v720 = vadd.f32 %v702, %v710
      %v721 = vadd.f32 %v703, %v710
      %v722 = vadd.f32 %v704, %v710
      %v723 = vadd.f32 %v705, %v710
      %v724 = vadd.f32 %v706, %v710
      %v725 = vadd.f32 %v707, %v710
      %v726 = vadd.f32 %v708, %v710
      %vm727 = vcmask 130048
      %v728 = vsel %vm727, %v711, 0.0
      %729 = vadd.xlane.f32.xlu0 %v728
      %v730 = vpop.xlane.xlu0 %729
      %v731 = vsel %vm727, %v712, 0.0
      %732 = vadd.xlane.f32.xlu0 %v731
      %v733 = vpop.xlane.xlu0 %732
      %v734 = vsel %vm727, %v713, 0.0
      %735 = vadd.xlane.f32.xlu0 %v734
      %v736 = vpop.xlane.xlu0 %735
      %v737 = vsel %vm727, %v714, 0.0
      %738 = vadd.xlane.f32.xlu0 %v737
      %v739 = vpop.xlane.xlu0 %738
      %v740 = vsel %vm727, %v715, 0.0
      %741 = vadd.xlane.f32.xlu0 %v740
      %v742 = vpop.xlane.xlu0 %741
      %v743 = vsel %vm727, %v716, 0.0
      %744 = vadd.xlane.f32.xlu0 %v743
      %v745 = vpop.xlane.xlu0 %744
      %v746 = vsel %vm727, %v717, 0.0
      %747 = vadd.xlane.f32.xlu0 %v746
      %v748 = vpop.xlane.xlu0 %747
      %v749 = vsel %vm727, %v718, 0.0
      %750 = vadd.xlane.f32.xlu0 %v749
      %v751 = vpop.xlane.xlu0 %750
      %v752 = vsel %vm727, %v719, 0.0
      %753 = vadd.xlane.f32.xlu0 %v752
      %v754 = vpop.xlane.xlu0 %753
      %v755 = vsel %vm727, %v720, 0.0
      %756 = vadd.xlane.f32.xlu0 %v755
      %v757 = vpop.xlane.xlu0 %756
      %v758 = vsel %vm727, %v721, 0.0
      %759 = vadd.xlane.f32.xlu0 %v758
      %v760 = vpop.xlane.xlu0 %759
      %v761 = vsel %vm727, %v722, 0.0
      %762 = vadd.xlane.f32.xlu0 %v761
      %v763 = vpop.xlane.xlu0 %762
      %v764 = vsel %vm727, %v723, 0.0
      %765 = vadd.xlane.f32.xlu0 %v764
      %v766 = vpop.xlane.xlu0 %765
      %v767 = vsel %vm727, %v724, 0.0
      %768 = vadd.xlane.f32.xlu0 %v767
      %v769 = vpop.xlane.xlu0 %768
      %v770 = vsel %vm727, %v725, 0.0
      %771 = vadd.xlane.f32.xlu0 %v770
      %v772 = vpop.xlane.xlu0 %771
      %v773 = vsel %vm727, %v726, 0.0
      %774 = vadd.xlane.f32.xlu0 %v773
      %v775 = vpop.xlane.xlu0 %774
      %v776 = vsel %vm727, %v660, 0.0
      %777 = vadd.xlane.f32.xlu0 %v776
      %v778 = vpop.xlane.xlu0 %777
      %v779 = vsel %vm727, %v661, 0.0
      %780 = vadd.xlane.f32.xlu0 %v779
      %v781 = vpop.xlane.xlu0 %780
      %v782 = vsel %vm727, %v662, 0.0
      %783 = vadd.xlane.f32.xlu0 %v782
      %v784 = vpop.xlane.xlu0 %783
      %v785 = vsel %vm727, %v663, 0.0
      %786 = vadd.xlane.f32.xlu0 %v785
      %v787 = vpop.xlane.xlu0 %786
      %v788 = vsel %vm727, %v664, 0.0
      %789 = vadd.xlane.f32.xlu0 %v788
      %v790 = vpop.xlane.xlu0 %789
      %v791 = vsel %vm727, %v665, 0.0
      %792 = vadd.xlane.f32.xlu0 %v791
      %v793 = vpop.xlane.xlu0 %792
      %v794 = vsel %vm727, %v666, 0.0
      %795 = vadd.xlane.f32.xlu0 %v794
      %v796 = vpop.xlane.xlu0 %795
      %v797 = vsel %vm727, %v667, 0.0
      %798 = vadd.xlane.f32.xlu0 %v797
      %v799 = vpop.xlane.xlu0 %798
      %v800 = vsel %vm727, %v668, 0.0
      %801 = vadd.xlane.f32.xlu0 %v800
      %v802 = vpop.xlane.xlu0 %801
      %v803 = vsel %vm727, %v669, 0.0
      %804 = vadd.xlane.f32.xlu0 %v803
      %v805 = vpop.xlane.xlu0 %804
      %v806 = vsel %vm727, %v670, 0.0
      %807 = vadd.xlane.f32.xlu0 %v806
      %v808 = vpop.xlane.xlu0 %807
      %v809 = vsel %vm727, %v671, 0.0
      %810 = vadd.xlane.f32.xlu0 %v809
      %v811 = vpop.xlane.xlu0 %810
      %v812 = vsel %vm727, %v672, 0.0
      %813 = vadd.xlane.f32.xlu0 %v812
      %v814 = vpop.xlane.xlu0 %813
      %v815 = vsel %vm727, %v673, 0.0
      %816 = vadd.xlane.f32.xlu0 %v815
      %v817 = vpop.xlane.xlu0 %816
      %v818 = vsel %vm727, %v674, 0.0
      %819 = vadd.xlane.f32.xlu0 %v818
      %v820 = vpop.xlane.xlu0 %819
      %v821 = vsel %vm727, %v675, 0.0
      %822 = vadd.xlane.f32.xlu0 %v821
      %v823 = vpop.xlane.xlu0 %822
      %v824 = vrcp.pop 16.0
      %v825 = vmul.f32 %v730, %v824
      %v826 = vmul.f32 %v733, %v824
      %v827 = vmul.f32 %v736, %v824
      %v828 = vmul.f32 %v739, %v824
      %v829 = vmul.f32 %v742, %v824
      %v830 = vmul.f32 %v745, %v824
      %v831 = vmul.f32 %v748, %v824
      %v832 = vmul.f32 %v751, %v824
      %v833 = vmul.f32 %v754, %v824
      %v834 = vmul.f32 %v757, %v824
      %v835 = vmul.f32 %v760, %v824
      %v836 = vmul.f32 %v763, %v824
      %v837 = vmul.f32 %v766, %v824
      %v838 = vmul.f32 %v769, %v824
      %v839 = vmul.f32 %v772, %v824
      %v840 = vmul.f32 %v775, %v824
      %v841 = vmul.f32 %v778, %v824
      %v842 = vmul.f32 %v781, %v824
      %v843 = vmul.f32 %v784, %v824
      %v844 = vmul.f32 %v787, %v824
      %v845 = vmul.f32 %v790, %v824
      %v846 = vmul.f32 %v793, %v824
      %v847 = vmul.f32 %v796, %v824
      %v848 = vmul.f32 %v799, %v824
      %v849 = vmul.f32 %v802, %v824
      %v850 = vmul.f32 %v805, %v824
      %v851 = vmul.f32 %v808, %v824
      %v852 = vmul.f32 %v811, %v824
      %v853 = vmul.f32 %v814, %v824
      %v854 = vmul.f32 %v817, %v824
      %v855 = vmul.f32 %v820, %v824
      %v856 = vmul.f32 %v823, %v824
      %v857 = vsub.f32 %v711, %v825
      %v858 = vsub.f32 %v712, %v826
      %v859 = vsub.f32 %v713, %v827
      %v860 = vsub.f32 %v714, %v828
      %v861 = vsub.f32 %v715, %v829
      %v862 = vsub.f32 %v716, %v830
      %v863 = vsub.f32 %v717, %v831
      %v864 = vsub.f32 %v718, %v832
      %v865 = vsub.f32 %v719, %v833
      %v866 = vsub.f32 %v720, %v834
      %v867 = vsub.f32 %v721, %v835
      %v868 = vsub.f32 %v722, %v836
      %v869 = vsub.f32 %v723, %v837
      %v870 = vsub.f32 %v724, %v838
      %v871 = vsub.f32 %v725, %v839
      %v872 = vsub.f32 %v726, %v840
      %v873 = vsub.f32 %v660, %v841
      %v874 = vsub.f32 %v661, %v842
      %v875 = vsub.f32 %v662, %v843
      %v876 = vsub.f32 %v663, %v844
      %v877 = vsub.f32 %v664, %v845
      %v878 = vsub.f32 %v665, %v846
      %v879 = vsub.f32 %v666, %v847
      %v880 = vsub.f32 %v667, %v848
      %v881 = vsub.f32 %v668, %v849
      %v882 = vsub.f32 %v669, %v850
      %v883 = vsub.f32 %v670, %v851
      %v884 = vsub.f32 %v671, %v852
      %v885 = vsub.f32 %v672, %v853
      %v886 = vsub.f32 %v673, %v854
      %v887 = vsub.f32 %v674, %v855
      %v888 = vsub.f32 %v675, %v856
      %v889 = vmul.f32 %v857, %v857
      %v890 = vmul.f32 %v858, %v858
      %v891 = vmul.f32 %v859, %v859
      %v892 = vmul.f32 %v860, %v860
      %v893 = vmul.f32 %v861, %v861
      %v894 = vmul.f32 %v862, %v862
      %v895 = vmul.f32 %v863, %v863
      %v896 = vmul.f32 %v864, %v864
      %v897 = vmul.f32 %v865, %v865
      %v898 = vmul.f32 %v866, %v866
      %v899 = vmul.f32 %v867, %v867
      %v900 = vmul.f32 %v868, %v868
      %v901 = vmul.f32 %v869, %v869
      %v902 = vmul.f32 %v870, %v870
      %v903 = vmul.f32 %v871, %v871
      %v904 = vmul.f32 %v872, %v872
      %v905 = vmul.f32 %v873, %v873
      %v906 = vmul.f32 %v874, %v874
      %v907 = vmul.f32 %v875, %v875
      %v908 = vmul.f32 %v876, %v876
      %v909 = vmul.f32 %v877, %v877
      %v910 = vmul.f32 %v878, %v878
      %v911 = vmul.f32 %v879, %v879
      %v912 = vmul.f32 %v880, %v880
      %v913 = vmul.f32 %v881, %v881
      %v914 = vmul.f32 %v882, %v882
      %v915 = vmul.f32 %v883, %v883
      %v916 = vmul.f32 %v884, %v884
      %v917 = vmul.f32 %v885, %v885
      %v918 = vmul.f32 %v886, %v886
      %v919 = vmul.f32 %v887, %v887
      %v920 = vmul.f32 %v888, %v888
      %v921 = vsel %vm727, %v889, 0.0
      %922 = vadd.xlane.f32.xlu0 %v921
      %v923 = vpop.xlane.xlu0 %922
      %v924 = vsel %vm727, %v890, 0.0
      %925 = vadd.xlane.f32.xlu0 %v924
      %v926 = vpop.xlane.xlu0 %925
      %v927 = vsel %vm727, %v891, 0.0
      %928 = vadd.xlane.f32.xlu0 %v927
      %v929 = vpop.xlane.xlu0 %928
      %v930 = vsel %vm727, %v892, 0.0
      %931 = vadd.xlane.f32.xlu0 %v930
      %v932 = vpop.xlane.xlu0 %931
      %v933 = vsel %vm727, %v893, 0.0
      %934 = vadd.xlane.f32.xlu0 %v933
      %v935 = vpop.xlane.xlu0 %934
      %v936 = vsel %vm727, %v894, 0.0
      %937 = vadd.xlane.f32.xlu0 %v936
      %v938 = vpop.xlane.xlu0 %937
      %v939 = vsel %vm727, %v895, 0.0
      %940 = vadd.xlane.f32.xlu0 %v939
      %v941 = vpop.xlane.xlu0 %940
      %v942 = vsel %vm727, %v896, 0.0
      %943 = vadd.xlane.f32.xlu0 %v942
      %v944 = vpop.xlane.xlu0 %943
      %v945 = vsel %vm727, %v897, 0.0
      %946 = vadd.xlane.f32.xlu0 %v945
      %v947 = vpop.xlane.xlu0 %946
      %v948 = vsel %vm727, %v898, 0.0
      %949 = vadd.xlane.f32.xlu0 %v948
      %v950 = vpop.xlane.xlu0 %949
      %v951 = vsel %vm727, %v899, 0.0
      %952 = vadd.xlane.f32.xlu0 %v951
      %v953 = vpop.xlane.xlu0 %952
      %v954 = vsel %vm727, %v900, 0.0
      %955 = vadd.xlane.f32.xlu0 %v954
      %v956 = vpop.xlane.xlu0 %955
      %v957 = vsel %vm727, %v901, 0.0
      %958 = vadd.xlane.f32.xlu0 %v957
      %v959 = vpop.xlane.xlu0 %958
      %v960 = vsel %vm727, %v902, 0.0
      %961 = vadd.xlane.f32.xlu0 %v960
      %v962 = vpop.xlane.xlu0 %961
      %v963 = vsel %vm727, %v903, 0.0
      %964 = vadd.xlane.f32.xlu0 %v963
      %v965 = vpop.xlane.xlu0 %964
      %v966 = vsel %vm727, %v904, 0.0
      %967 = vadd.xlane.f32.xlu0 %v966
      %v968 = vpop.xlane.xlu0 %967
      %v969 = vsel %vm727, %v905, 0.0
      %970 = vadd.xlane.f32.xlu0 %v969
      %v971 = vpop.xlane.xlu0 %970
      %v972 = vsel %vm727, %v906, 0.0
      %973 = vadd.xlane.f32.xlu0 %v972
      %v974 = vpop.xlane.xlu0 %973
      %v975 = vsel %vm727, %v907, 0.0
      %976 = vadd.xlane.f32.xlu0 %v975
      %v977 = vpop.xlane.xlu0 %976
      %v978 = vsel %vm727, %v908, 0.0
      %979 = vadd.xlane.f32.xlu0 %v978
      %v980 = vpop.xlane.xlu0 %979
      %v981 = vsel %vm727, %v909, 0.0
      %982 = vadd.xlane.f32.xlu0 %v981
      %v983 = vpop.xlane.xlu0 %982
      %v984 = vsel %vm727, %v910, 0.0
      %985 = vadd.xlane.f32.xlu0 %v984
      %v986 = vpop.xlane.xlu0 %985
      %v987 = vsel %vm727, %v911, 0.0
      %988 = vadd.xlane.f32.xlu0 %v987
      %v989 = vpop.xlane.xlu0 %988
      %v990 = vsel %vm727, %v912, 0.0
      %991 = vadd.xlane.f32.xlu0 %v990
      %v992 = vpop.xlane.xlu0 %991
      %v993 = vsel %vm727, %v913, 0.0
      %994 = vadd.xlane.f32.xlu0 %v993
      %v995 = vpop.xlane.xlu0 %994
      %v996 = vsel %vm727, %v914, 0.0
      %997 = vadd.xlane.f32.xlu0 %v996
      %v998 = vpop.xlane.xlu0 %997
      %v999 = vsel %vm727, %v915, 0.0
      %1000 = vadd.xlane.f32.xlu0 %v999
      %v1001 = vpop.xlane.xlu0 %1000
      %v1002 = vsel %vm727, %v916, 0.0
      %1003 = vadd.xlane.f32.xlu0 %v1002
      %v1004 = vpop.xlane.xlu0 %1003
      %v1005 = vsel %vm727, %v917, 0.0
      %1006 = vadd.xlane.f32.xlu0 %v1005
      %v1007 = vpop.xlane.xlu0 %1006
      %v1008 = vsel %vm727, %v918, 0.0
      %1009 = vadd.xlane.f32.xlu0 %v1008
      %v1010 = vpop.xlane.xlu0 %1009
      %v1011 = vsel %vm727, %v919, 0.0
      %1012 = vadd.xlane.f32.xlu0 %v1011
      %v1013 = vpop.xlane.xlu0 %1012
      %v1014 = vsel %vm727, %v920, 0.0
      %1015 = vadd.xlane.f32.xlu0 %v1014
      %v1016 = vpop.xlane.xlu0 %1015
      %v1017 = vmul.f32 %v923, %v824
      %v1018 = vmul.f32 %v926, %v824
      %v1019 = vmul.f32 %v929, %v824
      %v1020 = vmul.f32 %v932, %v824
      %v1021 = vmul.f32 %v935, %v824
      %v1022 = vmul.f32 %v938, %v824
      %v1023 = vmul.f32 %v941, %v824
      %v1024 = vmul.f32 %v944, %v824
      %v1025 = vmul.f32 %v947, %v824
      %v1026 = vmul.f32 %v950, %v824
      %v1027 = vmul.f32 %v953, %v824
      %v1028 = vmul.f32 %v956, %v824
      %v1029 = vmul.f32 %v959, %v824
      %v1030 = vmul.f32 %v962, %v824
      %v1031 = vmul.f32 %v965, %v824
      %v1032 = vmul.f32 %v968, %v824
      %v1033 = vmul.f32 %v971, %v824
      %v1034 = vmul.f32 %v974, %v824
      %v1035 = vmul.f32 %v977, %v824
      %v1036 = vmul.f32 %v980, %v824
      %v1037 = vmul.f32 %v983, %v824
      %v1038 = vmul.f32 %v986, %v824
      %v1039 = vmul.f32 %v989, %v824
      %v1040 = vmul.f32 %v992, %v824
      %v1041 = vmul.f32 %v995, %v824
      %v1042 = vmul.f32 %v998, %v824
      %v1043 = vmul.f32 %v1001, %v824
      %v1044 = vmul.f32 %v1004, %v824
      %v1045 = vmul.f32 %v1007, %v824
      %v1046 = vmul.f32 %v1010, %v824
      %v1047 = vmul.f32 %v1013, %v824
      %v1048 = vmul.f32 %v1016, %v824
      %v1049 = vadd.f32 %v1017, 1e-05
      %v1050 = vadd.f32 %v1018, 1e-05
      %v1051 = vadd.f32 %v1019, 1e-05
      %v1052 = vadd.f32 %v1020, 1e-05
      %v1053 = vadd.f32 %v1021, 1e-05
      %v1054 = vadd.f32 %v1022, 1e-05
      %v1055 = vadd.f32 %v1023, 1e-05
      %v1056 = vadd.f32 %v1024, 1e-05
      %v1057 = vadd.f32 %v1025, 1e-05
      %v1058 = vadd.f32 %v1026, 1e-05
      %v1059 = vadd.f32 %v1027, 1e-05
      %v1060 = vadd.f32 %v1028, 1e-05
      %v1061 = vadd.f32 %v1029, 1e-05
      %v1062 = vadd.f32 %v1030, 1e-05
      %v1063 = vadd.f32 %v1031, 1e-05
      %v1064 = vadd.f32 %v1032, 1e-05
      %v1065 = vadd.f32 %v1033, 1e-05
      %v1066 = vadd.f32 %v1034, 1e-05
      %v1067 = vadd.f32 %v1035, 1e-05
      %v1068 = vadd.f32 %v1036, 1e-05
      %v1069 = vadd.f32 %v1037, 1e-05
      %v1070 = vadd.f32 %v1038, 1e-05
      %v1071 = vadd.f32 %v1039, 1e-05
      %v1072 = vadd.f32 %v1040, 1e-05
      %v1073 = vadd.f32 %v1041, 1e-05
      %v1074 = vadd.f32 %v1042, 1e-05
      %v1075 = vadd.f32 %v1043, 1e-05
      %v1076 = vadd.f32 %v1044, 1e-05
      %v1077 = vadd.f32 %v1045, 1e-05
      %v1078 = vadd.f32 %v1046, 1e-05
      %v1079 = vadd.f32 %v1047, 1e-05
      %v1080 = vadd.f32 %v1048, 1e-05
      %v1081 = vrsqrt.pop %v1049
      %v1082 = vrsqrt.pop %v1050
      %v1083 = vrsqrt.pop %v1051
      %v1084 = vrsqrt.pop %v1052
      %v1085 = vrsqrt.pop %v1053
      %v1086 = vrsqrt.pop %v1054
      %v1087 = vrsqrt.pop %v1055
      %v1088 = vrsqrt.pop %v1056
      %v1089 = vrsqrt.pop %v1057
      %v1090 = vrsqrt.pop %v1058
      %v1091 = vrsqrt.pop %v1059
      %v1092 = vrsqrt.pop %v1060
      %v1093 = vrsqrt.pop %v1061
      %v1094 = vrsqrt.pop %v1062
      %v1095 = vrsqrt.pop %v1063
      %v1096 = vrsqrt.pop %v1064
      %v1097 = vrsqrt.pop %v1065
      %v1098 = vrsqrt.pop %v1066
      %v1099 = vrsqrt.pop %v1067
      %v1100 = vrsqrt.pop %v1068
      %v1101 = vrsqrt.pop %v1069
      %v1102 = vrsqrt.pop %v1070
      %v1103 = vrsqrt.pop %v1071
      %v1104 = vrsqrt.pop %v1072
      %v1105 = vrsqrt.pop %v1073
      %v1106 = vrsqrt.pop %v1074
      %v1107 = vrsqrt.pop %v1075
      %v1108 = vrsqrt.pop %v1076
      %v1109 = vrsqrt.pop %v1077
      %v1110 = vrsqrt.pop %v1078
      %v1111 = vrsqrt.pop %v1079
      %v1112 = vrsqrt.pop %v1080
      %v1113 = vmul.f32 %v857, %v1081
      %v1114 = vmul.f32 %v858, %v1082
      %v1115 = vmul.f32 %v859, %v1083
      %v1116 = vmul.f32 %v860, %v1084
      %v1117 = vmul.f32 %v861, %v1085
      %v1118 = vmul.f32 %v862, %v1086
      %v1119 = vmul.f32 %v863, %v1087
      %v1120 = vmul.f32 %v864, %v1088
      %v1121 = vmul.f32 %v865, %v1089
      %v1122 = vmul.f32 %v866, %v1090
      %v1123 = vmul.f32 %v867, %v1091
      %v1124 = vmul.f32 %v868, %v1092
      %v1125 = vmul.f32 %v869, %v1093
      %v1126 = vmul.f32 %v870, %v1094
      %v1127 = vmul.f32 %v871, %v1095
      %v1128 = vmul.f32 %v872, %v1096
      %v1129 = vmul.f32 %v873, %v1097
      %v1130 = vmul.f32 %v874, %v1098
      %v1131 = vmul.f32 %v875, %v1099
      %v1132 = vmul.f32 %v876, %v1100
      %v1133 = vmul.f32 %v877, %v1101
      %v1134 = vmul.f32 %v878, %v1102
      %v1135 = vmul.f32 %v879, %v1103
      %v1136 = vmul.f32 %v880, %v1104
      %v1137 = vmul.f32 %v881, %v1105
      %v1138 = vmul.f32 %v882, %v1106
      %v1139 = vmul.f32 %v883, %v1107
      %v1140 = vmul.f32 %v884, %v1108
      %v1141 = vmul.f32 %v885, %v1109
      %v1142 = vmul.f32 %v886, %v1110
      %v1143 = vmul.f32 %v887, %v1111
      %v1144 = vmul.f32 %v888, %v1112
      %v1145 = vlaneseq
      %v1146 = vshrl.u32 %v1145, 7
      %v1147 = vsub.s32 0, %v1146
      %v1148 = vrot.slane %v637, %v1147
      %v1149 = vmul.f32 %v1113, %v1148
      %v1150 = vmul.f32 %v1114, %v1148
      %v1151 = vmul.f32 %v1115, %v1148
      %v1152 = vmul.f32 %v1116, %v1148
      %v1153 = vmul.f32 %v1117, %v1148
      %v1154 = vmul.f32 %v1118, %v1148
      %v1155 = vmul.f32 %v1119, %v1148
      %v1156 = vmul.f32 %v1120, %v1148
      %v1157 = vmul.f32 %v1121, %v1148
      %v1158 = vmul.f32 %v1122, %v1148
      %v1159 = vmul.f32 %v1123, %v1148
      %v1160 = vmul.f32 %v1124, %v1148
      %v1161 = vmul.f32 %v1125, %v1148
      %v1162 = vmul.f32 %v1126, %v1148
      %v1163 = vmul.f32 %v1127, %v1148
      %v1164 = vmul.f32 %v1128, %v1148
      %v1165 = vmul.f32 %v1129, %v1148
      %v1166 = vmul.f32 %v1130, %v1148
      %v1167 = vmul.f32 %v1131, %v1148
      %v1168 = vmul.f32 %v1132, %v1148
      %v1169 = vmul.f32 %v1133, %v1148
      %v1170 = vmul.f32 %v1134, %v1148
      %v1171 = vmul.f32 %v1135, %v1148
      %v1172 = vmul.f32 %v1136, %v1148
      %v1173 = vmul.f32 %v1137, %v1148
      %v1174 = vmul.f32 %v1138, %v1148
      %v1175 = vmul.f32 %v1139, %v1148
      %v1176 = vmul.f32 %v1140, %v1148
      %v1177 = vmul.f32 %v1141, %v1148
      %v1178 = vmul.f32 %v1142, %v1148
      %v1179 = vmul.f32 %v1143, %v1148
      %v1180 = vmul.f32 %v1144, %v1148
      %v1181 = vlaneseq
      %v1182 = vshrl.u32 %v1181, 7
      %v1183 = vsub.s32 0, %v1182
      %v1184 = vrot.slane %v638, %v1183
      %v1185 = vadd.f32 %v1149, %v1184
      %v1186 = vadd.f32 %v1150, %v1184
      %v1187 = vadd.f32 %v1151, %v1184
      %v1188 = vadd.f32 %v1152, %v1184
      %v1189 = vadd.f32 %v1153, %v1184
      %v1190 = vadd.f32 %v1154, %v1184
      %v1191 = vadd.f32 %v1155, %v1184
      %v1192 = vadd.f32 %v1156, %v1184
      %v1193 = vadd.f32 %v1157, %v1184
      %v1194 = vadd.f32 %v1158, %v1184
      %v1195 = vadd.f32 %v1159, %v1184
      %v1196 = vadd.f32 %v1160, %v1184
      %v1197 = vadd.f32 %v1161, %v1184
      %v1198 = vadd.f32 %v1162, %v1184
      %v1199 = vadd.f32 %v1163, %v1184
      %v1200 = vadd.f32 %v1164, %v1184
      %v1201 = vadd.f32 %v1165, %v1184
      %v1202 = vadd.f32 %v1166, %v1184
      %v1203 = vadd.f32 %v1167, %v1184
      %v1204 = vadd.f32 %v1168, %v1184
      %v1205 = vadd.f32 %v1169, %v1184
      %v1206 = vadd.f32 %v1170, %v1184
      %v1207 = vadd.f32 %v1171, %v1184
      %v1208 = vadd.f32 %v1172, %v1184
      %v1209 = vadd.f32 %v1173, %v1184
      %v1210 = vadd.f32 %v1174, %v1184
      %v1211 = vadd.f32 %v1175, %v1184
      %v1212 = vadd.f32 %v1176, %v1184
      %v1213 = vadd.f32 %v1177, %v1184
      %v1214 = vadd.f32 %v1178, %v1184
      %v1215 = vadd.f32 %v1179, %v1184
      %v1216 = vadd.f32 %v1180, %v1184
      %v1217 = vld [vmem:[%s416] sm:$0xff]
      %v1218 = vsel %vm727, %v1217, 0.0
      %1219 = vadd.xlane.f32.xlu0 %v1218
      %v1220 = vpop.xlane.xlu0 %1219
      %v1221 = vmul.f32 %v1220, %v824
      %v1222 = vsub.f32 %v1217, %v1221
      %v1223 = vmul.f32 %v1222, %v1222
      %v1224 = vsel %vm727, %v1223, 0.0
      %1225 = vadd.xlane.f32.xlu0 %v1224
      %v1226 = vpop.xlane.xlu0 %1225
      %v1227 = vmul.f32 %v1226, %v824
      %v1228 = vadd.f32 %v1227, 1e-05
      %v1229 = vrsqrt.pop %v1228
      %v1230 = vmul.f32 %v1222, %v1229
      %v1231 = vlaneseq
      %v1232 = vshrl.u32 %v1231, 7
      %v1233 = vsub.s32 0, %v1232
      %v1234 = vrot.slane %v639, %v1233
      %v1235 = vmul.f32 %v1230, %v1234
      %v1236 = vlaneseq
      %v1237 = vshrl.u32 %v1236, 7
      %v1238 = vsub.s32 0, %v1237
      %v1239 = vrot.slane %v640, %v1238
      %v1240 = vadd.f32 %v1235, %v1239
      %v1241 = vpack.c.bf16 %v645, %v644
      %v1242 = vpack.c.bf16 %v647, %v646
      %v1243 = vpack.c.bf16 %v649, %v648
      %v1244 = vpack.c.bf16 %v651, %v650
      %v1245 = vpack.c.bf16 %v653, %v652
      %v1246 = vpack.c.bf16 %v655, %v654
      %v1247 = vpack.c.bf16 %v657, %v656
      %v1248 = vpack.c.bf16 %v659, %v658
      %v1249 = vpack.c.bf16 %v1186, %v1185
      %v1250 = vpack.c.bf16 %v1188, %v1187
      %v1251 = vpack.c.bf16 %v1190, %v1189
      %v1252 = vpack.c.bf16 %v1192, %v1191
      %v1253 = vpack.c.bf16 %v1194, %v1193
      %v1254 = vpack.c.bf16 %v1196, %v1195
      %v1255 = vpack.c.bf16 %v1198, %v1197
      %v1256 = vpack.c.bf16 %v1200, %v1199
      %v1257 = vpack.c.bf16 %v1202, %v1201
      %v1258 = vpack.c.bf16 %v1204, %v1203
      %v1259 = vpack.c.bf16 %v1206, %v1205
      %v1260 = vpack.c.bf16 %v1208, %v1207
      %v1261 = vpack.c.bf16 %v1210, %v1209
      %v1262 = vpack.c.bf16 %v1212, %v1211
      %v1263 = vpack.c.bf16 %v1214, %v1213
      %v1264 = vpack.c.bf16 %v1216, %v1215
      %v1265 = vpack.c.bf16 %v1240, %v1240
      %v1267 = vsel %vm727, %v1241, 0
      %v1270 = vsel %vm727, %v1242, 0
      %v1273 = vsel %vm727, %v1243, 0
      %v1276 = vsel %vm727, %v1244, 0
      %v1279 = vsel %vm727, %v1245, 0
      %v1282 = vsel %vm727, %v1246, 0
      %v1285 = vsel %vm727, %v1247, 0
      %v1288 = vsel %vm727, %v1248, 0
      %v1291 = vsel %vm727, %v1249, 0
      %v1294 = vsel %vm727, %v1250, 0
      %v1297 = vsel %vm727, %v1251, 0
      %v1300 = vsel %vm727, %v1252, 0
      %v1303 = vsel %vm727, %v1253, 0
      %v1306 = vsel %vm727, %v1254, 0
      %v1309 = vsel %vm727, %v1255, 0
      %v1312 = vsel %vm727, %v1256, 0
      %v1315 = vsel %vm727, %v1257, 0
      %v1318 = vsel %vm727, %v1258, 0
      %v1321 = vsel %vm727, %v1259, 0
      %v1324 = vsel %vm727, %v1260, 0
      %v1327 = vsel %vm727, %v1261, 0
      %v1330 = vsel %vm727, %v1262, 0
      %v1333 = vsel %vm727, %v1263, 0
      %v1336 = vsel %vm727, %v1264, 0
      %1338 = vmatprep.subr.bf16.mxu0 0
      %1339 = vmatpush1.bf16.xpose.msra.mxu0 %v1291
      %1340 = vmatprep.subr.bf16.mxu0 0
      %1341 = vmatpush1.bf16.xpose.msra.mxu0 %v1294
      %1342 = vmatprep.subr.bf16.mxu0 0
      %1343 = vmatpush1.bf16.xpose.msra.mxu0 %v1297
      %1344 = vmatprep.subr.bf16.mxu0 0
      %1345 = vmatpush1.bf16.xpose.msra.mxu0 %v1300
      %1346 = vmatprep.subr.bf16.mxu0 0
      %1347 = vmatpush1.bf16.xpose.msra.mxu0 %v1303
      %1348 = vmatprep.subr.bf16.mxu0 0
      %1349 = vmatpush1.bf16.xpose.msra.mxu0 %v1306
      %1350 = vmatprep.subr.bf16.mxu0 0
      %1351 = vmatpush1.bf16.xpose.msra.mxu0 %v1309
      %1352 = vmatprep.subr.bf16.mxu0 0
      %1353 = vmatpush1.bf16.xpose.msra.mxu0 %v1312
      %1354 = vmatprep.subr.bf16.mxu0 0
      %1355 = vmatpush1.bf16.xpose.msra.mxu0 %v1315
      %1356 = vmatprep.subr.bf16.mxu0 0
      %1357 = vmatpush1.bf16.xpose.msra.mxu0 %v1318
      %1358 = vmatprep.subr.bf16.mxu0 0
      %1359 = vmatpush1.bf16.xpose.msra.mxu0 %v1321
      %1360 = vmatprep.subr.bf16.mxu0 0
      %1361 = vmatpush1.bf16.xpose.msra.mxu0 %v1324
      %1362 = vmatprep.subr.bf16.mxu0 0
      %1363 = vmatpush1.bf16.xpose.msra.mxu0 %v1327
      %1364 = vmatprep.subr.bf16.mxu0 0
      %1365 = vmatpush1.bf16.xpose.msra.mxu0 %v1330
      %1366 = vmatprep.subr.bf16.mxu0 0
      %1367 = vmatpush1.bf16.xpose.msra.mxu0 %v1333
      %1368 = vmatprep.subr.bf16.mxu0 0
      %1369 = vmatpush1.bf16.xpose.msra.mxu0 %v1336
      %1370 = vmatprep.mubr.bf16.mxu0 0
      %1371 = vmatmul.mubr.bf16.gmra.mrb[0].mxu0 %v1267
      %v1372 = vpop.f32.mrb[0].mxu0
      %v1373 = vadd.f32 0.0, %v1372
      %v1374 = vpop.f32.mrb[0].mxu0
      %v1375 = vadd.f32 0.0, %v1374
      %v1376 = vpop.f32.mrb[0].mxu0
      %v1377 = vadd.f32 0.0, %v1376
      %v1378 = vpop.f32.mrb[0].mxu0
      %v1379 = vadd.f32 0.0, %v1378
      %1380 = vmatprep.mubr.bf16.mxu0 0
      %1381 = vmatmul.mubr.bf16.gmra.mrb[0].mxu0 %v1270
      %v1382 = vpop.f32.mrb[0].mxu0
      %v1383 = vadd.f32 0.0, %v1382
      %v1384 = vpop.f32.mrb[0].mxu0
      %v1385 = vadd.f32 0.0, %v1384
      %v1386 = vpop.f32.mrb[0].mxu0
      %v1387 = vadd.f32 0.0, %v1386
      %v1388 = vpop.f32.mrb[0].mxu0
      %v1389 = vadd.f32 0.0, %v1388
      %1390 = vmatprep.mubr.bf16.mxu0 0
      %1391 = vmatmul.mubr.bf16.gmra.mrb[0].mxu0 %v1273
      %v1392 = vpop.f32.mrb[0].mxu0
      %v1393 = vadd.f32 0.0, %v1392
      %v1394 = vpop.f32.mrb[0].mxu0
      %v1395 = vadd.f32 0.0, %v1394
      %v1396 = vpop.f32.mrb[0].mxu0
      %v1397 = vadd.f32 0.0, %v1396
      %v1398 = vpop.f32.mrb[0].mxu0
      %v1399 = vadd.f32 0.0, %v1398
      %1400 = vmatprep.mubr.bf16.mxu0 0
      %1401 = vmatmul.mubr.bf16.gmra.mrb[0].mxu0 %v1276
      %v1402 = vpop.f32.mrb[0].mxu0
      %v1403 = vadd.f32 0.0, %v1402
      %v1404 = vpop.f32.mrb[0].mxu0
      %v1405 = vadd.f32 0.0, %v1404
      %v1406 = vpop.f32.mrb[0].mxu0
      %v1407 = vadd.f32 0.0, %v1406
      %v1408 = vpop.f32.mrb[0].mxu0
      %v1409 = vadd.f32 0.0, %v1408
      %1410 = vmatprep.mubr.bf16.mxu0 0
      %1411 = vmatmul.mubr.bf16.gmra.mrb[0].mxu0 %v1279
      %v1412 = vpop.f32.mrb[0].mxu0
      %v1413 = vadd.f32 0.0, %v1412
      %v1414 = vpop.f32.mrb[0].mxu0
      %v1415 = vadd.f32 0.0, %v1414
      %v1416 = vpop.f32.mrb[0].mxu0
      %v1417 = vadd.f32 0.0, %v1416
      %v1418 = vpop.f32.mrb[0].mxu0
      %v1419 = vadd.f32 0.0, %v1418
      %1420 = vmatprep.mubr.bf16.mxu0 0
      %1421 = vmatmul.mubr.bf16.gmra.mrb[0].mxu0 %v1282
      %v1422 = vpop.f32.mrb[0].mxu0
      %v1423 = vadd.f32 0.0, %v1422
      %v1424 = vpop.f32.mrb[0].mxu0
      %v1425 = vadd.f32 0.0, %v1424
      %v1426 = vpop.f32.mrb[0].mxu0
      %v1427 = vadd.f32 0.0, %v1426
      %v1428 = vpop.f32.mrb[0].mxu0
      %v1429 = vadd.f32 0.0, %v1428
      %1430 = vmatprep.mubr.bf16.mxu0 0
      %1431 = vmatmul.mubr.bf16.gmra.mrb[0].mxu0 %v1285
      %v1432 = vpop.f32.mrb[0].mxu0
      %v1433 = vadd.f32 0.0, %v1432
      %v1434 = vpop.f32.mrb[0].mxu0
      %v1435 = vadd.f32 0.0, %v1434
      %v1436 = vpop.f32.mrb[0].mxu0
      %v1437 = vadd.f32 0.0, %v1436
      %v1438 = vpop.f32.mrb[0].mxu0
      %v1439 = vadd.f32 0.0, %v1438
      %1440 = vmatprep.mubr.bf16.mxu0 0
      %1441 = vmatmul.mubr.bf16.gmra.mrb[0].mxu0 %v1288
      %v1442 = vpop.f32.mrb[0].mxu0
      %v1443 = vadd.f32 0.0, %v1442
      %v1444 = vpop.f32.mrb[0].mxu0
      %v1445 = vadd.f32 0.0, %v1444
      %v1446 = vpop.f32.mrb[0].mxu0
      %v1447 = vadd.f32 0.0, %v1446
      %v1448 = vpop.f32.mrb[0].mxu0
      %v1449 = vadd.f32 0.0, %v1448
      %1450 = vdwg.mxu0
      %v1452 = vsel %vm727, %v1265, 0
      %1454 = vmatprep.subr.bf16.mxu0 0
      %1455 = vmatpush1.bf16.xpose.msra.mxu0 %v1452
      %1456 = vmatprep.subr.bf16.mxu0 0
      %1457 = vmatpush1.bf16.xpose.msra.mxu0 0
      %1458 = vmatprep.subr.bf16.mxu0 0
      %1459 = vmatpush1.bf16.xpose.msra.mxu0 0
      %1460 = vmatprep.subr.bf16.mxu0 0
      %1461 = vmatpush1.bf16.xpose.msra.mxu0 0
      %1462 = vmatprep.subr.bf16.mxu0 0
      %1463 = vmatpush1.bf16.xpose.msra.mxu0 0
      %1464 = vmatprep.subr.bf16.mxu0 0
      %1465 = vmatpush1.bf16.xpose.msra.mxu0 0
      %1466 = vmatprep.subr.bf16.mxu0 0
      %1467 = vmatpush1.bf16.xpose.msra.mxu0 0
      %1468 = vmatprep.subr.bf16.mxu0 0
      %1469 = vmatpush1.bf16.xpose.msra.mxu0 0
      %1470 = vmatprep.subr.bf16.mxu0 0
      %1471 = vmatpush1.bf16.xpose.msra.mxu0 0
      %1472 = vmatprep.subr.bf16.mxu0 0
      %1473 = vmatpush1.bf16.xpose.msra.mxu0 0
      %1474 = vmatprep.subr.bf16.mxu0 0
      %1475 = vmatpush1.bf16.xpose.msra.mxu0 0
      %1476 = vmatprep.subr.bf16.mxu0 0
      %1477 = vmatpush1.bf16.xpose.msra.mxu0 0
      %1478 = vmatprep.subr.bf16.mxu0 0
      %1479 = vmatpush1.bf16.xpose.msra.mxu0 0
      %1480 = vmatprep.subr.bf16.mxu0 0
      %1481 = vmatpush1.bf16.xpose.msra.mxu0 0
      %1482 = vmatprep.subr.bf16.mxu0 0
      %1483 = vmatpush1.bf16.xpose.msra.mxu0 0
      %1484 = vmatprep.subr.bf16.mxu0 0
      %1485 = vmatpush1.bf16.xpose.msra.mxu0 0
      %1486 = vmatprep.mubr.bf16.mxu0 0
      %1487 = vmatmul.mubr.bf16.gmra.mrb[0].mxu0 %v1267
      %v1488 = vpop.f32.mrb[0].mxu0
      %v1489 = vadd.f32 0.0, %v1488
      %v1490 = vpop.f32.mrb[0].mxu0
      %v1491 = vpop.f32.mrb[0].mxu0
      %v1492 = vadd.f32 0.0, %v1491
      %v1493 = vpop.f32.mrb[0].mxu0
      %1494 = vmatprep.mubr.bf16.mxu0 0
      %1495 = vmatmul.mubr.bf16.gmra.mrb[0].mxu0 %v1270
      %v1496 = vpop.f32.mrb[0].mxu0
      %v1497 = vadd.f32 0.0, %v1496
      %v1498 = vpop.f32.mrb[0].mxu0
      %v1499 = vpop.f32.mrb[0].mxu0
      %v1500 = vadd.f32 0.0, %v1499
      %v1501 = vpop.f32.mrb[0].mxu0
      %1502 = vmatprep.mubr.bf16.mxu0 0
      %1503 = vmatmul.mubr.bf16.gmra.mrb[0].mxu0 %v1273
      %v1504 = vpop.f32.mrb[0].mxu0
      %v1505 = vadd.f32 0.0, %v1504
      %v1506 = vpop.f32.mrb[0].mxu0
      %v1507 = vpop.f32.mrb[0].mxu0
      %v1508 = vadd.f32 0.0, %v1507
      %v1509 = vpop.f32.mrb[0].mxu0
      %1510 = vmatprep.mubr.bf16.mxu0 0
      %1511 = vmatmul.mubr.bf16.gmra.mrb[0].mxu0 %v1276
      %v1512 = vpop.f32.mrb[0].mxu0
      %v1513 = vadd.f32 0.0, %v1512
      %v1514 = vpop.f32.mrb[0].mxu0
      %v1515 = vpop.f32.mrb[0].mxu0
      %v1516 = vadd.f32 0.0, %v1515
      %v1517 = vpop.f32.mrb[0].mxu0
      %1518 = vmatprep.mubr.bf16.mxu0 0
      %1519 = vmatmul.mubr.bf16.gmra.mrb[0].mxu0 %v1279
      %v1520 = vpop.f32.mrb[0].mxu0
      %v1521 = vadd.f32 0.0, %v1520
      %v1522 = vpop.f32.mrb[0].mxu0
      %v1523 = vpop.f32.mrb[0].mxu0
      %v1524 = vadd.f32 0.0, %v1523
      %v1525 = vpop.f32.mrb[0].mxu0
      %1526 = vmatprep.mubr.bf16.mxu0 0
      %1527 = vmatmul.mubr.bf16.gmra.mrb[0].mxu0 %v1282
      %v1528 = vpop.f32.mrb[0].mxu0
      %v1529 = vadd.f32 0.0, %v1528
      %v1530 = vpop.f32.mrb[0].mxu0
      %v1531 = vpop.f32.mrb[0].mxu0
      %v1532 = vadd.f32 0.0, %v1531
      %v1533 = vpop.f32.mrb[0].mxu0
      %1534 = vmatprep.mubr.bf16.mxu0 0
      %1535 = vmatmul.mubr.bf16.gmra.mrb[0].mxu0 %v1285
      %v1536 = vpop.f32.mrb[0].mxu0
      %v1537 = vadd.f32 0.0, %v1536
      %v1538 = vpop.f32.mrb[0].mxu0
      %v1539 = vpop.f32.mrb[0].mxu0
      %v1540 = vadd.f32 0.0, %v1539
      %v1541 = vpop.f32.mrb[0].mxu0
      %1542 = vmatprep.mubr.bf16.mxu0 0
      %1543 = vmatmul.mubr.bf16.gmra.mrb[0].mxu0 %v1288
      %v1544 = vpop.f32.mrb[0].mxu0
      %v1545 = vadd.f32 0.0, %v1544
      %v1546 = vpop.f32.mrb[0].mxu0
      %v1547 = vpop.f32.mrb[0].mxu0
      %v1548 = vadd.f32 0.0, %v1547
      %v1549 = vpop.f32.mrb[0].mxu0
      %1550 = vdwg.mxu0
      %v1551 = vsel %vm570, %v1373, -3.4028235e+38
      %v1552 = vsel %vm571, %v1375, -3.4028235e+38
      %v1553 = vsel %vm572, %v1377, -3.4028235e+38
      %v1554 = vsel %vm573, %v1379, -3.4028235e+38
      %v1555 = vsel %vm574, %v1383, -3.4028235e+38
      %v1556 = vsel %vm575, %v1385, -3.4028235e+38
      %v1557 = vsel %vm576, %v1387, -3.4028235e+38
      %v1558 = vsel %vm577, %v1389, -3.4028235e+38
      %v1559 = vsel %vm578, %v1393, -3.4028235e+38
      %v1560 = vsel %vm579, %v1395, -3.4028235e+38
      %v1561 = vsel %vm580, %v1397, -3.4028235e+38
      %v1562 = vsel %vm581, %v1399, -3.4028235e+38
      %v1563 = vsel %vm582, %v1403, -3.4028235e+38
      %v1564 = vsel %vm583, %v1405, -3.4028235e+38
      %v1565 = vsel %vm584, %v1407, -3.4028235e+38
      %v1566 = vsel %vm585, %v1409, -3.4028235e+38
      %v1567 = vsel %vm586, %v1413, -3.4028235e+38
      %v1568 = vsel %vm587, %v1415, -3.4028235e+38
      %v1569 = vsel %vm588, %v1417, -3.4028235e+38
      %v1570 = vsel %vm589, %v1419, -3.4028235e+38
      %v1571 = vsel %vm590, %v1423, -3.4028235e+38
      %v1572 = vsel %vm591, %v1425, -3.4028235e+38
      %v1573 = vsel %vm592, %v1427, -3.4028235e+38
      %v1574 = vsel %vm593, %v1429, -3.4028235e+38
      %v1575 = vsel %vm594, %v1433, -3.4028235e+38
      %v1576 = vsel %vm595, %v1435, -3.4028235e+38
      %v1577 = vsel %vm596, %v1437, -3.4028235e+38
      %v1578 = vsel %vm597, %v1439, -3.4028235e+38
      %v1579 = vsel %vm598, %v1443, -3.4028235e+38
      %v1580 = vsel %vm599, %v1445, -3.4028235e+38
      %v1581 = vsel %vm600, %v1447, -3.4028235e+38
      %v1582 = vsel %vm601, %v1449, -3.4028235e+38
      %v1583 = vsel %vm621, %v1489, -3.4028235e+38
      %v1584 = vsel %vm622, %v1492, -3.4028235e+38
      %v1585 = vsel %vm623, %v1497, -3.4028235e+38
      %v1586 = vsel %vm624, %v1500, -3.4028235e+38
      %v1587 = vsel %vm625, %v1505, -3.4028235e+38
      %v1588 = vsel %vm626, %v1508, -3.4028235e+38
      %v1589 = vsel %vm627, %v1513, -3.4028235e+38
      %v1590 = vsel %vm628, %v1516, -3.4028235e+38
      %v1591 = vsel %vm629, %v1521, -3.4028235e+38
      %v1592 = vsel %vm630, %v1524, -3.4028235e+38
      %v1593 = vsel %vm631, %v1529, -3.4028235e+38
      %v1594 = vsel %vm632, %v1532, -3.4028235e+38
      %v1595 = vsel %vm633, %v1537, -3.4028235e+38
      %v1596 = vsel %vm634, %v1540, -3.4028235e+38
      %v1597 = vsel %vm635, %v1545, -3.4028235e+38
      %v1598 = vsel %vm636, %v1548, -3.4028235e+38
      %v1599 = vmax.f32 %v1551, %v1552
      %1600 = vmax.xlane.f32.xlu0 %v1599
      %v1601 = vpop.xlane.xlu0 %1600
      %v1602 = vmax.f32 %v1553, %v1554
      %1603 = vmax.xlane.f32.xlu0 %v1602
      %v1604 = vpop.xlane.xlu0 %1603
      %v1605 = vmax.f32 %v1555, %v1556
      %1606 = vmax.xlane.f32.xlu0 %v1605
      %v1607 = vpop.xlane.xlu0 %1606
      %v1608 = vmax.f32 %v1557, %v1558
      %1609 = vmax.xlane.f32.xlu0 %v1608
      %v1610 = vpop.xlane.xlu0 %1609
      %v1611 = vmax.f32 %v1559, %v1560
      %1612 = vmax.xlane.f32.xlu0 %v1611
      %v1613 = vpop.xlane.xlu0 %1612
      %v1614 = vmax.f32 %v1561, %v1562
      %1615 = vmax.xlane.f32.xlu0 %v1614
      %v1616 = vpop.xlane.xlu0 %1615
      %v1617 = vmax.f32 %v1563, %v1564
      %1618 = vmax.xlane.f32.xlu0 %v1617
      %v1619 = vpop.xlane.xlu0 %1618
      %v1620 = vmax.f32 %v1565, %v1566
      %1621 = vmax.xlane.f32.xlu0 %v1620
      %v1622 = vpop.xlane.xlu0 %1621
      %v1623 = vmax.f32 %v1567, %v1568
      %1624 = vmax.xlane.f32.xlu0 %v1623
      %v1625 = vpop.xlane.xlu0 %1624
      %v1626 = vmax.f32 %v1569, %v1570
      %1627 = vmax.xlane.f32.xlu0 %v1626
      %v1628 = vpop.xlane.xlu0 %1627
      %v1629 = vmax.f32 %v1571, %v1572
      %1630 = vmax.xlane.f32.xlu0 %v1629
      %v1631 = vpop.xlane.xlu0 %1630
      %v1632 = vmax.f32 %v1573, %v1574
      %1633 = vmax.xlane.f32.xlu0 %v1632
      %v1634 = vpop.xlane.xlu0 %1633
      %v1635 = vmax.f32 %v1575, %v1576
      %1636 = vmax.xlane.f32.xlu0 %v1635
      %v1637 = vpop.xlane.xlu0 %1636
      %v1638 = vmax.f32 %v1577, %v1578
      %1639 = vmax.xlane.f32.xlu0 %v1638
      %v1640 = vpop.xlane.xlu0 %1639
      %v1641 = vmax.f32 %v1579, %v1580
      %1642 = vmax.xlane.f32.xlu0 %v1641
      %v1643 = vpop.xlane.xlu0 %1642
      %v1644 = vmax.f32 %v1581, %v1582
      %1645 = vmax.xlane.f32.xlu0 %v1644
      %v1646 = vpop.xlane.xlu0 %1645
      %vm1647 = vcmask 64512
      %v1648 = vsel %vm1647, %v1583, -inf
      %1649 = vmax.xlane.f32.xlu0 %v1648
      %v1650 = vpop.xlane.xlu0 %1649
      %v1651 = vsel %vm1647, %v1584, -inf
      %1652 = vmax.xlane.f32.xlu0 %v1651
      %v1653 = vpop.xlane.xlu0 %1652
      %v1654 = vsel %vm1647, %v1585, -inf
      %1655 = vmax.xlane.f32.xlu0 %v1654
      %v1656 = vpop.xlane.xlu0 %1655
      %v1657 = vsel %vm1647, %v1586, -inf
      %1658 = vmax.xlane.f32.xlu0 %v1657
      %v1659 = vpop.xlane.xlu0 %1658
      %v1660 = vsel %vm1647, %v1587, -inf
      %1661 = vmax.xlane.f32.xlu0 %v1660
      %v1662 = vpop.xlane.xlu0 %1661
      %v1663 = vsel %vm1647, %v1588, -inf
      %1664 = vmax.xlane.f32.xlu0 %v1663
      %v1665 = vpop.xlane.xlu0 %1664
      %v1666 = vsel %vm1647, %v1589, -inf
      %1667 = vmax.xlane.f32.xlu0 %v1666
      %v1668 = vpop.xlane.xlu0 %1667
      %v1669 = vsel %vm1647, %v1590, -inf
      %1670 = vmax.xlane.f32.xlu0 %v1669
      %v1671 = vpop.xlane.xlu0 %1670
      %v1672 = vsel %vm1647, %v1591, -inf
      %1673 = vmax.xlane.f32.xlu0 %v1672
      %v1674 = vpop.xlane.xlu0 %1673
      %v1675 = vsel %vm1647, %v1592, -inf
      %1676 = vmax.xlane.f32.xlu0 %v1675
      %v1677 = vpop.xlane.xlu0 %1676
      %v1678 = vsel %vm1647, %v1593, -inf
      %1679 = vmax.xlane.f32.xlu0 %v1678
      %v1680 = vpop.xlane.xlu0 %1679
      %v1681 = vsel %vm1647, %v1594, -inf
      %1682 = vmax.xlane.f32.xlu0 %v1681
      %v1683 = vpop.xlane.xlu0 %1682
      %v1684 = vsel %vm1647, %v1595, -inf
      %1685 = vmax.xlane.f32.xlu0 %v1684
      %v1686 = vpop.xlane.xlu0 %1685
      %v1687 = vsel %vm1647, %v1596, -inf
      %1688 = vmax.xlane.f32.xlu0 %v1687
      %v1689 = vpop.xlane.xlu0 %1688
      %v1690 = vsel %vm1647, %v1597, -inf
      %1691 = vmax.xlane.f32.xlu0 %v1690
      %v1692 = vpop.xlane.xlu0 %1691
      %v1693 = vsel %vm1647, %v1598, -inf
      %1694 = vmax.xlane.f32.xlu0 %v1693
      %v1695 = vpop.xlane.xlu0 %1694
      %v1696 = vmax.f32 %v1601, %v1650
      %v1697 = vmax.f32 %v1604, %v1653
      %v1698 = vmax.f32 %v1607, %v1656
      %v1699 = vmax.f32 %v1610, %v1659
      %v1700 = vmax.f32 %v1613, %v1662
      %v1701 = vmax.f32 %v1616, %v1665
      %v1702 = vmax.f32 %v1619, %v1668
      %v1703 = vmax.f32 %v1622, %v1671
      %v1704 = vmax.f32 %v1625, %v1674
      %v1705 = vmax.f32 %v1628, %v1677
      %v1706 = vmax.f32 %v1631, %v1680
      %v1707 = vmax.f32 %v1634, %v1683
      %v1708 = vmax.f32 %v1637, %v1686
      %v1709 = vmax.f32 %v1640, %v1689
      %v1710 = vmax.f32 %v1643, %v1692
      %v1711 = vmax.f32 %v1646, %v1695
      %v1712 = vsub.f32 %v1551, %v1696
      %v1713 = vsub.f32 %v1552, %v1696
      %v1714 = vsub.f32 %v1553, %v1697
      %v1715 = vsub.f32 %v1554, %v1697
      %v1716 = vsub.f32 %v1555, %v1698
      %v1717 = vsub.f32 %v1556, %v1698
      %v1718 = vsub.f32 %v1557, %v1699
      %v1719 = vsub.f32 %v1558, %v1699
      %v1720 = vsub.f32 %v1559, %v1700
      %v1721 = vsub.f32 %v1560, %v1700
      %v1722 = vsub.f32 %v1561, %v1701
      %v1723 = vsub.f32 %v1562, %v1701
      %v1724 = vsub.f32 %v1563, %v1702
      %v1725 = vsub.f32 %v1564, %v1702
      %v1726 = vsub.f32 %v1565, %v1703
      %v1727 = vsub.f32 %v1566, %v1703
      %v1728 = vsub.f32 %v1567, %v1704
      %v1729 = vsub.f32 %v1568, %v1704
      %v1730 = vsub.f32 %v1569, %v1705
      %v1731 = vsub.f32 %v1570, %v1705
      %v1732 = vsub.f32 %v1571, %v1706
      %v1733 = vsub.f32 %v1572, %v1706
      %v1734 = vsub.f32 %v1573, %v1707
      %v1735 = vsub.f32 %v1574, %v1707
      %v1736 = vsub.f32 %v1575, %v1708
      %v1737 = vsub.f32 %v1576, %v1708
      %v1738 = vsub.f32 %v1577, %v1709
      %v1739 = vsub.f32 %v1578, %v1709
      %v1740 = vsub.f32 %v1579, %v1710
      %v1741 = vsub.f32 %v1580, %v1710
      %v1742 = vsub.f32 %v1581, %v1711
      %v1743 = vsub.f32 %v1582, %v1711
      %v1744 = vmul.f32 %v1712, 1.442695
      %v1745 = vpow.pop %v1744
      %v1746 = vmul.f32 %v1713, 1.442695
      %v1747 = vpow.pop %v1746
      %v1748 = vmul.f32 %v1714, 1.442695
      %v1749 = vpow.pop %v1748
      %v1750 = vmul.f32 %v1715, 1.442695
      %v1751 = vpow.pop %v1750
      %v1752 = vmul.f32 %v1716, 1.442695
      %v1753 = vpow.pop %v1752
      %v1754 = vmul.f32 %v1717, 1.442695
      %v1755 = vpow.pop %v1754
      %v1756 = vmul.f32 %v1718, 1.442695
      %v1757 = vpow.pop %v1756
      %v1758 = vmul.f32 %v1719, 1.442695
      %v1759 = vpow.pop %v1758
      %v1760 = vmul.f32 %v1720, 1.442695
      %v1761 = vpow.pop %v1760
      %v1762 = vmul.f32 %v1721, 1.442695
      %v1763 = vpow.pop %v1762
      %v1764 = vmul.f32 %v1722, 1.442695
      %v1765 = vpow.pop %v1764
      %v1766 = vmul.f32 %v1723, 1.442695
      %v1767 = vpow.pop %v1766
      %v1768 = vmul.f32 %v1724, 1.442695
      %v1769 = vpow.pop %v1768
      %v1770 = vmul.f32 %v1725, 1.442695
      %v1771 = vpow.pop %v1770
      %v1772 = vmul.f32 %v1726, 1.442695
      %v1773 = vpow.pop %v1772
      %v1774 = vmul.f32 %v1727, 1.442695
      %v1775 = vpow.pop %v1774
      %v1776 = vmul.f32 %v1728, 1.442695
      %v1777 = vpow.pop %v1776
      %v1778 = vmul.f32 %v1729, 1.442695
      %v1779 = vpow.pop %v1778
      %v1780 = vmul.f32 %v1730, 1.442695
      %v1781 = vpow.pop %v1780
      %v1782 = vmul.f32 %v1731, 1.442695
      %v1783 = vpow.pop %v1782
      %v1784 = vmul.f32 %v1732, 1.442695
      %v1785 = vpow.pop %v1784
      %v1786 = vmul.f32 %v1733, 1.442695
      %v1787 = vpow.pop %v1786
      %v1788 = vmul.f32 %v1734, 1.442695
      %v1789 = vpow.pop %v1788
      %v1790 = vmul.f32 %v1735, 1.442695
      %v1791 = vpow.pop %v1790
      %v1792 = vmul.f32 %v1736, 1.442695
      %v1793 = vpow.pop %v1792
      %v1794 = vmul.f32 %v1737, 1.442695
      %v1795 = vpow.pop %v1794
      %v1796 = vmul.f32 %v1738, 1.442695
      %v1797 = vpow.pop %v1796
      %v1798 = vmul.f32 %v1739, 1.442695
      %v1799 = vpow.pop %v1798
      %v1800 = vmul.f32 %v1740, 1.442695
      %v1801 = vpow.pop %v1800
      %v1802 = vmul.f32 %v1741, 1.442695
      %v1803 = vpow.pop %v1802
      %v1804 = vmul.f32 %v1742, 1.442695
      %v1805 = vpow.pop %v1804
      %v1806 = vmul.f32 %v1743, 1.442695
      %v1807 = vpow.pop %v1806
      %v1808 = vsub.f32 %v1583, %v1696
      %v1809 = vsub.f32 %v1584, %v1697
      %v1810 = vsub.f32 %v1585, %v1698
      %v1811 = vsub.f32 %v1586, %v1699
      %v1812 = vsub.f32 %v1587, %v1700
      %v1813 = vsub.f32 %v1588, %v1701
      %v1814 = vsub.f32 %v1589, %v1702
      %v1815 = vsub.f32 %v1590, %v1703
      %v1816 = vsub.f32 %v1591, %v1704
      %v1817 = vsub.f32 %v1592, %v1705
      %v1818 = vsub.f32 %v1593, %v1706
      %v1819 = vsub.f32 %v1594, %v1707
      %v1820 = vsub.f32 %v1595, %v1708
      %v1821 = vsub.f32 %v1596, %v1709
      %v1822 = vsub.f32 %v1597, %v1710
      %v1823 = vsub.f32 %v1598, %v1711
      %v1824 = vmul.f32 %v1808, 1.442695
      %v1825 = vpow.pop %v1824
      %v1826 = vmul.f32 %v1809, 1.442695
      %v1827 = vpow.pop %v1826
      %v1828 = vmul.f32 %v1810, 1.442695
      %v1829 = vpow.pop %v1828
      %v1830 = vmul.f32 %v1811, 1.442695
      %v1831 = vpow.pop %v1830
      %v1832 = vmul.f32 %v1812, 1.442695
      %v1833 = vpow.pop %v1832
      %v1834 = vmul.f32 %v1813, 1.442695
      %v1835 = vpow.pop %v1834
      %v1836 = vmul.f32 %v1814, 1.442695
      %v1837 = vpow.pop %v1836
      %v1838 = vmul.f32 %v1815, 1.442695
      %v1839 = vpow.pop %v1838
      %v1840 = vmul.f32 %v1816, 1.442695
      %v1841 = vpow.pop %v1840
      %v1842 = vmul.f32 %v1817, 1.442695
      %v1843 = vpow.pop %v1842
      %v1844 = vmul.f32 %v1818, 1.442695
      %v1845 = vpow.pop %v1844
      %v1846 = vmul.f32 %v1819, 1.442695
      %v1847 = vpow.pop %v1846
      %v1848 = vmul.f32 %v1820, 1.442695
      %v1849 = vpow.pop %v1848
      %v1850 = vmul.f32 %v1821, 1.442695
      %v1851 = vpow.pop %v1850
      %v1852 = vmul.f32 %v1822, 1.442695
      %v1853 = vpow.pop %v1852
      %v1854 = vmul.f32 %v1823, 1.442695
      %v1855 = vpow.pop %v1854
      %v1856 = vadd.f32 %v1745, %v1747
      %1857 = vadd.xlane.f32.xlu0 %v1856
      %v1858 = vpop.xlane.xlu0 %1857
      %v1859 = vadd.f32 %v1749, %v1751
      %1860 = vadd.xlane.f32.xlu0 %v1859
      %v1861 = vpop.xlane.xlu0 %1860
      %v1862 = vadd.f32 %v1753, %v1755
      %1863 = vadd.xlane.f32.xlu0 %v1862
      %v1864 = vpop.xlane.xlu0 %1863
      %v1865 = vadd.f32 %v1757, %v1759
      %1866 = vadd.xlane.f32.xlu0 %v1865
      %v1867 = vpop.xlane.xlu0 %1866
      %v1868 = vadd.f32 %v1761, %v1763
      %1869 = vadd.xlane.f32.xlu0 %v1868
      %v1870 = vpop.xlane.xlu0 %1869
      %v1871 = vadd.f32 %v1765, %v1767
      %1872 = vadd.xlane.f32.xlu0 %v1871
      %v1873 = vpop.xlane.xlu0 %1872
      %v1874 = vadd.f32 %v1769, %v1771
      %1875 = vadd.xlane.f32.xlu0 %v1874
      %v1876 = vpop.xlane.xlu0 %1875
      %v1877 = vadd.f32 %v1773, %v1775
      %1878 = vadd.xlane.f32.xlu0 %v1877
      %v1879 = vpop.xlane.xlu0 %1878
      %v1880 = vadd.f32 %v1777, %v1779
      %1881 = vadd.xlane.f32.xlu0 %v1880
      %v1882 = vpop.xlane.xlu0 %1881
      %v1883 = vadd.f32 %v1781, %v1783
      %1884 = vadd.xlane.f32.xlu0 %v1883
      %v1885 = vpop.xlane.xlu0 %1884
      %v1886 = vadd.f32 %v1785, %v1787
      %1887 = vadd.xlane.f32.xlu0 %v1886
      %v1888 = vpop.xlane.xlu0 %1887
      %v1889 = vadd.f32 %v1789, %v1791
      %1890 = vadd.xlane.f32.xlu0 %v1889
      %v1891 = vpop.xlane.xlu0 %1890
      %v1892 = vadd.f32 %v1793, %v1795
      %1893 = vadd.xlane.f32.xlu0 %v1892
      %v1894 = vpop.xlane.xlu0 %1893
      %v1895 = vadd.f32 %v1797, %v1799
      %1896 = vadd.xlane.f32.xlu0 %v1895
      %v1897 = vpop.xlane.xlu0 %1896
      %v1898 = vadd.f32 %v1801, %v1803
      %1899 = vadd.xlane.f32.xlu0 %v1898
      %v1900 = vpop.xlane.xlu0 %1899
      %v1901 = vadd.f32 %v1805, %v1807
      %1902 = vadd.xlane.f32.xlu0 %v1901
      %v1903 = vpop.xlane.xlu0 %1902
      %v1904 = vsel %vm1647, %v1825, 0.0
      %1905 = vadd.xlane.f32.xlu0 %v1904
      %v1906 = vpop.xlane.xlu0 %1905
      %v1907 = vsel %vm1647, %v1827, 0.0
      %1908 = vadd.xlane.f32.xlu0 %v1907
      %v1909 = vpop.xlane.xlu0 %1908
      %v1910 = vsel %vm1647, %v1829, 0.0
      %1911 = vadd.xlane.f32.xlu0 %v1910
      %v1912 = vpop.xlane.xlu0 %1911
      %v1913 = vsel %vm1647, %v1831, 0.0
      %1914 = vadd.xlane.f32.xlu0 %v1913
      %v1915 = vpop.xlane.xlu0 %1914
      %v1916 = vsel %vm1647, %v1833, 0.0
      %1917 = vadd.xlane.f32.xlu0 %v1916
      %v1918 = vpop.xlane.xlu0 %1917
      %v1919 = vsel %vm1647, %v1835, 0.0
      %1920 = vadd.xlane.f32.xlu0 %v1919
      %v1921 = vpop.xlane.xlu0 %1920
      %v1922 = vsel %vm1647, %v1837, 0.0
      %1923 = vadd.xlane.f32.xlu0 %v1922
      %v1924 = vpop.xlane.xlu0 %1923
      %v1925 = vsel %vm1647, %v1839, 0.0
      %1926 = vadd.xlane.f32.xlu0 %v1925
      %v1927 = vpop.xlane.xlu0 %1926
      %v1928 = vsel %vm1647, %v1841, 0.0
      %1929 = vadd.xlane.f32.xlu0 %v1928
      %v1930 = vpop.xlane.xlu0 %1929
      %v1931 = vsel %vm1647, %v1843, 0.0
      %1932 = vadd.xlane.f32.xlu0 %v1931
      %v1933 = vpop.xlane.xlu0 %1932
      %v1934 = vsel %vm1647, %v1845, 0.0
      %1935 = vadd.xlane.f32.xlu0 %v1934
      %v1936 = vpop.xlane.xlu0 %1935
      %v1937 = vsel %vm1647, %v1847, 0.0
      %1938 = vadd.xlane.f32.xlu0 %v1937
      %v1939 = vpop.xlane.xlu0 %1938
      %v1940 = vsel %vm1647, %v1849, 0.0
      %1941 = vadd.xlane.f32.xlu0 %v1940
      %v1942 = vpop.xlane.xlu0 %1941
      %v1943 = vsel %vm1647, %v1851, 0.0
      %1944 = vadd.xlane.f32.xlu0 %v1943
      %v1945 = vpop.xlane.xlu0 %1944
      %v1946 = vsel %vm1647, %v1853, 0.0
      %1947 = vadd.xlane.f32.xlu0 %v1946
      %v1948 = vpop.xlane.xlu0 %1947
      %v1949 = vsel %vm1647, %v1855, 0.0
      %1950 = vadd.xlane.f32.xlu0 %v1949
      %v1951 = vpop.xlane.xlu0 %1950
      %v1952 = vadd.f32 %v1858, %v1906
      %v1953 = vadd.f32 %v1861, %v1909
      %v1954 = vadd.f32 %v1864, %v1912
      %v1955 = vadd.f32 %v1867, %v1915
      %v1956 = vadd.f32 %v1870, %v1918
      %v1957 = vadd.f32 %v1873, %v1921
      %v1958 = vadd.f32 %v1876, %v1924
      %v1959 = vadd.f32 %v1879, %v1927
      %v1960 = vadd.f32 %v1882, %v1930
      %v1961 = vadd.f32 %v1885, %v1933
      %v1962 = vadd.f32 %v1888, %v1936
      %v1963 = vadd.f32 %v1891, %v1939
      %v1964 = vadd.f32 %v1894, %v1942
      %v1965 = vadd.f32 %v1897, %v1945
      %v1966 = vadd.f32 %v1900, %v1948
      %v1967 = vadd.f32 %v1903, %v1951
      %v1968 = vpack.c.bf16 %v1827, %v1825
      %v1969 = vpack.c.bf16 %v1831, %v1829
      %v1970 = vpack.c.bf16 %v1835, %v1833
      %v1971 = vpack.c.bf16 %v1839, %v1837
      %v1972 = vpack.c.bf16 %v1843, %v1841
      %v1973 = vpack.c.bf16 %v1847, %v1845
      %v1974 = vpack.c.bf16 %v1851, %v1849
      %v1975 = vpack.c.bf16 %v1855, %v1853
      %v1976 = vpack.c.bf16 %v1749, %v1745
      %v1977 = vpack.c.bf16 %v1751, %v1747
      %v1978 = vpack.c.bf16 %v1757, %v1753
      %v1979 = vpack.c.bf16 %v1759, %v1755
      %v1980 = vpack.c.bf16 %v1765, %v1761
      %v1981 = vpack.c.bf16 %v1767, %v1763
      %v1982 = vpack.c.bf16 %v1773, %v1769
      %v1983 = vpack.c.bf16 %v1775, %v1771
      %v1984 = vpack.c.bf16 %v1781, %v1777
      %v1985 = vpack.c.bf16 %v1783, %v1779
      %v1986 = vpack.c.bf16 %v1789, %v1785
      %v1987 = vpack.c.bf16 %v1791, %v1787
      %v1988 = vpack.c.bf16 %v1797, %v1793
      %v1989 = vpack.c.bf16 %v1799, %v1795
      %v1990 = vpack.c.bf16 %v1805, %v1801
      %v1991 = vpack.c.bf16 %v1807, %v1803
      %1992 = vmatprep.subr.bf16.mxu0 0
      %1993 = vmatpush1.bf16.msra.mxu0 %v1249
      %1994 = vmatprep.subr.bf16.mxu0 0
      %1995 = vmatpush1.bf16.msra.mxu0 %v1250
      %1996 = vmatprep.subr.bf16.mxu0 0
      %1997 = vmatpush1.bf16.msra.mxu0 %v1251
      %1998 = vmatprep.subr.bf16.mxu0 0
      %1999 = vmatpush1.bf16.msra.mxu0 %v1252
      %2000 = vmatprep.subr.bf16.mxu0 0
      %2001 = vmatpush1.bf16.msra.mxu0 %v1253
      %2002 = vmatprep.subr.bf16.mxu0 0
      %2003 = vmatpush1.bf16.msra.mxu0 %v1254
      %2004 = vmatprep.subr.bf16.mxu0 0
      %2005 = vmatpush1.bf16.msra.mxu0 %v1255
      %2006 = vmatprep.subr.bf16.mxu0 0
      %2007 = vmatpush1.bf16.msra.mxu0 %v1256
      %2008 = vmatprep.subr.bf16.mxu0 0
      %2009 = vmatpush1.bf16.msra.mxu0 %v1257
      %2010 = vmatprep.subr.bf16.mxu0 0
      %2011 = vmatpush1.bf16.msra.mxu0 %v1258
      %2012 = vmatprep.subr.bf16.mxu0 0
      %2013 = vmatpush1.bf16.msra.mxu0 %v1259
      %2014 = vmatprep.subr.bf16.mxu0 0
      %2015 = vmatpush1.bf16.msra.mxu0 %v1260
      %2016 = vmatprep.subr.bf16.mxu0 0
      %2017 = vmatpush1.bf16.msra.mxu0 %v1261
      %2018 = vmatprep.subr.bf16.mxu0 0
      %2019 = vmatpush1.bf16.msra.mxu0 %v1262
      %2020 = vmatprep.subr.bf16.mxu0 0
      %2021 = vmatpush1.bf16.msra.mxu0 %v1263
      %2022 = vmatprep.subr.bf16.mxu0 0
      %2023 = vmatpush1.bf16.msra.mxu0 %v1264
      %2024 = vmatprep.mubr.bf16.mxu0 %v1977
      %2025 = vmatmul.mubr.bf16.gmra.mrb[0].mxu0 %v1976
      %v2026 = vpop.f32.mrb[0].mxu0
      %v2027 = vadd.f32 0.0, %v2026
      %v2028 = vpop.f32.mrb[0].mxu0
      %v2029 = vpop.f32.mrb[0].mxu0
      %v2030 = vadd.f32 0.0, %v2029
      %v2031 = vpop.f32.mrb[0].mxu0
      %2032 = vmatprep.mubr.bf16.mxu0 %v1979
      %2033 = vmatmul.mubr.bf16.gmra.mrb[0].mxu0 %v1978
      %v2034 = vpop.f32.mrb[0].mxu0
      %v2035 = vadd.f32 0.0, %v2034
      %v2036 = vpop.f32.mrb[0].mxu0
      %v2037 = vpop.f32.mrb[0].mxu0
      %v2038 = vadd.f32 0.0, %v2037
      %v2039 = vpop.f32.mrb[0].mxu0
      %2040 = vmatprep.mubr.bf16.mxu0 %v1981
      %2041 = vmatmul.mubr.bf16.gmra.mrb[0].mxu0 %v1980
      %v2042 = vpop.f32.mrb[0].mxu0
      %v2043 = vadd.f32 0.0, %v2042
      %v2044 = vpop.f32.mrb[0].mxu0
      %v2045 = vpop.f32.mrb[0].mxu0
      %v2046 = vadd.f32 0.0, %v2045
      %v2047 = vpop.f32.mrb[0].mxu0
      %2048 = vmatprep.mubr.bf16.mxu0 %v1983
      %2049 = vmatmul.mubr.bf16.gmra.mrb[0].mxu0 %v1982
      %v2050 = vpop.f32.mrb[0].mxu0
      %v2051 = vadd.f32 0.0, %v2050
      %v2052 = vpop.f32.mrb[0].mxu0
      %v2053 = vpop.f32.mrb[0].mxu0
      %v2054 = vadd.f32 0.0, %v2053
      %v2055 = vpop.f32.mrb[0].mxu0
      %2056 = vmatprep.mubr.bf16.mxu0 %v1985
      %2057 = vmatmul.mubr.bf16.gmra.mrb[0].mxu0 %v1984
      %v2058 = vpop.f32.mrb[0].mxu0
      %v2059 = vadd.f32 0.0, %v2058
      %v2060 = vpop.f32.mrb[0].mxu0
      %v2061 = vpop.f32.mrb[0].mxu0
      %v2062 = vadd.f32 0.0, %v2061
      %v2063 = vpop.f32.mrb[0].mxu0
      %2064 = vmatprep.mubr.bf16.mxu0 %v1987
      %2065 = vmatmul.mubr.bf16.gmra.mrb[0].mxu0 %v1986
      %v2066 = vpop.f32.mrb[0].mxu0
      %v2067 = vadd.f32 0.0, %v2066
      %v2068 = vpop.f32.mrb[0].mxu0
      %v2069 = vpop.f32.mrb[0].mxu0
      %v2070 = vadd.f32 0.0, %v2069
      %v2071 = vpop.f32.mrb[0].mxu0
      %2072 = vmatprep.mubr.bf16.mxu0 %v1989
      %2073 = vmatmul.mubr.bf16.gmra.mrb[0].mxu0 %v1988
      %v2074 = vpop.f32.mrb[0].mxu0
      %v2075 = vadd.f32 0.0, %v2074
      %v2076 = vpop.f32.mrb[0].mxu0
      %v2077 = vpop.f32.mrb[0].mxu0
      %v2078 = vadd.f32 0.0, %v2077
      %v2079 = vpop.f32.mrb[0].mxu0
      %2080 = vmatprep.mubr.bf16.mxu0 %v1991
      %2081 = vmatmul.mubr.bf16.gmra.mrb[0].mxu0 %v1990
      %v2082 = vpop.f32.mrb[0].mxu0
      %v2083 = vadd.f32 0.0, %v2082
      %v2084 = vpop.f32.mrb[0].mxu0
      %v2085 = vpop.f32.mrb[0].mxu0
      %v2086 = vadd.f32 0.0, %v2085
      %v2087 = vpop.f32.mrb[0].mxu0
      %2088 = vdwg.mxu0
      %v2090 = vsel %vm1647, %v1968, 0
      %v2093 = vsel %vm1647, %v1969, 0
      %v2096 = vsel %vm1647, %v1970, 0
      %v2099 = vsel %vm1647, %v1971, 0
      %v2102 = vsel %vm1647, %v1972, 0
      %v2105 = vsel %vm1647, %v1973, 0
      %v2108 = vsel %vm1647, %v1974, 0
      %v2111 = vsel %vm1647, %v1975, 0
      %vm2113 = vcmask 1043456
      %v2114 = vsel %vm2113, %v1265, 0
      %2116 = vmatprep.subr.bf16.mxu0 0
      %2117 = vmatpush1.bf16.msra.mxu0 %v2114
      %2118 = vmatprep.subr.bf16.mxu0 0
      %2119 = vmatpush1.bf16.msra.mxu0 0
      %2120 = vmatprep.subr.bf16.mxu0 0
      %2121 = vmatpush1.bf16.msra.mxu0 0
      %2122 = vmatprep.subr.bf16.mxu0 0
      %2123 = vmatpush1.bf16.msra.mxu0 0
      %2124 = vmatprep.subr.bf16.mxu0 0
      %2125 = vmatpush1.bf16.msra.mxu0 0
      %2126 = vmatprep.subr.bf16.mxu0 0
      %2127 = vmatpush1.bf16.msra.mxu0 0
      %2128 = vmatprep.subr.bf16.mxu0 0
      %2129 = vmatpush1.bf16.msra.mxu0 0
      %2130 = vmatprep.subr.bf16.mxu0 0
      %2131 = vmatpush1.bf16.msra.mxu0 0
      %2132 = vmatprep.subr.bf16.mxu0 0
      %2133 = vmatpush1.bf16.msra.mxu0 0
      %2134 = vmatprep.subr.bf16.mxu0 0
      %2135 = vmatpush1.bf16.msra.mxu0 0
      %2136 = vmatprep.subr.bf16.mxu0 0
      %2137 = vmatpush1.bf16.msra.mxu0 0
      %2138 = vmatprep.subr.bf16.mxu0 0
      %2139 = vmatpush1.bf16.msra.mxu0 0
      %2140 = vmatprep.subr.bf16.mxu0 0
      %2141 = vmatpush1.bf16.msra.mxu0 0
      %2142 = vmatprep.subr.bf16.mxu0 0
      %2143 = vmatpush1.bf16.msra.mxu0 0
      %2144 = vmatprep.subr.bf16.mxu0 0
      %2145 = vmatpush1.bf16.msra.mxu0 0
      %2146 = vmatprep.subr.bf16.mxu0 0
      %2147 = vmatpush1.bf16.msra.mxu0 0
      %2148 = vmatprep.mubr.bf16.mxu0 0
      %2149 = vmatmul.mubr.bf16.gmra.mrb[0].mxu0 %v2090
      %v2150 = vpop.f32.mrb[0].mxu0
      %v2151 = vadd.f32 %v2027, %v2150
      %v2152 = vpop.f32.mrb[0].mxu0
      %v2153 = vpop.f32.mrb[0].mxu0
      %v2154 = vadd.f32 %v2030, %v2153
      %v2155 = vpop.f32.mrb[0].mxu0
      %2156 = vmatprep.mubr.bf16.mxu0 0
      %2157 = vmatmul.mubr.bf16.gmra.mrb[0].mxu0 %v2093
      %v2158 = vpop.f32.mrb[0].mxu0
      %v2159 = vadd.f32 %v2035, %v2158
      %v2160 = vpop.f32.mrb[0].mxu0
      %v2161 = vpop.f32.mrb[0].mxu0
      %v2162 = vadd.f32 %v2038, %v2161
      %v2163 = vpop.f32.mrb[0].mxu0
      %2164 = vmatprep.mubr.bf16.mxu0 0
      %2165 = vmatmul.mubr.bf16.gmra.mrb[0].mxu0 %v2096
      %v2166 = vpop.f32.mrb[0].mxu0
      %v2167 = vadd.f32 %v2043, %v2166
      %v2168 = vpop.f32.mrb[0].mxu0
      %v2169 = vpop.f32.mrb[0].mxu0
      %v2170 = vadd.f32 %v2046, %v2169
      %v2171 = vpop.f32.mrb[0].mxu0
      %2172 = vmatprep.mubr.bf16.mxu0 0
      %2173 = vmatmul.mubr.bf16.gmra.mrb[0].mxu0 %v2099
      %v2174 = vpop.f32.mrb[0].mxu0
      %v2175 = vadd.f32 %v2051, %v2174
      %v2176 = vpop.f32.mrb[0].mxu0
      %v2177 = vpop.f32.mrb[0].mxu0
      %v2178 = vadd.f32 %v2054, %v2177
      %v2179 = vpop.f32.mrb[0].mxu0
      %2180 = vmatprep.mubr.bf16.mxu0 0
      %2181 = vmatmul.mubr.bf16.gmra.mrb[0].mxu0 %v2102
      %v2182 = vpop.f32.mrb[0].mxu0
      %v2183 = vadd.f32 %v2059, %v2182
      %v2184 = vpop.f32.mrb[0].mxu0
      %v2185 = vpop.f32.mrb[0].mxu0
      %v2186 = vadd.f32 %v2062, %v2185
      %v2187 = vpop.f32.mrb[0].mxu0
      %2188 = vmatprep.mubr.bf16.mxu0 0
      %2189 = vmatmul.mubr.bf16.gmra.mrb[0].mxu0 %v2105
      %v2190 = vpop.f32.mrb[0].mxu0
      %v2191 = vadd.f32 %v2067, %v2190
      %v2192 = vpop.f32.mrb[0].mxu0
      %v2193 = vpop.f32.mrb[0].mxu0
      %v2194 = vadd.f32 %v2070, %v2193
      %v2195 = vpop.f32.mrb[0].mxu0
      %2196 = vmatprep.mubr.bf16.mxu0 0
      %2197 = vmatmul.mubr.bf16.gmra.mrb[0].mxu0 %v2108
      %v2198 = vpop.f32.mrb[0].mxu0
      %v2199 = vadd.f32 %v2075, %v2198
      %v2200 = vpop.f32.mrb[0].mxu0
      %v2201 = vpop.f32.mrb[0].mxu0
      %v2202 = vadd.f32 %v2078, %v2201
      %v2203 = vpop.f32.mrb[0].mxu0
      %2204 = vmatprep.mubr.bf16.mxu0 0
      %2205 = vmatmul.mubr.bf16.gmra.mrb[0].mxu0 %v2111
      %v2206 = vpop.f32.mrb[0].mxu0
      %v2207 = vadd.f32 %v2083, %v2206
      %v2208 = vpop.f32.mrb[0].mxu0
      %v2209 = vpop.f32.mrb[0].mxu0
      %v2210 = vadd.f32 %v2086, %v2209
      %v2211 = vpop.f32.mrb[0].mxu0
      %2212 = vdwg.mxu0
      %v2213 = vrcp.pop %v1952
      %v2214 = vmul.f32 %v2151, %v2213
      %v2215 = vrcp.pop %v1953
      %v2216 = vmul.f32 %v2154, %v2215
      %v2217 = vrcp.pop %v1954
      %v2218 = vmul.f32 %v2159, %v2217
      %v2219 = vrcp.pop %v1955
      %v2220 = vmul.f32 %v2162, %v2219
      %v2221 = vrcp.pop %v1956
      %v2222 = vmul.f32 %v2167, %v2221
      %v2223 = vrcp.pop %v1957
      %v2224 = vmul.f32 %v2170, %v2223
      %v2225 = vrcp.pop %v1958
      %v2226 = vmul.f32 %v2175, %v2225
      %v2227 = vrcp.pop %v1959
      %v2228 = vmul.f32 %v2178, %v2227
      %v2229 = vrcp.pop %v1960
      %v2230 = vmul.f32 %v2183, %v2229
      %v2231 = vrcp.pop %v1961
      %v2232 = vmul.f32 %v2186, %v2231
      %v2233 = vrcp.pop %v1962
      %v2234 = vmul.f32 %v2191, %v2233
      %v2235 = vrcp.pop %v1963
      %v2236 = vmul.f32 %v2194, %v2235
      %v2237 = vrcp.pop %v1964
      %v2238 = vmul.f32 %v2199, %v2237
      %v2239 = vrcp.pop %v1965
      %v2240 = vmul.f32 %v2202, %v2239
      %v2241 = vrcp.pop %v1966
      %v2242 = vmul.f32 %v2207, %v2241
      %v2243 = vrcp.pop %v1967
      %v2244 = vmul.f32 %v2210, %v2243
      %s2245 = scalar_lea.vmem %s384, 128
      %v2246 = vld [vmem:[%s2245] sm:$0xff]
      %v2247 = vld [vmem:[%s2245 + $0x8] sm:$0xff]
      %v2248 = vld [vmem:[%s2245 + $0x10] sm:$0xff]
      %v2249 = vld [vmem:[%s2245 + $0x18] sm:$0xff]
      %v2250 = vld [vmem:[%s2245 + $0x20] sm:$0xff]
      %v2251 = vld [vmem:[%s2245 + $0x28] sm:$0xff]
      %v2252 = vld [vmem:[%s2245 + $0x30] sm:$0xff]
      %v2253 = vld [vmem:[%s2245 + $0x38] sm:$0xff]
      %v2254 = vld [vmem:[%s2245 + $0x40] sm:$0xff]
      %v2255 = vld [vmem:[%s2245 + $0x48] sm:$0xff]
      %v2256 = vld [vmem:[%s2245 + $0x50] sm:$0xff]
      %v2257 = vld [vmem:[%s2245 + $0x58] sm:$0xff]
      %v2258 = vld [vmem:[%s2245 + $0x60] sm:$0xff]
      %v2259 = vld [vmem:[%s2245 + $0x68] sm:$0xff]
      %v2260 = vld [vmem:[%s2245 + $0x70] sm:$0xff]
      %v2261 = vld [vmem:[%s2245 + $0x78] sm:$0xff]
      %s2262 = scalar_lea.vmem %s394, 128
      %v2263 = vld [vmem:[%s2262] sm:$0xff]
      %v2264 = vld [vmem:[%s2262 + $0x8] sm:$0xff]
      %v2265 = vld [vmem:[%s2262 + $0x10] sm:$0xff]
      %v2266 = vld [vmem:[%s2262 + $0x18] sm:$0xff]
      %v2267 = vld [vmem:[%s2262 + $0x20] sm:$0xff]
      %v2268 = vld [vmem:[%s2262 + $0x28] sm:$0xff]
      %v2269 = vld [vmem:[%s2262 + $0x30] sm:$0xff]
      %v2270 = vld [vmem:[%s2262 + $0x38] sm:$0xff]
      %v2271 = vld [vmem:[%s2262 + $0x40] sm:$0xff]
      %v2272 = vld [vmem:[%s2262 + $0x48] sm:$0xff]
      %v2273 = vld [vmem:[%s2262 + $0x50] sm:$0xff]
      %v2274 = vld [vmem:[%s2262 + $0x58] sm:$0xff]
      %v2275 = vld [vmem:[%s2262 + $0x60] sm:$0xff]
      %v2276 = vld [vmem:[%s2262 + $0x68] sm:$0xff]
      %v2277 = vld [vmem:[%s2262 + $0x70] sm:$0xff]
      %v2278 = vld [vmem:[%s2262 + $0x78] sm:$0xff]
      %s2279 = scalar_lea.vmem %s407, 128
      %v2280 = vld [vmem:[%s2279] sm:$0xff]
      %v2281 = vld [vmem:[%s2279 + $0x8] sm:$0xff]
      %v2282 = vld [vmem:[%s2279 + $0x10] sm:$0xff]
      %v2283 = vld [vmem:[%s2279 + $0x18] sm:$0xff]
      %v2284 = vld [vmem:[%s2279 + $0x20] sm:$0xff]
      %v2285 = vld [vmem:[%s2279 + $0x28] sm:$0xff]
      %v2286 = vld [vmem:[%s2279 + $0x30] sm:$0xff]
      %v2287 = vld [vmem:[%s2279 + $0x38] sm:$0xff]
      %v2288 = vld [vmem:[%s2279 + $0x40] sm:$0xff]
      %v2289 = vld [vmem:[%s2279 + $0x48] sm:$0xff]
      %v2290 = vld [vmem:[%s2279 + $0x50] sm:$0xff]
      %v2291 = vld [vmem:[%s2279 + $0x58] sm:$0xff]
      %v2292 = vld [vmem:[%s2279 + $0x60] sm:$0xff]
      %v2293 = vld [vmem:[%s2279 + $0x68] sm:$0xff]
      %v2294 = vld [vmem:[%s2279 + $0x70] sm:$0xff]
      %v2295 = vld [vmem:[%s2279 + $0x78] sm:$0xff]
      %v2296 = vmul.f32 %v2280, %v692
      %v2297 = vmul.f32 %v2281, %v692
      %v2298 = vmul.f32 %v2282, %v692
      %v2299 = vmul.f32 %v2283, %v692
      %v2300 = vmul.f32 %v2284, %v692
      %v2301 = vmul.f32 %v2285, %v692
      %v2302 = vmul.f32 %v2286, %v692
      %v2303 = vmul.f32 %v2287, %v692
      %v2304 = vmul.f32 %v2288, %v692
      %v2305 = vmul.f32 %v2289, %v692
      %v2306 = vmul.f32 %v2290, %v692
      %v2307 = vmul.f32 %v2291, %v692
      %v2308 = vmul.f32 %v2292, %v692
      %v2309 = vmul.f32 %v2293, %v692
      %v2310 = vmul.f32 %v2294, %v692
      %v2311 = vmul.f32 %v2295, %v692
      %v2312 = vadd.f32 %v2296, %v710
      %v2313 = vadd.f32 %v2297, %v710
      %v2314 = vadd.f32 %v2298, %v710
      %v2315 = vadd.f32 %v2299, %v710
      %v2316 = vadd.f32 %v2300, %v710
      %v2317 = vadd.f32 %v2301, %v710
      %v2318 = vadd.f32 %v2302, %v710
      %v2319 = vadd.f32 %v2303, %v710
      %v2320 = vadd.f32 %v2304, %v710
      %v2321 = vadd.f32 %v2305, %v710
      %v2322 = vadd.f32 %v2306, %v710
      %v2323 = vadd.f32 %v2307, %v710
      %v2324 = vadd.f32 %v2308, %v710
      %v2325 = vadd.f32 %v2309, %v710
      %v2326 = vadd.f32 %v2310, %v710
      %v2327 = vadd.f32 %v2311, %v710
      %v2328 = vsel %vm727, %v2312, 0.0
      %2329 = vadd.xlane.f32.xlu0 %v2328
      %v2330 = vpop.xlane.xlu0 %2329
      %v2331 = vsel %vm727, %v2313, 0.0
      %2332 = vadd.xlane.f32.xlu0 %v2331
      %v2333 = vpop.xlane.xlu0 %2332
      %v2334 = vsel %vm727, %v2314, 0.0
      %2335 = vadd.xlane.f32.xlu0 %v2334
      %v2336 = vpop.xlane.xlu0 %2335
      %v2337 = vsel %vm727, %v2315, 0.0
      %2338 = vadd.xlane.f32.xlu0 %v2337
      %v2339 = vpop.xlane.xlu0 %2338
      %v2340 = vsel %vm727, %v2316, 0.0
      %2341 = vadd.xlane.f32.xlu0 %v2340
      %v2342 = vpop.xlane.xlu0 %2341
      %v2343 = vsel %vm727, %v2317, 0.0
      %2344 = vadd.xlane.f32.xlu0 %v2343
      %v2345 = vpop.xlane.xlu0 %2344
      %v2346 = vsel %vm727, %v2318, 0.0
      %2347 = vadd.xlane.f32.xlu0 %v2346
      %v2348 = vpop.xlane.xlu0 %2347
      %v2349 = vsel %vm727, %v2319, 0.0
      %2350 = vadd.xlane.f32.xlu0 %v2349
      %v2351 = vpop.xlane.xlu0 %2350
      %v2352 = vsel %vm727, %v2320, 0.0
      %2353 = vadd.xlane.f32.xlu0 %v2352
      %v2354 = vpop.xlane.xlu0 %2353
      %v2355 = vsel %vm727, %v2321, 0.0
      %2356 = vadd.xlane.f32.xlu0 %v2355
      %v2357 = vpop.xlane.xlu0 %2356
      %v2358 = vsel %vm727, %v2322, 0.0
      %2359 = vadd.xlane.f32.xlu0 %v2358
      %v2360 = vpop.xlane.xlu0 %2359
      %v2361 = vsel %vm727, %v2323, 0.0
      %2362 = vadd.xlane.f32.xlu0 %v2361
      %v2363 = vpop.xlane.xlu0 %2362
      %v2364 = vsel %vm727, %v2324, 0.0
      %2365 = vadd.xlane.f32.xlu0 %v2364
      %v2366 = vpop.xlane.xlu0 %2365
      %v2367 = vsel %vm727, %v2325, 0.0
      %2368 = vadd.xlane.f32.xlu0 %v2367
      %v2369 = vpop.xlane.xlu0 %2368
      %v2370 = vsel %vm727, %v2326, 0.0
      %2371 = vadd.xlane.f32.xlu0 %v2370
      %v2372 = vpop.xlane.xlu0 %2371
      %v2373 = vsel %vm727, %v2327, 0.0
      %2374 = vadd.xlane.f32.xlu0 %v2373
      %v2375 = vpop.xlane.xlu0 %2374
      %v2376 = vsel %vm727, %v2263, 0.0
      %2377 = vadd.xlane.f32.xlu0 %v2376
      %v2378 = vpop.xlane.xlu0 %2377
      %v2379 = vsel %vm727, %v2264, 0.0
      %2380 = vadd.xlane.f32.xlu0 %v2379
      %v2381 = vpop.xlane.xlu0 %2380
      %v2382 = vsel %vm727, %v2265, 0.0
      %2383 = vadd.xlane.f32.xlu0 %v2382
      %v2384 = vpop.xlane.xlu0 %2383
      %v2385 = vsel %vm727, %v2266, 0.0
      %2386 = vadd.xlane.f32.xlu0 %v2385
      %v2387 = vpop.xlane.xlu0 %2386
      %v2388 = vsel %vm727, %v2267, 0.0
      %2389 = vadd.xlane.f32.xlu0 %v2388
      %v2390 = vpop.xlane.xlu0 %2389
      %v2391 = vsel %vm727, %v2268, 0.0
      %2392 = vadd.xlane.f32.xlu0 %v2391
      %v2393 = vpop.xlane.xlu0 %2392
      %v2394 = vsel %vm727, %v2269, 0.0
      %2395 = vadd.xlane.f32.xlu0 %v2394
      %v2396 = vpop.xlane.xlu0 %2395
      %v2397 = vsel %vm727, %v2270, 0.0
      %2398 = vadd.xlane.f32.xlu0 %v2397
      %v2399 = vpop.xlane.xlu0 %2398
      %v2400 = vsel %vm727, %v2271, 0.0
      %2401 = vadd.xlane.f32.xlu0 %v2400
      %v2402 = vpop.xlane.xlu0 %2401
      %v2403 = vsel %vm727, %v2272, 0.0
      %2404 = vadd.xlane.f32.xlu0 %v2403
      %v2405 = vpop.xlane.xlu0 %2404
      %v2406 = vsel %vm727, %v2273, 0.0
      %2407 = vadd.xlane.f32.xlu0 %v2406
      %v2408 = vpop.xlane.xlu0 %2407
      %v2409 = vsel %vm727, %v2274, 0.0
      %2410 = vadd.xlane.f32.xlu0 %v2409
      %v2411 = vpop.xlane.xlu0 %2410
      %v2412 = vsel %vm727, %v2275, 0.0
      %2413 = vadd.xlane.f32.xlu0 %v2412
      %v2414 = vpop.xlane.xlu0 %2413
      %v2415 = vsel %vm727, %v2276, 0.0
      %2416 = vadd.xlane.f32.xlu0 %v2415
      %v2417 = vpop.xlane.xlu0 %2416
      %v2418 = vsel %vm727, %v2277, 0.0
      %2419 = vadd.xlane.f32.xlu0 %v2418
      %v2420 = vpop.xlane.xlu0 %2419
      %v2421 = vsel %vm727, %v2278, 0.0
      %2422 = vadd.xlane.f32.xlu0 %v2421
      %v2423 = vpop.xlane.xlu0 %2422
      %v2424 = vmul.f32 %v2330, %v824
      %v2425 = vmul.f32 %v2333, %v824
      %v2426 = vmul.f32 %v2336, %v824
      %v2427 = vmul.f32 %v2339, %v824
      %v2428 = vmul.f32 %v2342, %v824
      %v2429 = vmul.f32 %v2345, %v824
      %v2430 = vmul.f32 %v2348, %v824
      %v2431 = vmul.f32 %v2351, %v824
      %v2432 = vmul.f32 %v2354, %v824
      %v2433 = vmul.f32 %v2357, %v824
      %v2434 = vmul.f32 %v2360, %v824
      %v2435 = vmul.f32 %v2363, %v824
      %v2436 = vmul.f32 %v2366, %v824
      %v2437 = vmul.f32 %v2369, %v824
      %v2438 = vmul.f32 %v2372, %v824
      %v2439 = vmul.f32 %v2375, %v824
      %v2440 = vmul.f32 %v2378, %v824
      %v2441 = vmul.f32 %v2381, %v824
      %v2442 = vmul.f32 %v2384, %v824
      %v2443 = vmul.f32 %v2387, %v824
      %v2444 = vmul.f32 %v2390, %v824
      %v2445 = vmul.f32 %v2393, %v824
      %v2446 = vmul.f32 %v2396, %v824
      %v2447 = vmul.f32 %v2399, %v824
      %v2448 = vmul.f32 %v2402, %v824
      %v2449 = vmul.f32 %v2405, %v824
      %v2450 = vmul.f32 %v2408, %v824
      %v2451 = vmul.f32 %v2411, %v824
      %v2452 = vmul.f32 %v2414, %v824
      %v2453 = vmul.f32 %v2417, %v824
      %v2454 = vmul.f32 %v2420, %v824
      %v2455 = vmul.f32 %v2423, %v824
      %v2456 = vsub.f32 %v2312, %v2424
      %v2457 = vsub.f32 %v2313, %v2425
      %v2458 = vsub.f32 %v2314, %v2426
      %v2459 = vsub.f32 %v2315, %v2427
      %v2460 = vsub.f32 %v2316, %v2428
      %v2461 = vsub.f32 %v2317, %v2429
      %v2462 = vsub.f32 %v2318, %v2430
      %v2463 = vsub.f32 %v2319, %v2431
      %v2464 = vsub.f32 %v2320, %v2432
      %v2465 = vsub.f32 %v2321, %v2433
      %v2466 = vsub.f32 %v2322, %v2434
      %v2467 = vsub.f32 %v2323, %v2435
      %v2468 = vsub.f32 %v2324, %v2436
      %v2469 = vsub.f32 %v2325, %v2437
      %v2470 = vsub.f32 %v2326, %v2438
      %v2471 = vsub.f32 %v2327, %v2439
      %v2472 = vsub.f32 %v2263, %v2440
      %v2473 = vsub.f32 %v2264, %v2441
      %v2474 = vsub.f32 %v2265, %v2442
      %v2475 = vsub.f32 %v2266, %v2443
      %v2476 = vsub.f32 %v2267, %v2444
      %v2477 = vsub.f32 %v2268, %v2445
      %v2478 = vsub.f32 %v2269, %v2446
      %v2479 = vsub.f32 %v2270, %v2447
      %v2480 = vsub.f32 %v2271, %v2448
      %v2481 = vsub.f32 %v2272, %v2449
      %v2482 = vsub.f32 %v2273, %v2450
      %v2483 = vsub.f32 %v2274, %v2451
      %v2484 = vsub.f32 %v2275, %v2452
      %v2485 = vsub.f32 %v2276, %v2453
      %v2486 = vsub.f32 %v2277, %v2454
      %v2487 = vsub.f32 %v2278, %v2455
      %v2488 = vmul.f32 %v2456, %v2456
      %v2489 = vmul.f32 %v2457, %v2457
      %v2490 = vmul.f32 %v2458, %v2458
      %v2491 = vmul.f32 %v2459, %v2459
      %v2492 = vmul.f32 %v2460, %v2460
      %v2493 = vmul.f32 %v2461, %v2461
      %v2494 = vmul.f32 %v2462, %v2462
      %v2495 = vmul.f32 %v2463, %v2463
      %v2496 = vmul.f32 %v2464, %v2464
      %v2497 = vmul.f32 %v2465, %v2465
      %v2498 = vmul.f32 %v2466, %v2466
      %v2499 = vmul.f32 %v2467, %v2467
      %v2500 = vmul.f32 %v2468, %v2468
      %v2501 = vmul.f32 %v2469, %v2469
      %v2502 = vmul.f32 %v2470, %v2470
      %v2503 = vmul.f32 %v2471, %v2471
      %v2504 = vmul.f32 %v2472, %v2472
      %v2505 = vmul.f32 %v2473, %v2473
      %v2506 = vmul.f32 %v2474, %v2474
      %v2507 = vmul.f32 %v2475, %v2475
      %v2508 = vmul.f32 %v2476, %v2476
      %v2509 = vmul.f32 %v2477, %v2477
      %v2510 = vmul.f32 %v2478, %v2478
      %v2511 = vmul.f32 %v2479, %v2479
      %v2512 = vmul.f32 %v2480, %v2480
      %v2513 = vmul.f32 %v2481, %v2481
      %v2514 = vmul.f32 %v2482, %v2482
      %v2515 = vmul.f32 %v2483, %v2483
      %v2516 = vmul.f32 %v2484, %v2484
      %v2517 = vmul.f32 %v2485, %v2485
      %v2518 = vmul.f32 %v2486, %v2486
      %v2519 = vmul.f32 %v2487, %v2487
      %v2520 = vsel %vm727, %v2488, 0.0
      %2521 = vadd.xlane.f32.xlu0 %v2520
      %v2522 = vpop.xlane.xlu0 %2521
      %v2523 = vsel %vm727, %v2489, 0.0
      %2524 = vadd.xlane.f32.xlu0 %v2523
      %v2525 = vpop.xlane.xlu0 %2524
      %v2526 = vsel %vm727, %v2490, 0.0
      %2527 = vadd.xlane.f32.xlu0 %v2526
      %v2528 = vpop.xlane.xlu0 %2527
      %v2529 = vsel %vm727, %v2491, 0.0
      %2530 = vadd.xlane.f32.xlu0 %v2529
      %v2531 = vpop.xlane.xlu0 %2530
      %v2532 = vsel %vm727, %v2492, 0.0
      %2533 = vadd.xlane.f32.xlu0 %v2532
      %v2534 = vpop.xlane.xlu0 %2533
      %v2535 = vsel %vm727, %v2493, 0.0
      %2536 = vadd.xlane.f32.xlu0 %v2535
      %v2537 = vpop.xlane.xlu0 %2536
      %v2538 = vsel %vm727, %v2494, 0.0
      %2539 = vadd.xlane.f32.xlu0 %v2538
      %v2540 = vpop.xlane.xlu0 %2539
      %v2541 = vsel %vm727, %v2495, 0.0
      %2542 = vadd.xlane.f32.xlu0 %v2541
      %v2543 = vpop.xlane.xlu0 %2542
      %v2544 = vsel %vm727, %v2496, 0.0
      %2545 = vadd.xlane.f32.xlu0 %v2544
      %v2546 = vpop.xlane.xlu0 %2545
      %v2547 = vsel %vm727, %v2497, 0.0
      %2548 = vadd.xlane.f32.xlu0 %v2547
      %v2549 = vpop.xlane.xlu0 %2548
      %v2550 = vsel %vm727, %v2498, 0.0
      %2551 = vadd.xlane.f32.xlu0 %v2550
      %v2552 = vpop.xlane.xlu0 %2551
      %v2553 = vsel %vm727, %v2499, 0.0
      %2554 = vadd.xlane.f32.xlu0 %v2553
      %v2555 = vpop.xlane.xlu0 %2554
      %v2556 = vsel %vm727, %v2500, 0.0
      %2557 = vadd.xlane.f32.xlu0 %v2556
      %v2558 = vpop.xlane.xlu0 %2557
      %v2559 = vsel %vm727, %v2501, 0.0
      %2560 = vadd.xlane.f32.xlu0 %v2559
      %v2561 = vpop.xlane.xlu0 %2560
      %v2562 = vsel %vm727, %v2502, 0.0
      %2563 = vadd.xlane.f32.xlu0 %v2562
      %v2564 = vpop.xlane.xlu0 %2563
      %v2565 = vsel %vm727, %v2503, 0.0
      %2566 = vadd.xlane.f32.xlu0 %v2565
      %v2567 = vpop.xlane.xlu0 %2566
      %v2568 = vsel %vm727, %v2504, 0.0
      %2569 = vadd.xlane.f32.xlu0 %v2568
      %v2570 = vpop.xlane.xlu0 %2569
      %v2571 = vsel %vm727, %v2505, 0.0
      %2572 = vadd.xlane.f32.xlu0 %v2571
      %v2573 = vpop.xlane.xlu0 %2572
      %v2574 = vsel %vm727, %v2506, 0.0
      %2575 = vadd.xlane.f32.xlu0 %v2574
      %v2576 = vpop.xlane.xlu0 %2575
      %v2577 = vsel %vm727, %v2507, 0.0
      %2578 = vadd.xlane.f32.xlu0 %v2577
      %v2579 = vpop.xlane.xlu0 %2578
      %v2580 = vsel %vm727, %v2508, 0.0
      %2581 = vadd.xlane.f32.xlu0 %v2580
      %v2582 = vpop.xlane.xlu0 %2581
      %v2583 = vsel %vm727, %v2509, 0.0
      %2584 = vadd.xlane.f32.xlu0 %v2583
      %v2585 = vpop.xlane.xlu0 %2584
      %v2586 = vsel %vm727, %v2510, 0.0
      %2587 = vadd.xlane.f32.xlu0 %v2586
      %v2588 = vpop.xlane.xlu0 %2587
      %v2589 = vsel %vm727, %v2511, 0.0
      %2590 = vadd.xlane.f32.xlu0 %v2589
      %v2591 = vpop.xlane.xlu0 %2590
      %v2592 = vsel %vm727, %v2512, 0.0
      %2593 = vadd.xlane.f32.xlu0 %v2592
      %v2594 = vpop.xlane.xlu0 %2593
      %v2595 = vsel %vm727, %v2513, 0.0
      %2596 = vadd.xlane.f32.xlu0 %v2595
      %v2597 = vpop.xlane.xlu0 %2596
      %v2598 = vsel %vm727, %v2514, 0.0
      %2599 = vadd.xlane.f32.xlu0 %v2598
      %v2600 = vpop.xlane.xlu0 %2599
      %v2601 = vsel %vm727, %v2515, 0.0
      %2602 = vadd.xlane.f32.xlu0 %v2601
      %v2603 = vpop.xlane.xlu0 %2602
      %v2604 = vsel %vm727, %v2516, 0.0
      %2605 = vadd.xlane.f32.xlu0 %v2604
      %v2606 = vpop.xlane.xlu0 %2605
      %v2607 = vsel %vm727, %v2517, 0.0
      %2608 = vadd.xlane.f32.xlu0 %v2607
      %v2609 = vpop.xlane.xlu0 %2608
      %v2610 = vsel %vm727, %v2518, 0.0
      %2611 = vadd.xlane.f32.xlu0 %v2610
      %v2612 = vpop.xlane.xlu0 %2611
      %v2613 = vsel %vm727, %v2519, 0.0
      %2614 = vadd.xlane.f32.xlu0 %v2613
      %v2615 = vpop.xlane.xlu0 %2614
      %v2616 = vmul.f32 %v2522, %v824
      %v2617 = vmul.f32 %v2525, %v824
      %v2618 = vmul.f32 %v2528, %v824
      %v2619 = vmul.f32 %v2531, %v824
      %v2620 = vmul.f32 %v2534, %v824
      %v2621 = vmul.f32 %v2537, %v824
      %v2622 = vmul.f32 %v2540, %v824
      %v2623 = vmul.f32 %v2543, %v824
      %v2624 = vmul.f32 %v2546, %v824
      %v2625 = vmul.f32 %v2549, %v824
      %v2626 = vmul.f32 %v2552, %v824
      %v2627 = vmul.f32 %v2555, %v824
      %v2628 = vmul.f32 %v2558, %v824
      %v2629 = vmul.f32 %v2561, %v824
      %v2630 = vmul.f32 %v2564, %v824
      %v2631 = vmul.f32 %v2567, %v824
      %v2632 = vmul.f32 %v2570, %v824
      %v2633 = vmul.f32 %v2573, %v824
      %v2634 = vmul.f32 %v2576, %v824
      %v2635 = vmul.f32 %v2579, %v824
      %v2636 = vmul.f32 %v2582, %v824
      %v2637 = vmul.f32 %v2585, %v824
      %v2638 = vmul.f32 %v2588, %v824
      %v2639 = vmul.f32 %v2591, %v824
      %v2640 = vmul.f32 %v2594, %v824
      %v2641 = vmul.f32 %v2597, %v824
      %v2642 = vmul.f32 %v2600, %v824
      %v2643 = vmul.f32 %v2603, %v824
      %v2644 = vmul.f32 %v2606, %v824
      %v2645 = vmul.f32 %v2609, %v824
      %v2646 = vmul.f32 %v2612, %v824
      %v2647 = vmul.f32 %v2615, %v824
      %v2648 = vadd.f32 %v2616, 1e-05
      %v2649 = vadd.f32 %v2617, 1e-05
      %v2650 = vadd.f32 %v2618, 1e-05
      %v2651 = vadd.f32 %v2619, 1e-05
      %v2652 = vadd.f32 %v2620, 1e-05
      %v2653 = vadd.f32 %v2621, 1e-05
      %v2654 = vadd.f32 %v2622, 1e-05
      %v2655 = vadd.f32 %v2623, 1e-05
      %v2656 = vadd.f32 %v2624, 1e-05
      %v2657 = vadd.f32 %v2625, 1e-05
      %v2658 = vadd.f32 %v2626, 1e-05
      %v2659 = vadd.f32 %v2627, 1e-05
      %v2660 = vadd.f32 %v2628, 1e-05
      %v2661 = vadd.f32 %v2629, 1e-05
      %v2662 = vadd.f32 %v2630, 1e-05
      %v2663 = vadd.f32 %v2631, 1e-05
      %v2664 = vadd.f32 %v2632, 1e-05
      %v2665 = vadd.f32 %v2633, 1e-05
      %v2666 = vadd.f32 %v2634, 1e-05
      %v2667 = vadd.f32 %v2635, 1e-05
      %v2668 = vadd.f32 %v2636, 1e-05
      %v2669 = vadd.f32 %v2637, 1e-05
      %v2670 = vadd.f32 %v2638, 1e-05
      %v2671 = vadd.f32 %v2639, 1e-05
      %v2672 = vadd.f32 %v2640, 1e-05
      %v2673 = vadd.f32 %v2641, 1e-05
      %v2674 = vadd.f32 %v2642, 1e-05
      %v2675 = vadd.f32 %v2643, 1e-05
      %v2676 = vadd.f32 %v2644, 1e-05
      %v2677 = vadd.f32 %v2645, 1e-05
      %v2678 = vadd.f32 %v2646, 1e-05
      %v2679 = vadd.f32 %v2647, 1e-05
      %v2680 = vrsqrt.pop %v2648
      %v2681 = vrsqrt.pop %v2649
      %v2682 = vrsqrt.pop %v2650
      %v2683 = vrsqrt.pop %v2651
      %v2684 = vrsqrt.pop %v2652
      %v2685 = vrsqrt.pop %v2653
      %v2686 = vrsqrt.pop %v2654
      %v2687 = vrsqrt.pop %v2655
      %v2688 = vrsqrt.pop %v2656
      %v2689 = vrsqrt.pop %v2657
      %v2690 = vrsqrt.pop %v2658
      %v2691 = vrsqrt.pop %v2659
      %v2692 = vrsqrt.pop %v2660
      %v2693 = vrsqrt.pop %v2661
      %v2694 = vrsqrt.pop %v2662
      %v2695 = vrsqrt.pop %v2663
      %v2696 = vrsqrt.pop %v2664
      %v2697 = vrsqrt.pop %v2665
      %v2698 = vrsqrt.pop %v2666
      %v2699 = vrsqrt.pop %v2667
      %v2700 = vrsqrt.pop %v2668
      %v2701 = vrsqrt.pop %v2669
      %v2702 = vrsqrt.pop %v2670
      %v2703 = vrsqrt.pop %v2671
      %v2704 = vrsqrt.pop %v2672
      %v2705 = vrsqrt.pop %v2673
      %v2706 = vrsqrt.pop %v2674
      %v2707 = vrsqrt.pop %v2675
      %v2708 = vrsqrt.pop %v2676
      %v2709 = vrsqrt.pop %v2677
      %v2710 = vrsqrt.pop %v2678
      %v2711 = vrsqrt.pop %v2679
      %v2712 = vmul.f32 %v2456, %v2680
      %v2713 = vmul.f32 %v2457, %v2681
      %v2714 = vmul.f32 %v2458, %v2682
      %v2715 = vmul.f32 %v2459, %v2683
      %v2716 = vmul.f32 %v2460, %v2684
      %v2717 = vmul.f32 %v2461, %v2685
      %v2718 = vmul.f32 %v2462, %v2686
      %v2719 = vmul.f32 %v2463, %v2687
      %v2720 = vmul.f32 %v2464, %v2688
      %v2721 = vmul.f32 %v2465, %v2689
      %v2722 = vmul.f32 %v2466, %v2690
      %v2723 = vmul.f32 %v2467, %v2691
      %v2724 = vmul.f32 %v2468, %v2692
      %v2725 = vmul.f32 %v2469, %v2693
      %v2726 = vmul.f32 %v2470, %v2694
      %v2727 = vmul.f32 %v2471, %v2695
      %v2728 = vmul.f32 %v2472, %v2696
      %v2729 = vmul.f32 %v2473, %v2697
      %v2730 = vmul.f32 %v2474, %v2698
      %v2731 = vmul.f32 %v2475, %v2699
      %v2732 = vmul.f32 %v2476, %v2700
      %v2733 = vmul.f32 %v2477, %v2701
      %v2734 = vmul.f32 %v2478, %v2702
      %v2735 = vmul.f32 %v2479, %v2703
      %v2736 = vmul.f32 %v2480, %v2704
      %v2737 = vmul.f32 %v2481, %v2705
      %v2738 = vmul.f32 %v2482, %v2706
      %v2739 = vmul.f32 %v2483, %v2707
      %v2740 = vmul.f32 %v2484, %v2708
      %v2741 = vmul.f32 %v2485, %v2709
      %v2742 = vmul.f32 %v2486, %v2710
      %v2743 = vmul.f32 %v2487, %v2711
      %v2744 = vmul.f32 %v2712, %v1148
      %v2745 = vmul.f32 %v2713, %v1148
      %v2746 = vmul.f32 %v2714, %v1148
      %v2747 = vmul.f32 %v2715, %v1148
      %v2748 = vmul.f32 %v2716, %v1148
      %v2749 = vmul.f32 %v2717, %v1148
      %v2750 = vmul.f32 %v2718, %v1148
      %v2751 = vmul.f32 %v2719, %v1148
      %v2752 = vmul.f32 %v2720, %v1148
      %v2753 = vmul.f32 %v2721, %v1148
      %v2754 = vmul.f32 %v2722, %v1148
      %v2755 = vmul.f32 %v2723, %v1148
      %v2756 = vmul.f32 %v2724, %v1148
      %v2757 = vmul.f32 %v2725, %v1148
      %v2758 = vmul.f32 %v2726, %v1148
      %v2759 = vmul.f32 %v2727, %v1148
      %v2760 = vmul.f32 %v2728, %v1148
      %v2761 = vmul.f32 %v2729, %v1148
      %v2762 = vmul.f32 %v2730, %v1148
      %v2763 = vmul.f32 %v2731, %v1148
      %v2764 = vmul.f32 %v2732, %v1148
      %v2765 = vmul.f32 %v2733, %v1148
      %v2766 = vmul.f32 %v2734, %v1148
      %v2767 = vmul.f32 %v2735, %v1148
      %v2768 = vmul.f32 %v2736, %v1148
      %v2769 = vmul.f32 %v2737, %v1148
      %v2770 = vmul.f32 %v2738, %v1148
      %v2771 = vmul.f32 %v2739, %v1148
      %v2772 = vmul.f32 %v2740, %v1148
      %v2773 = vmul.f32 %v2741, %v1148
      %v2774 = vmul.f32 %v2742, %v1148
      %v2775 = vmul.f32 %v2743, %v1148
      %v2776 = vadd.f32 %v2744, %v1184
      %v2777 = vadd.f32 %v2745, %v1184
      %v2778 = vadd.f32 %v2746, %v1184
      %v2779 = vadd.f32 %v2747, %v1184
      %v2780 = vadd.f32 %v2748, %v1184
      %v2781 = vadd.f32 %v2749, %v1184
      %v2782 = vadd.f32 %v2750, %v1184
      %v2783 = vadd.f32 %v2751, %v1184
      %v2784 = vadd.f32 %v2752, %v1184
      %v2785 = vadd.f32 %v2753, %v1184
      %v2786 = vadd.f32 %v2754, %v1184
      %v2787 = vadd.f32 %v2755, %v1184
      %v2788 = vadd.f32 %v2756, %v1184
      %v2789 = vadd.f32 %v2757, %v1184
      %v2790 = vadd.f32 %v2758, %v1184
      %v2791 = vadd.f32 %v2759, %v1184
      %v2792 = vadd.f32 %v2760, %v1184
      %v2793 = vadd.f32 %v2761, %v1184
      %v2794 = vadd.f32 %v2762, %v1184
      %v2795 = vadd.f32 %v2763, %v1184
      %v2796 = vadd.f32 %v2764, %v1184
      %v2797 = vadd.f32 %v2765, %v1184
      %v2798 = vadd.f32 %v2766, %v1184
      %v2799 = vadd.f32 %v2767, %v1184
      %v2800 = vadd.f32 %v2768, %v1184
      %v2801 = vadd.f32 %v2769, %v1184
      %v2802 = vadd.f32 %v2770, %v1184
      %v2803 = vadd.f32 %v2771, %v1184
      %v2804 = vadd.f32 %v2772, %v1184
      %v2805 = vadd.f32 %v2773, %v1184
      %v2806 = vadd.f32 %v2774, %v1184
      %v2807 = vadd.f32 %v2775, %v1184
      %s2808 = scalar_lea.vmem %s416, 8
      %v2809 = vld [vmem:[%s2808] sm:$0xff]
      %v2810 = vsel %vm727, %v2809, 0.0
      %2811 = vadd.xlane.f32.xlu0 %v2810
      %v2812 = vpop.xlane.xlu0 %2811
      %v2813 = vmul.f32 %v2812, %v824
      %v2814 = vsub.f32 %v2809, %v2813
      %v2815 = vmul.f32 %v2814, %v2814
      %v2816 = vsel %vm727, %v2815, 0.0
      %2817 = vadd.xlane.f32.xlu0 %v2816
      %v2818 = vpop.xlane.xlu0 %2817
      %v2819 = vmul.f32 %v2818, %v824
      %v2820 = vadd.f32 %v2819, 1e-05
      %v2821 = vrsqrt.pop %v2820
      %v2822 = vmul.f32 %v2814, %v2821
      %v2823 = vmul.f32 %v2822, %v1234
      %v2824 = vadd.f32 %v2823, %v1239
      %v2825 = vpack.c.bf16 %v2247, %v2246
      %v2826 = vpack.c.bf16 %v2249, %v2248
      %v2827 = vpack.c.bf16 %v2251, %v2250
      %v2828 = vpack.c.bf16 %v2253, %v2252
      %v2829 = vpack.c.bf16 %v2255, %v2254
      %v2830 = vpack.c.bf16 %v2257, %v2256
      %v2831 = vpack.c.bf16 %v2259, %v2258
      %v2832 = vpack.c.bf16 %v2261, %v2260
      %v2833 = vpack.c.bf16 %v2777, %v2776
      %v2834 = vpack.c.bf16 %v2779, %v2778
      %v2835 = vpack.c.bf16 %v2781, %v2780
      %v2836 = vpack.c.bf16 %v2783, %v2782
      %v2837 = vpack.c.bf16 %v2785, %v2784
      %v2838 = vpack.c.bf16 %v2787, %v2786
      %v2839 = vpack.c.bf16 %v2789, %v2788
      %v2840 = vpack.c.bf16 %v2791, %v2790
      %v2841 = vpack.c.bf16 %v2793, %v2792
      %v2842 = vpack.c.bf16 %v2795, %v2794
      %v2843 = vpack.c.bf16 %v2797, %v2796
      %v2844 = vpack.c.bf16 %v2799, %v2798
      %v2845 = vpack.c.bf16 %v2801, %v2800
      %v2846 = vpack.c.bf16 %v2803, %v2802
      %v2847 = vpack.c.bf16 %v2805, %v2804
      %v2848 = vpack.c.bf16 %v2807, %v2806
      %v2849 = vpack.c.bf16 %v2824, %v2824
      %v2851 = vsel %vm727, %v2825, 0
      %v2854 = vsel %vm727, %v2826, 0
      %v2857 = vsel %vm727, %v2827, 0
      %v2860 = vsel %vm727, %v2828, 0
      %v2863 = vsel %vm727, %v2829, 0
      %v2866 = vsel %vm727, %v2830, 0
      %v2869 = vsel %vm727, %v2831, 0
      %v2872 = vsel %vm727, %v2832, 0
      %v2875 = vsel %vm727, %v2833, 0
      %v2878 = vsel %vm727, %v2834, 0
      %v2881 = vsel %vm727, %v2835, 0
      %v2884 = vsel %vm727, %v2836, 0
      %v2887 = vsel %vm727, %v2837, 0
      %v2890 = vsel %vm727, %v2838, 0
      %v2893 = vsel %vm727, %v2839, 0
      %v2896 = vsel %vm727, %v2840, 0
      %v2899 = vsel %vm727, %v2841, 0
      %v2902 = vsel %vm727, %v2842, 0
      %v2905 = vsel %vm727, %v2843, 0
      %v2908 = vsel %vm727, %v2844, 0
      %v2911 = vsel %vm727, %v2845, 0
      %v2914 = vsel %vm727, %v2846, 0
      %v2917 = vsel %vm727, %v2847, 0
      %v2920 = vsel %vm727, %v2848, 0
      %2922 = vmatprep.subr.bf16.mxu0 0
      %2923 = vmatpush1.bf16.xpose.msra.mxu0 %v2875
      %2924 = vmatprep.subr.bf16.mxu0 0
      %2925 = vmatpush1.bf16.xpose.msra.mxu0 %v2878
      %2926 = vmatprep.subr.bf16.mxu0 0
      %2927 = vmatpush1.bf16.xpose.msra.mxu0 %v2881
      %2928 = vmatprep.subr.bf16.mxu0 0
      %2929 = vmatpush1.bf16.xpose.msra.mxu0 %v2884
      %2930 = vmatprep.subr.bf16.mxu0 0
      %2931 = vmatpush1.bf16.xpose.msra.mxu0 %v2887
      %2932 = vmatprep.subr.bf16.mxu0 0
      %2933 = vmatpush1.bf16.xpose.msra.mxu0 %v2890
      %2934 = vmatprep.subr.bf16.mxu0 0
      %2935 = vmatpush1.bf16.xpose.msra.mxu0 %v2893
      %2936 = vmatprep.subr.bf16.mxu0 0
      %2937 = vmatpush1.bf16.xpose.msra.mxu0 %v2896
      %2938 = vmatprep.subr.bf16.mxu0 0
      %2939 = vmatpush1.bf16.xpose.msra.mxu0 %v2899
      %2940 = vmatprep.subr.bf16.mxu0 0
      %2941 = vmatpush1.bf16.xpose.msra.mxu0 %v2902
      %2942 = vmatprep.subr.bf16.mxu0 0
      %2943 = vmatpush1.bf16.xpose.msra.mxu0 %v2905
      %2944 = vmatprep.subr.bf16.mxu0 0
      %2945 = vmatpush1.bf16.xpose.msra.mxu0 %v2908
      %2946 = vmatprep.subr.bf16.mxu0 0
      %2947 = vmatpush1.bf16.xpose.msra.mxu0 %v2911
      %2948 = vmatprep.subr.bf16.mxu0 0
      %2949 = vmatpush1.bf16.xpose.msra.mxu0 %v2914
      %2950 = vmatprep.subr.bf16.mxu0 0
      %2951 = vmatpush1.bf16.xpose.msra.mxu0 %v2917
      %2952 = vmatprep.subr.bf16.mxu0 0
      %2953 = vmatpush1.bf16.xpose.msra.mxu0 %v2920
      %2954 = vmatprep.mubr.bf16.mxu0 0
      %2955 = vmatmul.mubr.bf16.gmra.mrb[0].mxu0 %v2851
      %v2956 = vpop.f32.mrb[0].mxu0
      %v2957 = vadd.f32 0.0, %v2956
      %v2958 = vpop.f32.mrb[0].mxu0
      %v2959 = vadd.f32 0.0, %v2958
      %v2960 = vpop.f32.mrb[0].mxu0
      %v2961 = vadd.f32 0.0, %v2960
      %v2962 = vpop.f32.mrb[0].mxu0
      %v2963 = vadd.f32 0.0, %v2962
      %2964 = vmatprep.mubr.bf16.mxu0 0
      %2965 = vmatmul.mubr.bf16.gmra.mrb[0].mxu0 %v2854
      %v2966 = vpop.f32.mrb[0].mxu0
      %v2967 = vadd.f32 0.0, %v2966
      %v2968 = vpop.f32.mrb[0].mxu0
      %v2969 = vadd.f32 0.0, %v2968
      %v2970 = vpop.f32.mrb[0].mxu0
      %v2971 = vadd.f32 0.0, %v2970
      %v2972 = vpop.f32.mrb[0].mxu0
      %v2973 = vadd.f32 0.0, %v2972
      %2974 = vmatprep.mubr.bf16.mxu0 0
      %2975 = vmatmul.mubr.bf16.gmra.mrb[0].mxu0 %v2857
      %v2976 = vpop.f32.mrb[0].mxu0
      %v2977 = vadd.f32 0.0, %v2976
      %v2978 = vpop.f32.mrb[0].mxu0
      %v2979 = vadd.f32 0.0, %v2978
      %v2980 = vpop.f32.mrb[0].mxu0
      %v2981 = vadd.f32 0.0, %v2980
      %v2982 = vpop.f32.mrb[0].mxu0
      %v2983 = vadd.f32 0.0, %v2982
      %2984 = vmatprep.mubr.bf16.mxu0 0
      %2985 = vmatmul.mubr.bf16.gmra.mrb[0].mxu0 %v2860
      %v2986 = vpop.f32.mrb[0].mxu0
      %v2987 = vadd.f32 0.0, %v2986
      %v2988 = vpop.f32.mrb[0].mxu0
      %v2989 = vadd.f32 0.0, %v2988
      %v2990 = vpop.f32.mrb[0].mxu0
      %v2991 = vadd.f32 0.0, %v2990
      %v2992 = vpop.f32.mrb[0].mxu0
      %v2993 = vadd.f32 0.0, %v2992
      %2994 = vmatprep.mubr.bf16.mxu0 0
      %2995 = vmatmul.mubr.bf16.gmra.mrb[0].mxu0 %v2863
      %v2996 = vpop.f32.mrb[0].mxu0
      %v2997 = vadd.f32 0.0, %v2996
      %v2998 = vpop.f32.mrb[0].mxu0
      %v2999 = vadd.f32 0.0, %v2998
      %v3000 = vpop.f32.mrb[0].mxu0
      %v3001 = vadd.f32 0.0, %v3000
      %v3002 = vpop.f32.mrb[0].mxu0
      %v3003 = vadd.f32 0.0, %v3002
      %3004 = vmatprep.mubr.bf16.mxu0 0
      %3005 = vmatmul.mubr.bf16.gmra.mrb[0].mxu0 %v2866
      %v3006 = vpop.f32.mrb[0].mxu0
      %v3007 = vadd.f32 0.0, %v3006
      %v3008 = vpop.f32.mrb[0].mxu0
      %v3009 = vadd.f32 0.0, %v3008
      %v3010 = vpop.f32.mrb[0].mxu0
      %v3011 = vadd.f32 0.0, %v3010
      %v3012 = vpop.f32.mrb[0].mxu0
      %v3013 = vadd.f32 0.0, %v3012
      %3014 = vmatprep.mubr.bf16.mxu0 0
      %3015 = vmatmul.mubr.bf16.gmra.mrb[0].mxu0 %v2869
      %v3016 = vpop.f32.mrb[0].mxu0
      %v3017 = vadd.f32 0.0, %v3016
      %v3018 = vpop.f32.mrb[0].mxu0
      %v3019 = vadd.f32 0.0, %v3018
      %v3020 = vpop.f32.mrb[0].mxu0
      %v3021 = vadd.f32 0.0, %v3020
      %v3022 = vpop.f32.mrb[0].mxu0
      %v3023 = vadd.f32 0.0, %v3022
      %3024 = vmatprep.mubr.bf16.mxu0 0
      %3025 = vmatmul.mubr.bf16.gmra.mrb[0].mxu0 %v2872
      %v3026 = vpop.f32.mrb[0].mxu0
      %v3027 = vadd.f32 0.0, %v3026
      %v3028 = vpop.f32.mrb[0].mxu0
      %v3029 = vadd.f32 0.0, %v3028
      %v3030 = vpop.f32.mrb[0].mxu0
      %v3031 = vadd.f32 0.0, %v3030
      %v3032 = vpop.f32.mrb[0].mxu0
      %v3033 = vadd.f32 0.0, %v3032
      %3034 = vdwg.mxu0
      %v3036 = vsel %vm727, %v2849, 0
      %3038 = vmatprep.subr.bf16.mxu0 0
      %3039 = vmatpush1.bf16.xpose.msra.mxu0 %v3036
      %3040 = vmatprep.subr.bf16.mxu0 0
      %3041 = vmatpush1.bf16.xpose.msra.mxu0 0
      %3042 = vmatprep.subr.bf16.mxu0 0
      %3043 = vmatpush1.bf16.xpose.msra.mxu0 0
      %3044 = vmatprep.subr.bf16.mxu0 0
      %3045 = vmatpush1.bf16.xpose.msra.mxu0 0
      %3046 = vmatprep.subr.bf16.mxu0 0
      %3047 = vmatpush1.bf16.xpose.msra.mxu0 0
      %3048 = vmatprep.subr.bf16.mxu0 0
      %3049 = vmatpush1.bf16.xpose.msra.mxu0 0
      %3050 = vmatprep.subr.bf16.mxu0 0
      %3051 = vmatpush1.bf16.xpose.msra.mxu0 0
      %3052 = vmatprep.subr.bf16.mxu0 0
      %3053 = vmatpush1.bf16.xpose.msra.mxu0 0
      %3054 = vmatprep.subr.bf16.mxu0 0
      %3055 = vmatpush1.bf16.xpose.msra.mxu0 0
      %3056 = vmatprep.subr.bf16.mxu0 0
      %3057 = vmatpush1.bf16.xpose.msra.mxu0 0
      %3058 = vmatprep.subr.bf16.mxu0 0
      %3059 = vmatpush1.bf16.xpose.msra.mxu0 0
      %3060 = vmatprep.subr.bf16.mxu0 0
      %3061 = vmatpush1.bf16.xpose.msra.mxu0 0
      %3062 = vmatprep.subr.bf16.mxu0 0
      %3063 = vmatpush1.bf16.xpose.msra.mxu0 0
      %3064 = vmatprep.subr.bf16.mxu0 0
      %3065 = vmatpush1.bf16.xpose.msra.mxu0 0
      %3066 = vmatprep.subr.bf16.mxu0 0
      %3067 = vmatpush1.bf16.xpose.msra.mxu0 0
      %3068 = vmatprep.subr.bf16.mxu0 0
      %3069 = vmatpush1.bf16.xpose.msra.mxu0 0
      %3070 = vmatprep.mubr.bf16.mxu0 0
      %3071 = vmatmul.mubr.bf16.gmra.mrb[0].mxu0 %v2851
      %v3072 = vpop.f32.mrb[0].mxu0
      %v3073 = vadd.f32 0.0, %v3072
      %v3074 = vpop.f32.mrb[0].mxu0
      %v3075 = vpop.f32.mrb[0].mxu0
      %v3076 = vadd.f32 0.0, %v3075
      %v3077 = vpop.f32.mrb[0].mxu0
      %3078 = vmatprep.mubr.bf16.mxu0 0
      %3079 = vmatmul.mubr.bf16.gmra.mrb[0].mxu0 %v2854
      %v3080 = vpop.f32.mrb[0].mxu0
      %v3081 = vadd.f32 0.0, %v3080
      %v3082 = vpop.f32.mrb[0].mxu0
      %v3083 = vpop.f32.mrb[0].mxu0
      %v3084 = vadd.f32 0.0, %v3083
      %v3085 = vpop.f32.mrb[0].mxu0
      %3086 = vmatprep.mubr.bf16.mxu0 0
      %3087 = vmatmul.mubr.bf16.gmra.mrb[0].mxu0 %v2857
      %v3088 = vpop.f32.mrb[0].mxu0
      %v3089 = vadd.f32 0.0, %v3088
      %v3090 = vpop.f32.mrb[0].mxu0
      %v3091 = vpop.f32.mrb[0].mxu0
      %v3092 = vadd.f32 0.0, %v3091
      %v3093 = vpop.f32.mrb[0].mxu0
      %3094 = vmatprep.mubr.bf16.mxu0 0
      %3095 = vmatmul.mubr.bf16.gmra.mrb[0].mxu0 %v2860
      %v3096 = vpop.f32.mrb[0].mxu0
      %v3097 = vadd.f32 0.0, %v3096
      %v3098 = vpop.f32.mrb[0].mxu0
      %v3099 = vpop.f32.mrb[0].mxu0
      %v3100 = vadd.f32 0.0, %v3099
      %v3101 = vpop.f32.mrb[0].mxu0
      %3102 = vmatprep.mubr.bf16.mxu0 0
      %3103 = vmatmul.mubr.bf16.gmra.mrb[0].mxu0 %v2863
      %v3104 = vpop.f32.mrb[0].mxu0
      %v3105 = vadd.f32 0.0, %v3104
      %v3106 = vpop.f32.mrb[0].mxu0
      %v3107 = vpop.f32.mrb[0].mxu0
      %v3108 = vadd.f32 0.0, %v3107
      %v3109 = vpop.f32.mrb[0].mxu0
      %3110 = vmatprep.mubr.bf16.mxu0 0
      %3111 = vmatmul.mubr.bf16.gmra.mrb[0].mxu0 %v2866
      %v3112 = vpop.f32.mrb[0].mxu0
      %v3113 = vadd.f32 0.0, %v3112
      %v3114 = vpop.f32.mrb[0].mxu0
      %v3115 = vpop.f32.mrb[0].mxu0
      %v3116 = vadd.f32 0.0, %v3115
      %v3117 = vpop.f32.mrb[0].mxu0
      %3118 = vmatprep.mubr.bf16.mxu0 0
      %3119 = vmatmul.mubr.bf16.gmra.mrb[0].mxu0 %v2869
      %v3120 = vpop.f32.mrb[0].mxu0
      %v3121 = vadd.f32 0.0, %v3120
      %v3122 = vpop.f32.mrb[0].mxu0
      %v3123 = vpop.f32.mrb[0].mxu0
      %v3124 = vadd.f32 0.0, %v3123
      %v3125 = vpop.f32.mrb[0].mxu0
      %3126 = vmatprep.mubr.bf16.mxu0 0
      %3127 = vmatmul.mubr.bf16.gmra.mrb[0].mxu0 %v2872
      %v3128 = vpop.f32.mrb[0].mxu0
      %v3129 = vadd.f32 0.0, %v3128
      %v3130 = vpop.f32.mrb[0].mxu0
      %v3131 = vpop.f32.mrb[0].mxu0
      %v3132 = vadd.f32 0.0, %v3131
      %v3133 = vpop.f32.mrb[0].mxu0
      %3134 = vdwg.mxu0
      %v3135 = vsel %vm570, %v2957, -3.4028235e+38
      %v3136 = vsel %vm571, %v2959, -3.4028235e+38
      %v3137 = vsel %vm572, %v2961, -3.4028235e+38
      %v3138 = vsel %vm573, %v2963, -3.4028235e+38
      %v3139 = vsel %vm574, %v2967, -3.4028235e+38
      %v3140 = vsel %vm575, %v2969, -3.4028235e+38
      %v3141 = vsel %vm576, %v2971, -3.4028235e+38
      %v3142 = vsel %vm577, %v2973, -3.4028235e+38
      %v3143 = vsel %vm578, %v2977, -3.4028235e+38
      %v3144 = vsel %vm579, %v2979, -3.4028235e+38
      %v3145 = vsel %vm580, %v2981, -3.4028235e+38
      %v3146 = vsel %vm581, %v2983, -3.4028235e+38
      %v3147 = vsel %vm582, %v2987, -3.4028235e+38
      %v3148 = vsel %vm583, %v2989, -3.4028235e+38
      %v3149 = vsel %vm584, %v2991, -3.4028235e+38
      %v3150 = vsel %vm585, %v2993, -3.4028235e+38
      %v3151 = vsel %vm586, %v2997, -3.4028235e+38
      %v3152 = vsel %vm587, %v2999, -3.4028235e+38
      %v3153 = vsel %vm588, %v3001, -3.4028235e+38
      %v3154 = vsel %vm589, %v3003, -3.4028235e+38
      %v3155 = vsel %vm590, %v3007, -3.4028235e+38
      %v3156 = vsel %vm591, %v3009, -3.4028235e+38
      %v3157 = vsel %vm592, %v3011, -3.4028235e+38
      %v3158 = vsel %vm593, %v3013, -3.4028235e+38
      %v3159 = vsel %vm594, %v3017, -3.4028235e+38
      %v3160 = vsel %vm595, %v3019, -3.4028235e+38
      %v3161 = vsel %vm596, %v3021, -3.4028235e+38
      %v3162 = vsel %vm597, %v3023, -3.4028235e+38
      %v3163 = vsel %vm598, %v3027, -3.4028235e+38
      %v3164 = vsel %vm599, %v3029, -3.4028235e+38
      %v3165 = vsel %vm600, %v3031, -3.4028235e+38
      %v3166 = vsel %vm601, %v3033, -3.4028235e+38
      %v3167 = vsel %vm621, %v3073, -3.4028235e+38
      %v3168 = vsel %vm622, %v3076, -3.4028235e+38
      %v3169 = vsel %vm623, %v3081, -3.4028235e+38
      %v3170 = vsel %vm624, %v3084, -3.4028235e+38
      %v3171 = vsel %vm625, %v3089, -3.4028235e+38
      %v3172 = vsel %vm626, %v3092, -3.4028235e+38
      %v3173 = vsel %vm627, %v3097, -3.4028235e+38
      %v3174 = vsel %vm628, %v3100, -3.4028235e+38
      %v3175 = vsel %vm629, %v3105, -3.4028235e+38
      %v3176 = vsel %vm630, %v3108, -3.4028235e+38
      %v3177 = vsel %vm631, %v3113, -3.4028235e+38
      %v3178 = vsel %vm632, %v3116, -3.4028235e+38
      %v3179 = vsel %vm633, %v3121, -3.4028235e+38
      %v3180 = vsel %vm634, %v3124, -3.4028235e+38
      %v3181 = vsel %vm635, %v3129, -3.4028235e+38
      %v3182 = vsel %vm636, %v3132, -3.4028235e+38
      %v3183 = vmax.f32 %v3135, %v3136
      %3184 = vmax.xlane.f32.xlu0 %v3183
      %v3185 = vpop.xlane.xlu0 %3184
      %v3186 = vmax.f32 %v3137, %v3138
      %3187 = vmax.xlane.f32.xlu0 %v3186
      %v3188 = vpop.xlane.xlu0 %3187
      %v3189 = vmax.f32 %v3139, %v3140
      %3190 = vmax.xlane.f32.xlu0 %v3189
      %v3191 = vpop.xlane.xlu0 %3190
      %v3192 = vmax.f32 %v3141, %v3142
      %3193 = vmax.xlane.f32.xlu0 %v3192
      %v3194 = vpop.xlane.xlu0 %3193
      %v3195 = vmax.f32 %v3143, %v3144
      %3196 = vmax.xlane.f32.xlu0 %v3195
      %v3197 = vpop.xlane.xlu0 %3196
      %v3198 = vmax.f32 %v3145, %v3146
      %3199 = vmax.xlane.f32.xlu0 %v3198
      %v3200 = vpop.xlane.xlu0 %3199
      %v3201 = vmax.f32 %v3147, %v3148
      %3202 = vmax.xlane.f32.xlu0 %v3201
      %v3203 = vpop.xlane.xlu0 %3202
      %v3204 = vmax.f32 %v3149, %v3150
      %3205 = vmax.xlane.f32.xlu0 %v3204
      %v3206 = vpop.xlane.xlu0 %3205
      %v3207 = vmax.f32 %v3151, %v3152
      %3208 = vmax.xlane.f32.xlu0 %v3207
      %v3209 = vpop.xlane.xlu0 %3208
      %v3210 = vmax.f32 %v3153, %v3154
      %3211 = vmax.xlane.f32.xlu0 %v3210
      %v3212 = vpop.xlane.xlu0 %3211
      %v3213 = vmax.f32 %v3155, %v3156
      %3214 = vmax.xlane.f32.xlu0 %v3213
      %v3215 = vpop.xlane.xlu0 %3214
      %v3216 = vmax.f32 %v3157, %v3158
      %3217 = vmax.xlane.f32.xlu0 %v3216
      %v3218 = vpop.xlane.xlu0 %3217
      %v3219 = vmax.f32 %v3159, %v3160
      %3220 = vmax.xlane.f32.xlu0 %v3219
      %v3221 = vpop.xlane.xlu0 %3220
      %v3222 = vmax.f32 %v3161, %v3162
      %3223 = vmax.xlane.f32.xlu0 %v3222
      %v3224 = vpop.xlane.xlu0 %3223
      %v3225 = vmax.f32 %v3163, %v3164
      %3226 = vmax.xlane.f32.xlu0 %v3225
      %v3227 = vpop.xlane.xlu0 %3226
      %v3228 = vmax.f32 %v3165, %v3166
      %3229 = vmax.xlane.f32.xlu0 %v3228
      %v3230 = vpop.xlane.xlu0 %3229
      %v3231 = vsel %vm1647, %v3167, -inf
      %3232 = vmax.xlane.f32.xlu0 %v3231
      %v3233 = vpop.xlane.xlu0 %3232
      %v3234 = vsel %vm1647, %v3168, -inf
      %3235 = vmax.xlane.f32.xlu0 %v3234
      %v3236 = vpop.xlane.xlu0 %3235
      %v3237 = vsel %vm1647, %v3169, -inf
      %3238 = vmax.xlane.f32.xlu0 %v3237
      %v3239 = vpop.xlane.xlu0 %3238
      %v3240 = vsel %vm1647, %v3170, -inf
      %3241 = vmax.xlane.f32.xlu0 %v3240
      %v3242 = vpop.xlane.xlu0 %3241
      %v3243 = vsel %vm1647, %v3171, -inf
      %3244 = vmax.xlane.f32.xlu0 %v3243
      %v3245 = vpop.xlane.xlu0 %3244
      %v3246 = vsel %vm1647, %v3172, -inf
      %3247 = vmax.xlane.f32.xlu0 %v3246
      %v3248 = vpop.xlane.xlu0 %3247
      %v3249 = vsel %vm1647, %v3173, -inf
      %3250 = vmax.xlane.f32.xlu0 %v3249
      %v3251 = vpop.xlane.xlu0 %3250
      %v3252 = vsel %vm1647, %v3174, -inf
      %3253 = vmax.xlane.f32.xlu0 %v3252
      %v3254 = vpop.xlane.xlu0 %3253
      %v3255 = vsel %vm1647, %v3175, -inf
      %3256 = vmax.xlane.f32.xlu0 %v3255
      %v3257 = vpop.xlane.xlu0 %3256
      %v3258 = vsel %vm1647, %v3176, -inf
      %3259 = vmax.xlane.f32.xlu0 %v3258
      %v3260 = vpop.xlane.xlu0 %3259
      %v3261 = vsel %vm1647, %v3177, -inf
      %3262 = vmax.xlane.f32.xlu0 %v3261
      %v3263 = vpop.xlane.xlu0 %3262
      %v3264 = vsel %vm1647, %v3178, -inf
      %3265 = vmax.xlane.f32.xlu0 %v3264
      %v3266 = vpop.xlane.xlu0 %3265
      %v3267 = vsel %vm1647, %v3179, -inf
      %3268 = vmax.xlane.f32.xlu0 %v3267
      %v3269 = vpop.xlane.xlu0 %3268
      %v3270 = vsel %vm1647, %v3180, -inf
      %3271 = vmax.xlane.f32.xlu0 %v3270
      %v3272 = vpop.xlane.xlu0 %3271
      %v3273 = vsel %vm1647, %v3181, -inf
      %3274 = vmax.xlane.f32.xlu0 %v3273
      %v3275 = vpop.xlane.xlu0 %3274
      %v3276 = vsel %vm1647, %v3182, -inf
      %3277 = vmax.xlane.f32.xlu0 %v3276
      %v3278 = vpop.xlane.xlu0 %3277
      %v3279 = vmax.f32 %v3185, %v3233
      %v3280 = vmax.f32 %v3188, %v3236
      %v3281 = vmax.f32 %v3191, %v3239
      %v3282 = vmax.f32 %v3194, %v3242
      %v3283 = vmax.f32 %v3197, %v3245
      %v3284 = vmax.f32 %v3200, %v3248
      %v3285 = vmax.f32 %v3203, %v3251
      %v3286 = vmax.f32 %v3206, %v3254
      %v3287 = vmax.f32 %v3209, %v3257
      %v3288 = vmax.f32 %v3212, %v3260
      %v3289 = vmax.f32 %v3215, %v3263
      %v3290 = vmax.f32 %v3218, %v3266
      %v3291 = vmax.f32 %v3221, %v3269
      %v3292 = vmax.f32 %v3224, %v3272
      %v3293 = vmax.f32 %v3227, %v3275
      %v3294 = vmax.f32 %v3230, %v3278
      %v3295 = vsub.f32 %v3135, %v3279
      %v3296 = vsub.f32 %v3136, %v3279
      %v3297 = vsub.f32 %v3137, %v3280
      %v3298 = vsub.f32 %v3138, %v3280
      %v3299 = vsub.f32 %v3139, %v3281
      %v3300 = vsub.f32 %v3140, %v3281
      %v3301 = vsub.f32 %v3141, %v3282
      %v3302 = vsub.f32 %v3142, %v3282
      %v3303 = vsub.f32 %v3143, %v3283
      %v3304 = vsub.f32 %v3144, %v3283
      %v3305 = vsub.f32 %v3145, %v3284
      %v3306 = vsub.f32 %v3146, %v3284
      %v3307 = vsub.f32 %v3147, %v3285
      %v3308 = vsub.f32 %v3148, %v3285
      %v3309 = vsub.f32 %v3149, %v3286
      %v3310 = vsub.f32 %v3150, %v3286
      %v3311 = vsub.f32 %v3151, %v3287
      %v3312 = vsub.f32 %v3152, %v3287
      %v3313 = vsub.f32 %v3153, %v3288
      %v3314 = vsub.f32 %v3154, %v3288
      %v3315 = vsub.f32 %v3155, %v3289
      %v3316 = vsub.f32 %v3156, %v3289
      %v3317 = vsub.f32 %v3157, %v3290
      %v3318 = vsub.f32 %v3158, %v3290
      %v3319 = vsub.f32 %v3159, %v3291
      %v3320 = vsub.f32 %v3160, %v3291
      %v3321 = vsub.f32 %v3161, %v3292
      %v3322 = vsub.f32 %v3162, %v3292
      %v3323 = vsub.f32 %v3163, %v3293
      %v3324 = vsub.f32 %v3164, %v3293
      %v3325 = vsub.f32 %v3165, %v3294
      %v3326 = vsub.f32 %v3166, %v3294
      %v3327 = vmul.f32 %v3295, 1.442695
      %v3328 = vpow.pop %v3327
      %v3329 = vmul.f32 %v3296, 1.442695
      %v3330 = vpow.pop %v3329
      %v3331 = vmul.f32 %v3297, 1.442695
      %v3332 = vpow.pop %v3331
      %v3333 = vmul.f32 %v3298, 1.442695
      %v3334 = vpow.pop %v3333
      %v3335 = vmul.f32 %v3299, 1.442695
      %v3336 = vpow.pop %v3335
      %v3337 = vmul.f32 %v3300, 1.442695
      %v3338 = vpow.pop %v3337
      %v3339 = vmul.f32 %v3301, 1.442695
      %v3340 = vpow.pop %v3339
      %v3341 = vmul.f32 %v3302, 1.442695
      %v3342 = vpow.pop %v3341
      %v3343 = vmul.f32 %v3303, 1.442695
      %v3344 = vpow.pop %v3343
      %v3345 = vmul.f32 %v3304, 1.442695
      %v3346 = vpow.pop %v3345
      %v3347 = vmul.f32 %v3305, 1.442695
      %v3348 = vpow.pop %v3347
      %v3349 = vmul.f32 %v3306, 1.442695
      %v3350 = vpow.pop %v3349
      %v3351 = vmul.f32 %v3307, 1.442695
      %v3352 = vpow.pop %v3351
      %v3353 = vmul.f32 %v3308, 1.442695
      %v3354 = vpow.pop %v3353
      %v3355 = vmul.f32 %v3309, 1.442695
      %v3356 = vpow.pop %v3355
      %v3357 = vmul.f32 %v3310, 1.442695
      %v3358 = vpow.pop %v3357
      %v3359 = vmul.f32 %v3311, 1.442695
      %v3360 = vpow.pop %v3359
      %v3361 = vmul.f32 %v3312, 1.442695
      %v3362 = vpow.pop %v3361
      %v3363 = vmul.f32 %v3313, 1.442695
      %v3364 = vpow.pop %v3363
      %v3365 = vmul.f32 %v3314, 1.442695
      %v3366 = vpow.pop %v3365
      %v3367 = vmul.f32 %v3315, 1.442695
      %v3368 = vpow.pop %v3367
      %v3369 = vmul.f32 %v3316, 1.442695
      %v3370 = vpow.pop %v3369
      %v3371 = vmul.f32 %v3317, 1.442695
      %v3372 = vpow.pop %v3371
      %v3373 = vmul.f32 %v3318, 1.442695
      %v3374 = vpow.pop %v3373
      %v3375 = vmul.f32 %v3319, 1.442695
      %v3376 = vpow.pop %v3375
      %v3377 = vmul.f32 %v3320, 1.442695
      %v3378 = vpow.pop %v3377
      %v3379 = vmul.f32 %v3321, 1.442695
      %v3380 = vpow.pop %v3379
      %v3381 = vmul.f32 %v3322, 1.442695
      %v3382 = vpow.pop %v3381
      %v3383 = vmul.f32 %v3323, 1.442695
      %v3384 = vpow.pop %v3383
      %v3385 = vmul.f32 %v3324, 1.442695
      %v3386 = vpow.pop %v3385
      %v3387 = vmul.f32 %v3325, 1.442695
      %v3388 = vpow.pop %v3387
      %v3389 = vmul.f32 %v3326, 1.442695
      %v3390 = vpow.pop %v3389
      %v3391 = vsub.f32 %v3167, %v3279
      %v3392 = vsub.f32 %v3168, %v3280
      %v3393 = vsub.f32 %v3169, %v3281
      %v3394 = vsub.f32 %v3170, %v3282
      %v3395 = vsub.f32 %v3171, %v3283
      %v3396 = vsub.f32 %v3172, %v3284
      %v3397 = vsub.f32 %v3173, %v3285
      %v3398 = vsub.f32 %v3174, %v3286
      %v3399 = vsub.f32 %v3175, %v3287
      %v3400 = vsub.f32 %v3176, %v3288
      %v3401 = vsub.f32 %v3177, %v3289
      %v3402 = vsub.f32 %v3178, %v3290
      %v3403 = vsub.f32 %v3179, %v3291
      %v3404 = vsub.f32 %v3180, %v3292
      %v3405 = vsub.f32 %v3181, %v3293
      %v3406 = vsub.f32 %v3182, %v3294
      %v3407 = vmul.f32 %v3391, 1.442695
      %v3408 = vpow.pop %v3407
      %v3409 = vmul.f32 %v3392, 1.442695
      %v3410 = vpow.pop %v3409
      %v3411 = vmul.f32 %v3393, 1.442695
      %v3412 = vpow.pop %v3411
      %v3413 = vmul.f32 %v3394, 1.442695
      %v3414 = vpow.pop %v3413
      %v3415 = vmul.f32 %v3395, 1.442695
      %v3416 = vpow.pop %v3415
      %v3417 = vmul.f32 %v3396, 1.442695
      %v3418 = vpow.pop %v3417
      %v3419 = vmul.f32 %v3397, 1.442695
      %v3420 = vpow.pop %v3419
      %v3421 = vmul.f32 %v3398, 1.442695
      %v3422 = vpow.pop %v3421
      %v3423 = vmul.f32 %v3399, 1.442695
      %v3424 = vpow.pop %v3423
      %v3425 = vmul.f32 %v3400, 1.442695
      %v3426 = vpow.pop %v3425
      %v3427 = vmul.f32 %v3401, 1.442695
      %v3428 = vpow.pop %v3427
      %v3429 = vmul.f32 %v3402, 1.442695
      %v3430 = vpow.pop %v3429
      %v3431 = vmul.f32 %v3403, 1.442695
      %v3432 = vpow.pop %v3431
      %v3433 = vmul.f32 %v3404, 1.442695
      %v3434 = vpow.pop %v3433
      %v3435 = vmul.f32 %v3405, 1.442695
      %v3436 = vpow.pop %v3435
      %v3437 = vmul.f32 %v3406, 1.442695
      %v3438 = vpow.pop %v3437
      %v3439 = vadd.f32 %v3328, %v3330
      %3440 = vadd.xlane.f32.xlu0 %v3439
      %v3441 = vpop.xlane.xlu0 %3440
      %v3442 = vadd.f32 %v3332, %v3334
      %3443 = vadd.xlane.f32.xlu0 %v3442
      %v3444 = vpop.xlane.xlu0 %3443
      %v3445 = vadd.f32 %v3336, %v3338
      %3446 = vadd.xlane.f32.xlu0 %v3445
      %v3447 = vpop.xlane.xlu0 %3446
      %v3448 = vadd.f32 %v3340, %v3342
      %3449 = vadd.xlane.f32.xlu0 %v3448
      %v3450 = vpop.xlane.xlu0 %3449
      %v3451 = vadd.f32 %v3344, %v3346
      %3452 = vadd.xlane.f32.xlu0 %v3451
      %v3453 = vpop.xlane.xlu0 %3452
      %v3454 = vadd.f32 %v3348, %v3350
      %3455 = vadd.xlane.f32.xlu0 %v3454
      %v3456 = vpop.xlane.xlu0 %3455
      %v3457 = vadd.f32 %v3352, %v3354
      %3458 = vadd.xlane.f32.xlu0 %v3457
      %v3459 = vpop.xlane.xlu0 %3458
      %v3460 = vadd.f32 %v3356, %v3358
      %3461 = vadd.xlane.f32.xlu0 %v3460
      %v3462 = vpop.xlane.xlu0 %3461
      %v3463 = vadd.f32 %v3360, %v3362
      %3464 = vadd.xlane.f32.xlu0 %v3463
      %v3465 = vpop.xlane.xlu0 %3464
      %v3466 = vadd.f32 %v3364, %v3366
      %3467 = vadd.xlane.f32.xlu0 %v3466
      %v3468 = vpop.xlane.xlu0 %3467
      %v3469 = vadd.f32 %v3368, %v3370
      %3470 = vadd.xlane.f32.xlu0 %v3469
      %v3471 = vpop.xlane.xlu0 %3470
      %v3472 = vadd.f32 %v3372, %v3374
      %3473 = vadd.xlane.f32.xlu0 %v3472
      %v3474 = vpop.xlane.xlu0 %3473
      %v3475 = vadd.f32 %v3376, %v3378
      %3476 = vadd.xlane.f32.xlu0 %v3475
      %v3477 = vpop.xlane.xlu0 %3476
      %v3478 = vadd.f32 %v3380, %v3382
      %3479 = vadd.xlane.f32.xlu0 %v3478
      %v3480 = vpop.xlane.xlu0 %3479
      %v3481 = vadd.f32 %v3384, %v3386
      %3482 = vadd.xlane.f32.xlu0 %v3481
      %v3483 = vpop.xlane.xlu0 %3482
      %v3484 = vadd.f32 %v3388, %v3390
      %3485 = vadd.xlane.f32.xlu0 %v3484
      %v3486 = vpop.xlane.xlu0 %3485
      %v3487 = vsel %vm1647, %v3408, 0.0
      %3488 = vadd.xlane.f32.xlu0 %v3487
      %v3489 = vpop.xlane.xlu0 %3488
      %v3490 = vsel %vm1647, %v3410, 0.0
      %3491 = vadd.xlane.f32.xlu0 %v3490
      %v3492 = vpop.xlane.xlu0 %3491
      %v3493 = vsel %vm1647, %v3412, 0.0
      %3494 = vadd.xlane.f32.xlu0 %v3493
      %v3495 = vpop.xlane.xlu0 %3494
      %v3496 = vsel %vm1647, %v3414, 0.0
      %3497 = vadd.xlane.f32.xlu0 %v3496
      %v3498 = vpop.xlane.xlu0 %3497
      %v3499 = vsel %vm1647, %v3416, 0.0
      %3500 = vadd.xlane.f32.xlu0 %v3499
      %v3501 = vpop.xlane.xlu0 %3500
      %v3502 = vsel %vm1647, %v3418, 0.0
      %3503 = vadd.xlane.f32.xlu0 %v3502
      %v3504 = vpop.xlane.xlu0 %3503
      %v3505 = vsel %vm1647, %v3420, 0.0
      %3506 = vadd.xlane.f32.xlu0 %v3505
      %v3507 = vpop.xlane.xlu0 %3506
      %v3508 = vsel %vm1647, %v3422, 0.0
      %3509 = vadd.xlane.f32.xlu0 %v3508
      %v3510 = vpop.xlane.xlu0 %3509
      %v3511 = vsel %vm1647, %v3424, 0.0
      %3512 = vadd.xlane.f32.xlu0 %v3511
      %v3513 = vpop.xlane.xlu0 %3512
      %v3514 = vsel %vm1647, %v3426, 0.0
      %3515 = vadd.xlane.f32.xlu0 %v3514
      %v3516 = vpop.xlane.xlu0 %3515
      %v3517 = vsel %vm1647, %v3428, 0.0
      %3518 = vadd.xlane.f32.xlu0 %v3517
      %v3519 = vpop.xlane.xlu0 %3518
      %v3520 = vsel %vm1647, %v3430, 0.0
      %3521 = vadd.xlane.f32.xlu0 %v3520
      %v3522 = vpop.xlane.xlu0 %3521
      %v3523 = vsel %vm1647, %v3432, 0.0
      %3524 = vadd.xlane.f32.xlu0 %v3523
      %v3525 = vpop.xlane.xlu0 %3524
      %v3526 = vsel %vm1647, %v3434, 0.0
      %3527 = vadd.xlane.f32.xlu0 %v3526
      %v3528 = vpop.xlane.xlu0 %3527
      %v3529 = vsel %vm1647, %v3436, 0.0
      %3530 = vadd.xlane.f32.xlu0 %v3529
      %v3531 = vpop.xlane.xlu0 %3530
      %v3532 = vsel %vm1647, %v3438, 0.0
      %3533 = vadd.xlane.f32.xlu0 %v3532
      %v3534 = vpop.xlane.xlu0 %3533
      %v3535 = vadd.f32 %v3441, %v3489
      %v3536 = vadd.f32 %v3444, %v3492
      %v3537 = vadd.f32 %v3447, %v3495
      %v3538 = vadd.f32 %v3450, %v3498
      %v3539 = vadd.f32 %v3453, %v3501
      %v3540 = vadd.f32 %v3456, %v3504
      %v3541 = vadd.f32 %v3459, %v3507
      %v3542 = vadd.f32 %v3462, %v3510
      %v3543 = vadd.f32 %v3465, %v3513
      %v3544 = vadd.f32 %v3468, %v3516
      %v3545 = vadd.f32 %v3471, %v3519
      %v3546 = vadd.f32 %v3474, %v3522
      %v3547 = vadd.f32 %v3477, %v3525
      %v3548 = vadd.f32 %v3480, %v3528
      %v3549 = vadd.f32 %v3483, %v3531
      %v3550 = vadd.f32 %v3486, %v3534
      %v3551 = vpack.c.bf16 %v3410, %v3408
      %v3552 = vpack.c.bf16 %v3414, %v3412
      %v3553 = vpack.c.bf16 %v3418, %v3416
      %v3554 = vpack.c.bf16 %v3422, %v3420
      %v3555 = vpack.c.bf16 %v3426, %v3424
      %v3556 = vpack.c.bf16 %v3430, %v3428
      %v3557 = vpack.c.bf16 %v3434, %v3432
      %v3558 = vpack.c.bf16 %v3438, %v3436
      %v3559 = vpack.c.bf16 %v3332, %v3328
      %v3560 = vpack.c.bf16 %v3334, %v3330
      %v3561 = vpack.c.bf16 %v3340, %v3336
      %v3562 = vpack.c.bf16 %v3342, %v3338
      %v3563 = vpack.c.bf16 %v3348, %v3344
      %v3564 = vpack.c.bf16 %v3350, %v3346
      %v3565 = vpack.c.bf16 %v3356, %v3352
      %v3566 = vpack.c.bf16 %v3358, %v3354
      %v3567 = vpack.c.bf16 %v3364, %v3360
      %v3568 = vpack.c.bf16 %v3366, %v3362
      %v3569 = vpack.c.bf16 %v3372, %v3368
      %v3570 = vpack.c.bf16 %v3374, %v3370
      %v3571 = vpack.c.bf16 %v3380, %v3376
      %v3572 = vpack.c.bf16 %v3382, %v3378
      %v3573 = vpack.c.bf16 %v3388, %v3384
      %v3574 = vpack.c.bf16 %v3390, %v3386
      %3575 = vmatprep.subr.bf16.mxu0 0
      %3576 = vmatpush1.bf16.msra.mxu0 %v2833
      %3577 = vmatprep.subr.bf16.mxu0 0
      %3578 = vmatpush1.bf16.msra.mxu0 %v2834
      %3579 = vmatprep.subr.bf16.mxu0 0
      %3580 = vmatpush1.bf16.msra.mxu0 %v2835
      %3581 = vmatprep.subr.bf16.mxu0 0
      %3582 = vmatpush1.bf16.msra.mxu0 %v2836
      %3583 = vmatprep.subr.bf16.mxu0 0
      %3584 = vmatpush1.bf16.msra.mxu0 %v2837
      %3585 = vmatprep.subr.bf16.mxu0 0
      %3586 = vmatpush1.bf16.msra.mxu0 %v2838
      %3587 = vmatprep.subr.bf16.mxu0 0
      %3588 = vmatpush1.bf16.msra.mxu0 %v2839
      %3589 = vmatprep.subr.bf16.mxu0 0
      %3590 = vmatpush1.bf16.msra.mxu0 %v2840
      %3591 = vmatprep.subr.bf16.mxu0 0
      %3592 = vmatpush1.bf16.msra.mxu0 %v2841
      %3593 = vmatprep.subr.bf16.mxu0 0
      %3594 = vmatpush1.bf16.msra.mxu0 %v2842
      %3595 = vmatprep.subr.bf16.mxu0 0
      %3596 = vmatpush1.bf16.msra.mxu0 %v2843
      %3597 = vmatprep.subr.bf16.mxu0 0
      %3598 = vmatpush1.bf16.msra.mxu0 %v2844
      %3599 = vmatprep.subr.bf16.mxu0 0
      %3600 = vmatpush1.bf16.msra.mxu0 %v2845
      %3601 = vmatprep.subr.bf16.mxu0 0
      %3602 = vmatpush1.bf16.msra.mxu0 %v2846
      %3603 = vmatprep.subr.bf16.mxu0 0
      %3604 = vmatpush1.bf16.msra.mxu0 %v2847
      %3605 = vmatprep.subr.bf16.mxu0 0
      %3606 = vmatpush1.bf16.msra.mxu0 %v2848
      %3607 = vmatprep.mubr.bf16.mxu0 %v3560
      %3608 = vmatmul.mubr.bf16.gmra.mrb[0].mxu0 %v3559
      %v3609 = vpop.f32.mrb[0].mxu0
      %v3610 = vadd.f32 0.0, %v3609
      %v3611 = vpop.f32.mrb[0].mxu0
      %v3612 = vpop.f32.mrb[0].mxu0
      %v3613 = vadd.f32 0.0, %v3612
      %v3614 = vpop.f32.mrb[0].mxu0
      %3615 = vmatprep.mubr.bf16.mxu0 %v3562
      %3616 = vmatmul.mubr.bf16.gmra.mrb[0].mxu0 %v3561
      %v3617 = vpop.f32.mrb[0].mxu0
      %v3618 = vadd.f32 0.0, %v3617
      %v3619 = vpop.f32.mrb[0].mxu0
      %v3620 = vpop.f32.mrb[0].mxu0
      %v3621 = vadd.f32 0.0, %v3620
      %v3622 = vpop.f32.mrb[0].mxu0
      %3623 = vmatprep.mubr.bf16.mxu0 %v3564
      %3624 = vmatmul.mubr.bf16.gmra.mrb[0].mxu0 %v3563
      %v3625 = vpop.f32.mrb[0].mxu0
      %v3626 = vadd.f32 0.0, %v3625
      %v3627 = vpop.f32.mrb[0].mxu0
      %v3628 = vpop.f32.mrb[0].mxu0
      %v3629 = vadd.f32 0.0, %v3628
      %v3630 = vpop.f32.mrb[0].mxu0
      %3631 = vmatprep.mubr.bf16.mxu0 %v3566
      %3632 = vmatmul.mubr.bf16.gmra.mrb[0].mxu0 %v3565
      %v3633 = vpop.f32.mrb[0].mxu0
      %v3634 = vadd.f32 0.0, %v3633
      %v3635 = vpop.f32.mrb[0].mxu0
      %v3636 = vpop.f32.mrb[0].mxu0
      %v3637 = vadd.f32 0.0, %v3636
      %v3638 = vpop.f32.mrb[0].mxu0
      %3639 = vmatprep.mubr.bf16.mxu0 %v3568
      %3640 = vmatmul.mubr.bf16.gmra.mrb[0].mxu0 %v3567
      %v3641 = vpop.f32.mrb[0].mxu0
      %v3642 = vadd.f32 0.0, %v3641
      %v3643 = vpop.f32.mrb[0].mxu0
      %v3644 = vpop.f32.mrb[0].mxu0
      %v3645 = vadd.f32 0.0, %v3644
      %v3646 = vpop.f32.mrb[0].mxu0
      %3647 = vmatprep.mubr.bf16.mxu0 %v3570
      %3648 = vmatmul.mubr.bf16.gmra.mrb[0].mxu0 %v3569
      %v3649 = vpop.f32.mrb[0].mxu0
      %v3650 = vadd.f32 0.0, %v3649
      %v3651 = vpop.f32.mrb[0].mxu0
      %v3652 = vpop.f32.mrb[0].mxu0
      %v3653 = vadd.f32 0.0, %v3652
      %v3654 = vpop.f32.mrb[0].mxu0
      %3655 = vmatprep.mubr.bf16.mxu0 %v3572
      %3656 = vmatmul.mubr.bf16.gmra.mrb[0].mxu0 %v3571
      %v3657 = vpop.f32.mrb[0].mxu0
      %v3658 = vadd.f32 0.0, %v3657
      %v3659 = vpop.f32.mrb[0].mxu0
      %v3660 = vpop.f32.mrb[0].mxu0
      %v3661 = vadd.f32 0.0, %v3660
      %v3662 = vpop.f32.mrb[0].mxu0
      %3663 = vmatprep.mubr.bf16.mxu0 %v3574
      %3664 = vmatmul.mubr.bf16.gmra.mrb[0].mxu0 %v3573
      %v3665 = vpop.f32.mrb[0].mxu0
      %v3666 = vadd.f32 0.0, %v3665
      %v3667 = vpop.f32.mrb[0].mxu0
      %v3668 = vpop.f32.mrb[0].mxu0
      %v3669 = vadd.f32 0.0, %v3668
      %v3670 = vpop.f32.mrb[0].mxu0
      %3671 = vdwg.mxu0
      %v3673 = vsel %vm1647, %v3551, 0
      %v3676 = vsel %vm1647, %v3552, 0
      %v3679 = vsel %vm1647, %v3553, 0
      %v3682 = vsel %vm1647, %v3554, 0
      %v3685 = vsel %vm1647, %v3555, 0
      %v3688 = vsel %vm1647, %v3556, 0
      %v3691 = vsel %vm1647, %v3557, 0
      %v3694 = vsel %vm1647, %v3558, 0
      %v3696 = vsel %vm2113, %v2849, 0
      %3698 = vmatprep.subr.bf16.mxu0 0
      %3699 = vmatpush1.bf16.msra.mxu0 %v3696
      %3700 = vmatprep.subr.bf16.mxu0 0
      %3701 = vmatpush1.bf16.msra.mxu0 0
      %3702 = vmatprep.subr.bf16.mxu0 0
      %3703 = vmatpush1.bf16.msra.mxu0 0
      %3704 = vmatprep.subr.bf16.mxu0 0
      %3705 = vmatpush1.bf16.msra.mxu0 0
      %3706 = vmatprep.subr.bf16.mxu0 0
      %3707 = vmatpush1.bf16.msra.mxu0 0
      %3708 = vmatprep.subr.bf16.mxu0 0
      %3709 = vmatpush1.bf16.msra.mxu0 0
      %3710 = vmatprep.subr.bf16.mxu0 0
      %3711 = vmatpush1.bf16.msra.mxu0 0
      %3712 = vmatprep.subr.bf16.mxu0 0
      %3713 = vmatpush1.bf16.msra.mxu0 0
      %3714 = vmatprep.subr.bf16.mxu0 0
      %3715 = vmatpush1.bf16.msra.mxu0 0
      %3716 = vmatprep.subr.bf16.mxu0 0
      %3717 = vmatpush1.bf16.msra.mxu0 0
      %3718 = vmatprep.subr.bf16.mxu0 0
      %3719 = vmatpush1.bf16.msra.mxu0 0
      %3720 = vmatprep.subr.bf16.mxu0 0
      %3721 = vmatpush1.bf16.msra.mxu0 0
      %3722 = vmatprep.subr.bf16.mxu0 0
      %3723 = vmatpush1.bf16.msra.mxu0 0
      %3724 = vmatprep.subr.bf16.mxu0 0
      %3725 = vmatpush1.bf16.msra.mxu0 0
      %3726 = vmatprep.subr.bf16.mxu0 0
      %3727 = vmatpush1.bf16.msra.mxu0 0
      %3728 = vmatprep.subr.bf16.mxu0 0
      %3729 = vmatpush1.bf16.msra.mxu0 0
      %3730 = vmatprep.mubr.bf16.mxu0 0
      %3731 = vmatmul.mubr.bf16.gmra.mrb[0].mxu0 %v3673
      %v3732 = vpop.f32.mrb[0].mxu0
      %v3733 = vadd.f32 %v3610, %v3732
      %v3734 = vpop.f32.mrb[0].mxu0
      %v3735 = vpop.f32.mrb[0].mxu0
      %v3736 = vadd.f32 %v3613, %v3735
      %v3737 = vpop.f32.mrb[0].mxu0
      %3738 = vmatprep.mubr.bf16.mxu0 0
      %3739 = vmatmul.mubr.bf16.gmra.mrb[0].mxu0 %v3676
      %v3740 = vpop.f32.mrb[0].mxu0
      %v3741 = vadd.f32 %v3618, %v3740
      %v3742 = vpop.f32.mrb[0].mxu0
      %v3743 = vpop.f32.mrb[0].mxu0
      %v3744 = vadd.f32 %v3621, %v3743
      %v3745 = vpop.f32.mrb[0].mxu0
      %3746 = vmatprep.mubr.bf16.mxu0 0
      %3747 = vmatmul.mubr.bf16.gmra.mrb[0].mxu0 %v3679
      %v3748 = vpop.f32.mrb[0].mxu0
      %v3749 = vadd.f32 %v3626, %v3748
      %v3750 = vpop.f32.mrb[0].mxu0
      %v3751 = vpop.f32.mrb[0].mxu0
      %v3752 = vadd.f32 %v3629, %v3751
      %v3753 = vpop.f32.mrb[0].mxu0
      %3754 = vmatprep.mubr.bf16.mxu0 0
      %3755 = vmatmul.mubr.bf16.gmra.mrb[0].mxu0 %v3682
      %v3756 = vpop.f32.mrb[0].mxu0
      %v3757 = vadd.f32 %v3634, %v3756
      %v3758 = vpop.f32.mrb[0].mxu0
      %v3759 = vpop.f32.mrb[0].mxu0
      %v3760 = vadd.f32 %v3637, %v3759
      %v3761 = vpop.f32.mrb[0].mxu0
      %3762 = vmatprep.mubr.bf16.mxu0 0
      %3763 = vmatmul.mubr.bf16.gmra.mrb[0].mxu0 %v3685
      %v3764 = vpop.f32.mrb[0].mxu0
      %v3765 = vadd.f32 %v3642, %v3764
      %v3766 = vpop.f32.mrb[0].mxu0
      %v3767 = vpop.f32.mrb[0].mxu0
      %v3768 = vadd.f32 %v3645, %v3767
      %v3769 = vpop.f32.mrb[0].mxu0
      %3770 = vmatprep.mubr.bf16.mxu0 0
      %3771 = vmatmul.mubr.bf16.gmra.mrb[0].mxu0 %v3688
      %v3772 = vpop.f32.mrb[0].mxu0
      %v3773 = vadd.f32 %v3650, %v3772
      %v3774 = vpop.f32.mrb[0].mxu0
      %v3775 = vpop.f32.mrb[0].mxu0
      %v3776 = vadd.f32 %v3653, %v3775
      %v3777 = vpop.f32.mrb[0].mxu0
      %3778 = vmatprep.mubr.bf16.mxu0 0
      %3779 = vmatmul.mubr.bf16.gmra.mrb[0].mxu0 %v3691
      %v3780 = vpop.f32.mrb[0].mxu0
      %v3781 = vadd.f32 %v3658, %v3780
      %v3782 = vpop.f32.mrb[0].mxu0
      %v3783 = vpop.f32.mrb[0].mxu0
      %v3784 = vadd.f32 %v3661, %v3783
      %v3785 = vpop.f32.mrb[0].mxu0
      %3786 = vmatprep.mubr.bf16.mxu0 0
      %3787 = vmatmul.mubr.bf16.gmra.mrb[0].mxu0 %v3694
      %v3788 = vpop.f32.mrb[0].mxu0
      %v3789 = vadd.f32 %v3666, %v3788
      %v3790 = vpop.f32.mrb[0].mxu0
      %v3791 = vpop.f32.mrb[0].mxu0
      %v3792 = vadd.f32 %v3669, %v3791
      %v3793 = vpop.f32.mrb[0].mxu0
      %3794 = vdwg.mxu0
      %v3795 = vrcp.pop %v3535
      %v3796 = vmul.f32 %v3733, %v3795
      %v3797 = vrcp.pop %v3536
      %v3798 = vmul.f32 %v3736, %v3797
      %v3799 = vrcp.pop %v3537
      %v3800 = vmul.f32 %v3741, %v3799
      %v3801 = vrcp.pop %v3538
      %v3802 = vmul.f32 %v3744, %v3801
      %v3803 = vrcp.pop %v3539
      %v3804 = vmul.f32 %v3749, %v3803
      %v3805 = vrcp.pop %v3540
      %v3806 = vmul.f32 %v3752, %v3805
      %v3807 = vrcp.pop %v3541
      %v3808 = vmul.f32 %v3757, %v3807
      %v3809 = vrcp.pop %v3542
      %v3810 = vmul.f32 %v3760, %v3809
      %v3811 = vrcp.pop %v3543
      %v3812 = vmul.f32 %v3765, %v3811
      %v3813 = vrcp.pop %v3544
      %v3814 = vmul.f32 %v3768, %v3813
      %v3815 = vrcp.pop %v3545
      %v3816 = vmul.f32 %v3773, %v3815
      %v3817 = vrcp.pop %v3546
      %v3818 = vmul.f32 %v3776, %v3817
      %v3819 = vrcp.pop %v3547
      %v3820 = vmul.f32 %v3781, %v3819
      %v3821 = vrcp.pop %v3548
      %v3822 = vmul.f32 %v3784, %v3821
      %v3823 = vrcp.pop %v3549
      %v3824 = vmul.f32 %v3789, %v3823
      %v3825 = vrcp.pop %v3550
      %v3826 = vmul.f32 %v3792, %v3825
      %3843 = vrot.lane.b32.xlu0 %v3796, 16
      %v3844 = vpop.permute.xlu0 %3843
      %3845 = vrot.lane.b32.xlu0 %v3798, 16
      %v3846 = vpop.permute.xlu0 %3845
      %3847 = vrot.lane.b32.xlu0 %v3800, 16
      %v3848 = vpop.permute.xlu0 %3847
      %3849 = vrot.lane.b32.xlu0 %v3802, 16
      %v3850 = vpop.permute.xlu0 %3849
      %3851 = vrot.lane.b32.xlu0 %v3804, 16
      %v3852 = vpop.permute.xlu0 %3851
      %3853 = vrot.lane.b32.xlu0 %v3806, 16
      %v3854 = vpop.permute.xlu0 %3853
      %3855 = vrot.lane.b32.xlu0 %v3808, 16
      %v3856 = vpop.permute.xlu0 %3855
      %3857 = vrot.lane.b32.xlu0 %v3810, 16
      %v3858 = vpop.permute.xlu0 %3857
      %3859 = vrot.lane.b32.xlu0 %v3812, 16
      %v3860 = vpop.permute.xlu0 %3859
      %3861 = vrot.lane.b32.xlu0 %v3814, 16
      %v3862 = vpop.permute.xlu0 %3861
      %3863 = vrot.lane.b32.xlu0 %v3816, 16
      %v3864 = vpop.permute.xlu0 %3863
      %3865 = vrot.lane.b32.xlu0 %v3818, 16
      %v3866 = vpop.permute.xlu0 %3865
      %3867 = vrot.lane.b32.xlu0 %v3820, 16
      %v3868 = vpop.permute.xlu0 %3867
      %3869 = vrot.lane.b32.xlu0 %v3822, 16
      %v3870 = vpop.permute.xlu0 %3869
      %3871 = vrot.lane.b32.xlu0 %v3824, 16
      %v3872 = vpop.permute.xlu0 %3871
      %3873 = vrot.lane.b32.xlu0 %v3826, 16
      %v3874 = vpop.permute.xlu0 %3873
      %v3891 = vsel %vm727, %v2214, %v3844
      %v3892 = vsel %vm727, %v2216, %v3846
      %v3893 = vsel %vm727, %v2218, %v3848
      %v3894 = vsel %vm727, %v2220, %v3850
      %v3895 = vsel %vm727, %v2222, %v3852
      %v3896 = vsel %vm727, %v2224, %v3854
      %v3897 = vsel %vm727, %v2226, %v3856
      %v3898 = vsel %vm727, %v2228, %v3858
      %v3899 = vsel %vm727, %v2230, %v3860
      %v3900 = vsel %vm727, %v2232, %v3862
      %v3901 = vsel %vm727, %v2234, %v3864
      %v3902 = vsel %vm727, %v2236, %v3866
      %v3903 = vsel %vm727, %v2238, %v3868
      %v3904 = vsel %vm727, %v2240, %v3870
      %v3905 = vsel %vm727, %v2242, %v3872
      %v3906 = vsel %vm727, %v2244, %v3874
      %vm3907 = vcmask 261120
      %3908 = vst.msk [vmem:[%s433] sm:$0xff] %vm3907, %v3891
      %3909 = vst.msk [vmem:[%s433 + $0x8] sm:$0xff] %vm3907, %v3892
      %3910 = vst.msk [vmem:[%s433 + $0x10] sm:$0xff] %vm3907, %v3893
      %3911 = vst.msk [vmem:[%s433 + $0x18] sm:$0xff] %vm3907, %v3894
      %3912 = vst.msk [vmem:[%s433 + $0x20] sm:$0xff] %vm3907, %v3895
      %3913 = vst.msk [vmem:[%s433 + $0x28] sm:$0xff] %vm3907, %v3896
      %3914 = vst.msk [vmem:[%s433 + $0x30] sm:$0xff] %vm3907, %v3897
      %3915 = vst.msk [vmem:[%s433 + $0x38] sm:$0xff] %vm3907, %v3898
      %3916 = vst.msk [vmem:[%s433 + $0x40] sm:$0xff] %vm3907, %v3899
      %3917 = vst.msk [vmem:[%s433 + $0x48] sm:$0xff] %vm3907, %v3900
      %3918 = vst.msk [vmem:[%s433 + $0x50] sm:$0xff] %vm3907, %v3901
      %3919 = vst.msk [vmem:[%s433 + $0x58] sm:$0xff] %vm3907, %v3902
      %3920 = vst.msk [vmem:[%s433 + $0x60] sm:$0xff] %vm3907, %v3903
      %3921 = vst.msk [vmem:[%s433 + $0x68] sm:$0xff] %vm3907, %v3904
      %3922 = vst.msk [vmem:[%s433 + $0x70] sm:$0xff] %vm3907, %v3905
      %3923 = vst.msk [vmem:[%s433 + $0x78] sm:$0xff] %vm3907, %v3906
      %p3924 = scmp.lt.s32.totalorder %s21, 1
      %s3925 = scalar_select %p3924, %s21, 1
      %p3926 = scmp.lt.s32.totalorder %s22, 0
      %s3927 = scalar_select %p3926, %s22, 0
      %s3928 = smul.addr %s3927, 16
      %s3929 = smul.addr %s3925, 16
      %s3930 = sadd.s32 %s3928, %s3929
      %s3931 = smul.addr %s3930, 8
      %s3932 = scalar_lea.vmem %s6, %s3931
      // Predicated region
      $region45: #{run.11} parent=43 // pred_check
        %p3933 = pneg %p214
      $region46: #{run.11} parent=43 // pred_check_branch
        %3935 = sbr.rel (%p3933) target = $region48
      $region47: #{run.11} parent=43 // pred_region
        _
      $region48: #{run.11} parent=43 // pred_fallthru
        _
    $region44: #{run.11} parent=5 // pred_fallthru
      _
    %p3936 = scmp.le.s32.totalorder 2, %s12
    // Predicated region
    $region49: #{run.11} parent=5 // pred_check
      %p3937 = pneg %p3936
    $region50: #{run.11} parent=5 // pred_check_branch
      %3939 = sbr.rel (%p3937) target = $region52
    $region51: #{run.11} parent=5 // pred_region
      %s3940 = ssub.s32 %s12, 2
      // Predicated region
      $region53: #{run.11} parent=51 // pred_check
        %p3941 = pneg %p220
      $region54: #{run.11} parent=51 // pred_check_branch
        %3943 = sbr.rel (%p3941) target = $region56
      $region55: #{run.11} parent=51 // pred_region
        %p3944 = scmp.lt.s32.totalorder %s23, 1
        %s3945 = scalar_select %p3944, %s23, 1
        %p3946 = scmp.lt.s32.totalorder %s24, 0
        %s3947 = scalar_select %p3946, %s24, 0
        %s3948 = smul.addr %s3947, 16
        %s3949 = smul.addr %s3945, 16
        %s3950 = sadd.s32 %s3948, %s3949
        %s3951 = smul.addr %s3950, 8
        %s3952 = scalar_lea.vmem %s6, %s3951
      $region56: #{run.11} parent=51 // pred_fallthru
        _
    $region52: #{run.11} parent=5 // pred_fallthru
      _
  $region6: #{run.11} parent=0 // loop_footer
    %s16 = sadd.s32 1, %s12
  $region7: #{run.11} parent=0 // loop_footer_branch
    %11 = sbr.rel target = $region3
  $region8: #{run.11} parent=0 // loop_exit
    _

</llo_original>
